<compile_context>
chip_gen: v7x
topology: tpu7x:2x2x1
jax: 0.10.0
libtpu: 0.0.40
codegen_flags: <defaults>
</compile_context>

<pallas_src>
import functools
import math

import jax
import jax.numpy as jnp
from jax.experimental import pallas as pl
from jax.experimental.pallas import tpu as pltpu


CFG = dict(vocab=100, max_pos=16, hidden=32, heads=4, layers=2, inter=64,
           out_dim=64, seq=8, batch=2)


# ------------------------------ kernel helpers -------------------------------

def _erf(z):
    # Abramowitz & Stegun 7.1.26 rational approximation of erf, |error| < 1.5e-7.
    # Uses only exp / mul / add / divide -> lowers cleanly in Mosaic.
    a1, a2, a3, a4, a5 = (0.254829592, -0.284496736, 1.421413741,
                          -1.453152027, 1.061405429)
    p = 0.3275911
    sgn = jnp.where(z < 0.0, -1.0, 1.0)
    za = jnp.abs(z)
    t = 1.0 / (1.0 + p * za)
    poly = ((((a5 * t + a4) * t + a3) * t + a2) * t + a1) * t
    return sgn * (1.0 - poly * jnp.exp(-za * za))


def _gelu_exact(y):
    # Exact (erf) GELU as in HF BERT; f32 math.
    return 0.5 * y * (1.0 + _erf(y * (1.0 / math.sqrt(2.0))))


# ------------------------------- fused kernel --------------------------------

def _bert_kernel(x_ref, mask_ref, emb_g_ref, emb_b_ref,
                 wqkv_ref, bqkv_ref, wo_ref, bo_ref, ln1_g_ref, ln1_b_ref,
                 wi_ref, bi_ref, wo2_ref, bo2_ref, ln2_g_ref, ln2_b_ref,
                 fc_w_ref, fc_b_ref, out_ref,
                 *, num_layers, num_heads, head_dim, eps, scale):
    hidden = num_heads * head_dim
    x = x_ref[0]          # (S, H) f32 -- one batch element per grid step
    mask = mask_ref[0]    # (1, S) additive attention mask (0 / -10000)

    def layernorm(h, g, b):
        mu = jnp.mean(h, axis=-1, keepdims=True)
        var = jnp.mean(jnp.square(h - mu), axis=-1, keepdims=True)
        return (h - mu) * jax.lax.rsqrt(var + eps) * g + b

    def dense(h, w_bf16, b_f32):
        # bf16 MXU operands, f32 accumulation; epilogue stays f32.
        return jnp.dot(h.astype(jnp.bfloat16), w_bf16,
                       preferred_element_type=jnp.float32) + b_f32

    # Embedding LayerNorm (plain LN path -- no zero residual tensor).
    x = layernorm(x, emb_g_ref[...], emb_b_ref[...])

    for l in range(num_layers):
        # ----------------------------- self-attention -----------------------------
        qkv = dense(x, wqkv_ref[l], bqkv_ref[l])              # (S, 3H), fused Q|K|V
        wo_l = wo_ref[l]                                      # (H, H) bf16
        attn_out = bo_ref[l]                                  # (1, H) f32, broadcasts
        for h in range(num_heads):
            lo = h * head_dim
            qh = qkv[:, lo:lo + head_dim].astype(jnp.bfloat16)
            kh = qkv[:, hidden + lo:hidden + lo + head_dim].astype(jnp.bfloat16)
            vh = qkv[:, 2 * hidden + lo:2 * hidden + lo + head_dim].astype(jnp.bfloat16)
            # contract directly on head_dim -- no materialized k.T
            s = jax.lax.dot_general(
                qh, kh, (((1,), (1,)), ((), ())),
                preferred_element_type=jnp.float32) * scale   # (S, S)
            s = s + mask
            s = s - jnp.max(s, axis=-1, keepdims=True)
            pexp = jnp.exp(s)
            pexp = pexp * pl.reciprocal(
                jnp.sum(pexp, axis=-1, keepdims=True), approx=True)
            ctx_h = jnp.dot(pexp.astype(jnp.bfloat16), vh,
                            preferred_element_type=jnp.float32)         # (S, Dh)
            # Output projection folded per head:
            #   concat_h(ctx_h) @ Wo == sum_h ctx_h @ Wo[rows of head h]
            attn_out = attn_out + jnp.dot(
                ctx_h.astype(jnp.bfloat16), wo_l[lo:lo + head_dim, :],
                preferred_element_type=jnp.float32)                     # (S, H)
        x = layernorm(x + attn_out, ln1_g_ref[l], ln1_b_ref[l])

        # ------------------------------ feed-forward -------------------------------
        mid = _gelu_exact(dense(x, wi_ref[l], bi_ref[l]))               # (S, I)
        ffn_out = dense(mid, wo2_ref[l], bo2_ref[l])                    # (S, H)
        x = layernorm(x + ffn_out, ln2_g_ref[l], ln2_b_ref[l])

    # [CLS] token -> fc.
    # TODO(synk): torch.no_grad() around the frozen BERT would need a custom_vjp
    # around this fused kernel; forward-only here.
    cls = x[0:1, :]                                                     # (1, H)
    out_ref[0] = dense(cls, fc_w_ref[...], fc_b_ref[...])               # (1, out_dim)


# --------------------------- parameters & forward ----------------------------

def init_params(key, cfg):
    H, I, L = cfg["hidden"], cfg["inter"], cfg["layers"]

    def nrm(k, shape):
        return 0.02 * jax.random.normal(k, shape, jnp.float32)

    keys = jax.random.split(key, 4 + L)
    params = {
        "word_emb": nrm(keys[0], (cfg["vocab"], H)),
        "pos_emb": nrm(keys[1], (cfg["max_pos"], H)),
        "type_emb": nrm(keys[2], (2, H)),
        "emb_ln_g": jnp.ones((H,), jnp.float32),
        "emb_ln_b": jnp.zeros((H,), jnp.float32),
        "fc_w": nrm(keys[3], (H, cfg["out_dim"])),
        "fc_b": jnp.zeros((cfg["out_dim"],), jnp.float32),
        "layers": [],
    }
    for l in range(L):
        lk = jax.random.split(keys[4 + l], 6)
        params["layers"].append({
            "wq": nrm(lk[0], (H, H)), "bq": jnp.zeros((H,), jnp.float32),
            "wk": nrm(lk[1], (H, H)), "bk": jnp.zeros((H,), jnp.float32),
            "wv": nrm(lk[2], (H, H)), "bv": jnp.zeros((H,), jnp.float32),
            "wo": nrm(lk[3], (H, H)), "bo": jnp.zeros((H,), jnp.float32),
            "ln1_g": jnp.ones((H,), jnp.float32), "ln1_b": jnp.zeros((H,), jnp.float32),
            "wi": nrm(lk[4], (H, I)), "bi": jnp.zeros((I,), jnp.float32),
            "wo2": nrm(lk[5], (I, H)), "bo2": jnp.zeros((H,), jnp.float32),
            "ln2_g": jnp.ones((H,), jnp.float32), "ln2_b": jnp.zeros((H,), jnp.float32),
        })
    return params


def bert_feature_extractor(params, input_ids, attention_mask, cfg=CFG):
    B, S = input_ids.shape
    H, nh, L = cfg["hidden"], cfg["heads"], cfg["layers"]
    O = cfg["out_dim"]
    Dh = H // nh
    bf16 = jnp.bfloat16
    layers = params["layers"]

    # Embedding-table gathers stay as JAX glue (word + pos + token_type 0).
    emb = (params["word_emb"][input_ids]
           + params["pos_emb"][jnp.arange(S)][None, :, :]
           + params["type_emb"][0][None, None, :]).astype(jnp.float32)      # (B, S, H)

    # HF-style additive attention mask: 0 where attended, -10000 where padded.
    add_mask = ((1.0 - attention_mask.astype(jnp.float32)) * -10000.0)[:, None, :]  # (B,1,S)

    # ---- stack / fuse weights across layers (matmul weights -> bf16) ----
    wqkv = jnp.stack([jnp.concatenate([lp["wq"], lp["wk"], lp["wv"]], axis=1)
                      for lp in layers]).astype(bf16)                       # (L, H, 3H)
    bqkv = jnp.stack([jnp.concatenate([lp["bq"], lp["bk"], lp["bv"]])[None, :]
                      for lp in layers])                                    # (L, 1, 3H)
    wo   = jnp.stack([lp["wo"] for lp in layers]).astype(bf16)              # (L, H, H)
    bo   = jnp.stack([lp["bo"][None, :] for lp in layers])                  # (L, 1, H)
    ln1g = jnp.stack([lp["ln1_g"][None, :] for lp in layers])
    ln1b = jnp.stack([lp["ln1_b"][None, :] for lp in layers])
    wi   = jnp.stack([lp["wi"] for lp in layers]).astype(bf16)              # (L, H, I)
    bi   = jnp.stack([lp["bi"][None, :] for lp in layers])                  # (L, 1, I)
    wo2  = jnp.stack([lp["wo2"] for lp in layers]).astype(bf16)             # (L, I, H)
    bo2  = jnp.stack([lp["bo2"][None, :] for lp in layers])                 # (L, 1, H)
    ln2g = jnp.stack([lp["ln2_g"][None, :] for lp in layers])
    ln2b = jnp.stack([lp["ln2_b"][None, :] for lp in layers])
    emb_g = params["emb_ln_g"][None, :]
    emb_b = params["emb_ln_b"][None, :]
    fc_w = params["fc_w"].astype(bf16)                                      # (H, O)
    fc_b = params["fc_b"][None, :]                                          # (1, O)

    operands = (emb, add_mask, emb_g, emb_b, wqkv, bqkv, wo, bo, ln1g, ln1b,
                wi, bi, wo2, bo2, ln2g, ln2b, fc_w, fc_b)

    def per_batch_spec(shape):
        nd = len(shape)
        def idx(b):
            return (b,) + (0,) * (nd - 1)
        return pl.BlockSpec((1,) + tuple(shape[1:]), idx)

    def replicated_spec(shape):
        nd = len(shape)
        def idx(b):
            return (0,) * nd
        return pl.BlockSpec(tuple(shape), idx)

    in_specs = ([per_batch_spec(emb.shape), per_batch_spec(add_mask.shape)]
                + [replicated_spec(a.shape) for a in operands[2:]])

    kernel = functools.partial(_bert_kernel, num_layers=L, num_heads=nh,
                               head_dim=Dh, eps=1e-12, scale=1.0 / math.sqrt(Dh))

    out = pl.pallas_call(
        kernel,
        out_shape=jax.ShapeDtypeStruct((B, 1, O), jnp.float32),
        grid=(B,),
        in_specs=in_specs,
        out_specs=pl.BlockSpec((1, 1, O), lambda b: (b, 0, 0)),
        compiler_params=pltpu.CompilerParams(
            dimension_semantics=("parallel",)),
    )(*operands)
    return out.reshape(B, O)


# ------------------------------------ main ------------------------------------

if __name__ == "__main__":
    key = jax.random.PRNGKey(0)
    kp, kids = jax.random.split(key)
    params = init_params(kp, CFG)

    B, S = CFG["batch"], CFG["seq"]
    input_ids = jax.random.randint(kids, (B, S), 0, CFG["vocab"], dtype=jnp.int32)
    # second example has two padding tokens at the end
    attention_mask = jnp.array([[1, 1, 1, 1, 1, 1, 1, 1],
                                [1, 1, 1, 1, 1, 1, 0, 0]], dtype=jnp.int32)

    out = bert_feature_extractor(params, input_ids, attention_mask)
    out = jax.block_until_ready(out)
    assert out.shape == (B, CFG["out_dim"]) and out.dtype == jnp.float32
    assert bool(jnp.all(jnp.isfinite(out)))
    print("KERNEL_OK")
</pallas_src>

<mosaic_0001>
module attributes {stable_mosaic.version = 11 : i64} {
  func.func @_bert_kernel(%arg0: i32, %arg1: memref<1x8x32xf32, #tpu.memory_space<vmem>>, %arg2: memref<1x1x8xf32, #tpu.memory_space<vmem>>, %arg3: memref<1x32xf32, #tpu.memory_space<vmem>>, %arg4: memref<1x32xf32, #tpu.memory_space<vmem>>, %arg5: memref<2x32x96xbf16, #tpu.memory_space<vmem>>, %arg6: memref<2x1x96xf32, #tpu.memory_space<vmem>>, %arg7: memref<2x32x32xbf16, #tpu.memory_space<vmem>>, %arg8: memref<2x1x32xf32, #tpu.memory_space<vmem>>, %arg9: memref<2x1x32xf32, #tpu.memory_space<vmem>>, %arg10: memref<2x1x32xf32, #tpu.memory_space<vmem>>, %arg11: memref<2x32x64xbf16, #tpu.memory_space<vmem>>, %arg12: memref<2x1x64xf32, #tpu.memory_space<vmem>>, %arg13: memref<2x64x32xbf16, #tpu.memory_space<vmem>>, %arg14: memref<2x1x32xf32, #tpu.memory_space<vmem>>, %arg15: memref<2x1x32xf32, #tpu.memory_space<vmem>>, %arg16: memref<2x1x32xf32, #tpu.memory_space<vmem>>, %arg17: memref<32x64xbf16, #tpu.memory_space<vmem>>, %arg18: memref<1x64xf32, #tpu.memory_space<vmem>>, %arg19: memref<1x1x64xf32, #tpu.memory_space<vmem>>) attributes {dimension_semantics = [#tpu.dimension_semantics<parallel>], iteration_bounds = array<i64: 2>, scalar_prefetch = 0 : i64, scratch_operands = 0 : i64, tpu.core_type = #tpu.core_type<tc>, window_params = [{transform_indices = @transform_0, window_bounds = array<i64: 1, 8, 32>}, {transform_indices = @transform_1, window_bounds = array<i64: 1, 1, 8>}, {pipeline_mode = #tpu.pipeline_mode<synchronous>, transform_indices = @transform_2, window_bounds = array<i64: 1, 32>}, {pipeline_mode = #tpu.pipeline_mode<synchronous>, transform_indices = @transform_3, window_bounds = array<i64: 1, 32>}, {pipeline_mode = #tpu.pipeline_mode<synchronous>, transform_indices = @transform_4, window_bounds = array<i64: 2, 32, 96>}, {pipeline_mode = #tpu.pipeline_mode<synchronous>, transform_indices = @transform_5, window_bounds = array<i64: 2, 1, 96>}, {pipeline_mode = #tpu.pipeline_mode<synchronous>, transform_indices = @transform_6, window_bounds = array<i64: 2, 32, 32>}, {pipeline_mode = #tpu.pipeline_mode<synchronous>, transform_indices = @transform_7, window_bounds = array<i64: 2, 1, 32>}, {pipeline_mode = #tpu.pipeline_mode<synchronous>, transform_indices = @transform_8, window_bounds = array<i64: 2, 1, 32>}, {pipeline_mode = #tpu.pipeline_mode<synchronous>, transform_indices = @transform_9, window_bounds = array<i64: 2, 1, 32>}, {pipeline_mode = #tpu.pipeline_mode<synchronous>, transform_indices = @transform_10, window_bounds = array<i64: 2, 32, 64>}, {pipeline_mode = #tpu.pipeline_mode<synchronous>, transform_indices = @transform_11, window_bounds = array<i64: 2, 1, 64>}, {pipeline_mode = #tpu.pipeline_mode<synchronous>, transform_indices = @transform_12, window_bounds = array<i64: 2, 64, 32>}, {pipeline_mode = #tpu.pipeline_mode<synchronous>, transform_indices = @transform_13, window_bounds = array<i64: 2, 1, 32>}, {pipeline_mode = #tpu.pipeline_mode<synchronous>, transform_indices = @transform_14, window_bounds = array<i64: 2, 1, 32>}, {pipeline_mode = #tpu.pipeline_mode<synchronous>, transform_indices = @transform_15, window_bounds = array<i64: 2, 1, 32>}, {pipeline_mode = #tpu.pipeline_mode<synchronous>, transform_indices = @transform_16, window_bounds = array<i64: 32, 64>}, {pipeline_mode = #tpu.pipeline_mode<synchronous>, transform_indices = @transform_17, window_bounds = array<i64: 1, 64>}, {transform_indices = @transform_18, window_bounds = array<i64: 1, 1, 64>}]} {
    %c0 = arith.constant 0 : index
    %c0_0 = arith.constant 0 : index
    %c0_1 = arith.constant 0 : index
    %0 = vector.load %arg1[%c0, %c0_0, %c0_1] : memref<1x8x32xf32, #tpu.memory_space<vmem>>, vector<1x8x32xf32>
    %1 = vector.shape_cast %0 : vector<1x8x32xf32> to vector<8x32xf32>
    %c0_2 = arith.constant 0 : index
    %c0_3 = arith.constant 0 : index
    %c0_4 = arith.constant 0 : index
    %2 = vector.load %arg2[%c0_2, %c0_3, %c0_4] : memref<1x1x8xf32, #tpu.memory_space<vmem>>, vector<1x1x8xf32>
    %3 = vector.shape_cast %2 : vector<1x1x8xf32> to vector<1x8xf32>
    %c0_5 = arith.constant 0 : index
    %c0_6 = arith.constant 0 : index
    %4 = vector.load %arg3[%c0_5, %c0_6] : memref<1x32xf32, #tpu.memory_space<vmem>>, vector<1x32xf32>
    %c0_7 = arith.constant 0 : index
    %c0_8 = arith.constant 0 : index
    %5 = vector.load %arg4[%c0_7, %c0_8] : memref<1x32xf32, #tpu.memory_space<vmem>>, vector<1x32xf32>
    %cst = arith.constant dense<0.000000e+00> : vector<8xf32>
    %6 = vector.multi_reduction <add>, %1, %cst [1] : vector<8x32xf32> to vector<8xf32>
    %7 = vector.shape_cast %6 : vector<8xf32> to vector<8x1xf32>
    %cst_9 = arith.constant 3.200000e+01 : f32
    %8 = vector.broadcast %cst_9 : f32 to vector<8x1xf32>
    %9 = arith.divf %7, %8 : vector<8x1xf32>
    %10 = vector.broadcast %9 : vector<8x1xf32> to vector<8x32xf32>
    %11 = arith.subf %1, %10 : vector<8x32xf32>
    %12 = arith.mulf %11, %11 : vector<8x32xf32>
    %cst_10 = arith.constant dense<0.000000e+00> : vector<8xf32>
    %13 = vector.multi_reduction <add>, %12, %cst_10 [1] : vector<8x32xf32> to vector<8xf32>
    %14 = vector.shape_cast %13 : vector<8xf32> to vector<8x1xf32>
    %cst_11 = arith.constant 3.200000e+01 : f32
    %15 = vector.broadcast %cst_11 : f32 to vector<8x1xf32>
    %16 = arith.divf %14, %15 : vector<8x1xf32>
    %17 = vector.broadcast %9 : vector<8x1xf32> to vector<8x32xf32>
    %18 = arith.subf %1, %17 : vector<8x32xf32>
    %cst_12 = arith.constant 9.99999996E-13 : f32
    %19 = vector.broadcast %cst_12 : f32 to vector<8x1xf32>
    %20 = arith.addf %16, %19 : vector<8x1xf32>
    %21 = math.rsqrt %20 : vector<8x1xf32>
    %22 = vector.broadcast %21 : vector<8x1xf32> to vector<8x32xf32>
    %23 = arith.mulf %18, %22 : vector<8x32xf32>
    %24 = vector.broadcast %4 : vector<1x32xf32> to vector<8x32xf32>
    %25 = arith.mulf %23, %24 : vector<8x32xf32>
    %26 = vector.broadcast %5 : vector<1x32xf32> to vector<8x32xf32>
    %27 = arith.addf %25, %26 : vector<8x32xf32>
    %c0_13 = arith.constant 0 : index
    %c0_14 = arith.constant 0 : index
    %c0_15 = arith.constant 0 : index
    %28 = vector.load %arg5[%c0_13, %c0_14, %c0_15] : memref<2x32x96xbf16, #tpu.memory_space<vmem>>, vector<1x32x96xbf16>
    %29 = vector.shape_cast %28 : vector<1x32x96xbf16> to vector<32x96xbf16>
    %c0_16 = arith.constant 0 : index
    %c0_17 = arith.constant 0 : index
    %c0_18 = arith.constant 0 : index
    %30 = vector.load %arg6[%c0_16, %c0_17, %c0_18] : memref<2x1x96xf32, #tpu.memory_space<vmem>>, vector<1x1x96xf32>
    %31 = vector.shape_cast %30 : vector<1x1x96xf32> to vector<1x96xf32>
    %32 = arith.truncf %27 : vector<8x32xf32> to vector<8x32xbf16>
    %cst_19 = arith.constant dense<0.000000e+00> : vector<8x96xf32>
    %33 = tpu.matmul %32, %29, %cst_19 {dimension_numbers = #tpu.dot_dimension_numbers<[1], [0], [0], [1], [0, 0, 1, 1], [], []>} : vector<8x32xbf16>, vector<32x96xbf16>, vector<8x96xf32> -> vector<8x96xf32>
    %34 = vector.broadcast %31 : vector<1x96xf32> to vector<8x96xf32>
    %35 = arith.addf %33, %34 : vector<8x96xf32>
    %c0_20 = arith.constant 0 : index
    %c0_21 = arith.constant 0 : index
    %c0_22 = arith.constant 0 : index
    %36 = vector.load %arg7[%c0_20, %c0_21, %c0_22] : memref<2x32x32xbf16, #tpu.memory_space<vmem>>, vector<1x32x32xbf16>
    %37 = vector.shape_cast %36 : vector<1x32x32xbf16> to vector<32x32xbf16>
    %c0_23 = arith.constant 0 : index
    %c0_24 = arith.constant 0 : index
    %c0_25 = arith.constant 0 : index
    %38 = vector.load %arg8[%c0_23, %c0_24, %c0_25] : memref<2x1x32xf32, #tpu.memory_space<vmem>>, vector<1x1x32xf32>
    %39 = vector.shape_cast %38 : vector<1x1x32xf32> to vector<1x32xf32>
    %40 = vector.extract_strided_slice %35 {offsets = [0, 0], sizes = [8, 8], strides = [1, 1]} : vector<8x96xf32> to vector<8x8xf32>
    %41 = arith.truncf %40 : vector<8x8xf32> to vector<8x8xbf16>
    %42 = vector.extract_strided_slice %35 {offsets = [0, 32], sizes = [8, 8], strides = [1, 1]} : vector<8x96xf32> to vector<8x8xf32>
    %43 = arith.truncf %42 : vector<8x8xf32> to vector<8x8xbf16>
    %44 = vector.extract_strided_slice %35 {offsets = [0, 64], sizes = [8, 8], strides = [1, 1]} : vector<8x96xf32> to vector<8x8xf32>
    %45 = arith.truncf %44 : vector<8x8xf32> to vector<8x8xbf16>
    %cst_26 = arith.constant dense<0.000000e+00> : vector<8x8xf32>
    %46 = tpu.matmul %41, %43, %cst_26 {dimension_numbers = #tpu.dot_dimension_numbers<[1], [1], [0], [0], [0, 0, 1, 0], [], []>} : vector<8x8xbf16>, vector<8x8xbf16>, vector<8x8xf32> -> vector<8x8xf32>
    %cst_27 = arith.constant 0.353553385 : f32
    %47 = vector.broadcast %cst_27 : f32 to vector<8x8xf32>
    %48 = arith.mulf %46, %47 : vector<8x8xf32>
    %49 = vector.broadcast %3 : vector<1x8xf32> to vector<8x8xf32>
    %50 = arith.addf %48, %49 : vector<8x8xf32>
    %cst_28 = arith.constant dense<0xFF800000> : vector<8xf32>
    %51 = vector.multi_reduction <maximumf>, %50, %cst_28 [1] : vector<8x8xf32> to vector<8xf32>
    %52 = vector.shape_cast %51 : vector<8xf32> to vector<8x1xf32>
    %53 = vector.broadcast %52 : vector<8x1xf32> to vector<8x8xf32>
    %54 = arith.subf %50, %53 : vector<8x8xf32>
    %55 = math.exp %54 : vector<8x8xf32>
    %cst_29 = arith.constant dense<0.000000e+00> : vector<8xf32>
    %56 = vector.multi_reduction <add>, %55, %cst_29 [1] : vector<8x8xf32> to vector<8xf32>
    %57 = vector.shape_cast %56 : vector<8xf32> to vector<8x1xf32>
    %58 = tpu.reciprocal %57 {approx = true} : vector<8x1xf32> -> vector<8x1xf32>
    %59 = vector.broadcast %58 : vector<8x1xf32> to vector<8x8xf32>
    %60 = arith.mulf %55, %59 : vector<8x8xf32>
    %61 = arith.truncf %60 : vector<8x8xf32> to vector<8x8xbf16>
    %cst_30 = arith.constant dense<0.000000e+00> : vector<8x8xf32>
    %62 = tpu.matmul %61, %45, %cst_30 {dimension_numbers = #tpu.dot_dimension_numbers<[1], [0], [0], [1], [0, 0, 1, 1], [], []>} : vector<8x8xbf16>, vector<8x8xbf16>, vector<8x8xf32> -> vector<8x8xf32>
    %63 = arith.truncf %62 : vector<8x8xf32> to vector<8x8xbf16>
    %64 = vector.extract_strided_slice %37 {offsets = [0, 0], sizes = [8, 32], strides = [1, 1]} : vector<32x32xbf16> to vector<8x32xbf16>
    %cst_31 = arith.constant dense<0.000000e+00> : vector<8x32xf32>
    %65 = tpu.matmul %63, %64, %cst_31 {dimension_numbers = #tpu.dot_dimension_numbers<[1], [0], [0], [1], [0, 0, 1, 1], [], []>} : vector<8x8xbf16>, vector<8x32xbf16>, vector<8x32xf32> -> vector<8x32xf32>
    %66 = vector.broadcast %39 : vector<1x32xf32> to vector<8x32xf32>
    %67 = arith.addf %66, %65 : vector<8x32xf32>
    %68 = vector.extract_strided_slice %35 {offsets = [0, 8], sizes = [8, 8], strides = [1, 1]} : vector<8x96xf32> to vector<8x8xf32>
    %69 = arith.truncf %68 : vector<8x8xf32> to vector<8x8xbf16>
    %70 = vector.extract_strided_slice %35 {offsets = [0, 40], sizes = [8, 8], strides = [1, 1]} : vector<8x96xf32> to vector<8x8xf32>
    %71 = arith.truncf %70 : vector<8x8xf32> to vector<8x8xbf16>
    %72 = vector.extract_strided_slice %35 {offsets = [0, 72], sizes = [8, 8], strides = [1, 1]} : vector<8x96xf32> to vector<8x8xf32>
    %73 = arith.truncf %72 : vector<8x8xf32> to vector<8x8xbf16>
    %cst_32 = arith.constant dense<0.000000e+00> : vector<8x8xf32>
    %74 = tpu.matmul %69, %71, %cst_32 {dimension_numbers = #tpu.dot_dimension_numbers<[1], [1], [0], [0], [0, 0, 1, 0], [], []>} : vector<8x8xbf16>, vector<8x8xbf16>, vector<8x8xf32> -> vector<8x8xf32>
    %cst_33 = arith.constant 0.353553385 : f32
    %75 = vector.broadcast %cst_33 : f32 to vector<8x8xf32>
    %76 = arith.mulf %74, %75 : vector<8x8xf32>
    %77 = vector.broadcast %3 : vector<1x8xf32> to vector<8x8xf32>
    %78 = arith.addf %76, %77 : vector<8x8xf32>
    %cst_34 = arith.constant dense<0xFF800000> : vector<8xf32>
    %79 = vector.multi_reduction <maximumf>, %78, %cst_34 [1] : vector<8x8xf32> to vector<8xf32>
    %80 = vector.shape_cast %79 : vector<8xf32> to vector<8x1xf32>
    %81 = vector.broadcast %80 : vector<8x1xf32> to vector<8x8xf32>
    %82 = arith.subf %78, %81 : vector<8x8xf32>
    %83 = math.exp %82 : vector<8x8xf32>
    %cst_35 = arith.constant dense<0.000000e+00> : vector<8xf32>
    %84 = vector.multi_reduction <add>, %83, %cst_35 [1] : vector<8x8xf32> to vector<8xf32>
    %85 = vector.shape_cast %84 : vector<8xf32> to vector<8x1xf32>
    %86 = tpu.reciprocal %85 {approx = true} : vector<8x1xf32> -> vector<8x1xf32>
    %87 = vector.broadcast %86 : vector<8x1xf32> to vector<8x8xf32>
    %88 = arith.mulf %83, %87 : vector<8x8xf32>
    %89 = arith.truncf %88 : vector<8x8xf32> to vector<8x8xbf16>
    %cst_36 = arith.constant dense<0.000000e+00> : vector<8x8xf32>
    %90 = tpu.matmul %89, %73, %cst_36 {dimension_numbers = #tpu.dot_dimension_numbers<[1], [0], [0], [1], [0, 0, 1, 1], [], []>} : vector<8x8xbf16>, vector<8x8xbf16>, vector<8x8xf32> -> vector<8x8xf32>
    %91 = arith.truncf %90 : vector<8x8xf32> to vector<8x8xbf16>
    %92 = vector.extract_strided_slice %37 {offsets = [8, 0], sizes = [8, 32], strides = [1, 1]} : vector<32x32xbf16> to vector<8x32xbf16>
    %cst_37 = arith.constant dense<0.000000e+00> : vector<8x32xf32>
    %93 = tpu.matmul %91, %92, %cst_37 {dimension_numbers = #tpu.dot_dimension_numbers<[1], [0], [0], [1], [0, 0, 1, 1], [], []>} : vector<8x8xbf16>, vector<8x32xbf16>, vector<8x32xf32> -> vector<8x32xf32>
    %94 = arith.addf %67, %93 : vector<8x32xf32>
    %95 = vector.extract_strided_slice %35 {offsets = [0, 16], sizes = [8, 8], strides = [1, 1]} : vector<8x96xf32> to vector<8x8xf32>
    %96 = arith.truncf %95 : vector<8x8xf32> to vector<8x8xbf16>
    %97 = vector.extract_strided_slice %35 {offsets = [0, 48], sizes = [8, 8], strides = [1, 1]} : vector<8x96xf32> to vector<8x8xf32>
    %98 = arith.truncf %97 : vector<8x8xf32> to vector<8x8xbf16>
    %99 = vector.extract_strided_slice %35 {offsets = [0, 80], sizes = [8, 8], strides = [1, 1]} : vector<8x96xf32> to vector<8x8xf32>
    %100 = arith.truncf %99 : vector<8x8xf32> to vector<8x8xbf16>
    %cst_38 = arith.constant dense<0.000000e+00> : vector<8x8xf32>
    %101 = tpu.matmul %96, %98, %cst_38 {dimension_numbers = #tpu.dot_dimension_numbers<[1], [1], [0], [0], [0, 0, 1, 0], [], []>} : vector<8x8xbf16>, vector<8x8xbf16>, vector<8x8xf32> -> vector<8x8xf32>
    %cst_39 = arith.constant 0.353553385 : f32
    %102 = vector.broadcast %cst_39 : f32 to vector<8x8xf32>
    %103 = arith.mulf %101, %102 : vector<8x8xf32>
    %104 = vector.broadcast %3 : vector<1x8xf32> to vector<8x8xf32>
    %105 = arith.addf %103, %104 : vector<8x8xf32>
    %cst_40 = arith.constant dense<0xFF800000> : vector<8xf32>
    %106 = vector.multi_reduction <maximumf>, %105, %cst_40 [1] : vector<8x8xf32> to vector<8xf32>
    %107 = vector.shape_cast %106 : vector<8xf32> to vector<8x1xf32>
    %108 = vector.broadcast %107 : vector<8x1xf32> to vector<8x8xf32>
    %109 = arith.subf %105, %108 : vector<8x8xf32>
    %110 = math.exp %109 : vector<8x8xf32>
    %cst_41 = arith.constant dense<0.000000e+00> : vector<8xf32>
    %111 = vector.multi_reduction <add>, %110, %cst_41 [1] : vector<8x8xf32> to vector<8xf32>
    %112 = vector.shape_cast %111 : vector<8xf32> to vector<8x1xf32>
    %113 = tpu.reciprocal %112 {approx = true} : vector<8x1xf32> -> vector<8x1xf32>
    %114 = vector.broadcast %113 : vector<8x1xf32> to vector<8x8xf32>
    %115 = arith.mulf %110, %114 : vector<8x8xf32>
    %116 = arith.truncf %115 : vector<8x8xf32> to vector<8x8xbf16>
    %cst_42 = arith.constant dense<0.000000e+00> : vector<8x8xf32>
    %117 = tpu.matmul %116, %100, %cst_42 {dimension_numbers = #tpu.dot_dimension_numbers<[1], [0], [0], [1], [0, 0, 1, 1], [], []>} : vector<8x8xbf16>, vector<8x8xbf16>, vector<8x8xf32> -> vector<8x8xf32>
    %118 = arith.truncf %117 : vector<8x8xf32> to vector<8x8xbf16>
    %119 = vector.extract_strided_slice %37 {offsets = [16, 0], sizes = [8, 32], strides = [1, 1]} : vector<32x32xbf16> to vector<8x32xbf16>
    %cst_43 = arith.constant dense<0.000000e+00> : vector<8x32xf32>
    %120 = tpu.matmul %118, %119, %cst_43 {dimension_numbers = #tpu.dot_dimension_numbers<[1], [0], [0], [1], [0, 0, 1, 1], [], []>} : vector<8x8xbf16>, vector<8x32xbf16>, vector<8x32xf32> -> vector<8x32xf32>
    %121 = arith.addf %94, %120 : vector<8x32xf32>
    %122 = vector.extract_strided_slice %35 {offsets = [0, 24], sizes = [8, 8], strides = [1, 1]} : vector<8x96xf32> to vector<8x8xf32>
    %123 = arith.truncf %122 : vector<8x8xf32> to vector<8x8xbf16>
    %124 = vector.extract_strided_slice %35 {offsets = [0, 56], sizes = [8, 8], strides = [1, 1]} : vector<8x96xf32> to vector<8x8xf32>
    %125 = arith.truncf %124 : vector<8x8xf32> to vector<8x8xbf16>
    %126 = vector.extract_strided_slice %35 {offsets = [0, 88], sizes = [8, 8], strides = [1, 1]} : vector<8x96xf32> to vector<8x8xf32>
    %127 = arith.truncf %126 : vector<8x8xf32> to vector<8x8xbf16>
    %cst_44 = arith.constant dense<0.000000e+00> : vector<8x8xf32>
    %128 = tpu.matmul %123, %125, %cst_44 {dimension_numbers = #tpu.dot_dimension_numbers<[1], [1], [0], [0], [0, 0, 1, 0], [], []>} : vector<8x8xbf16>, vector<8x8xbf16>, vector<8x8xf32> -> vector<8x8xf32>
    %cst_45 = arith.constant 0.353553385 : f32
    %129 = vector.broadcast %cst_45 : f32 to vector<8x8xf32>
    %130 = arith.mulf %128, %129 : vector<8x8xf32>
    %131 = vector.broadcast %3 : vector<1x8xf32> to vector<8x8xf32>
    %132 = arith.addf %130, %131 : vector<8x8xf32>
    %cst_46 = arith.constant dense<0xFF800000> : vector<8xf32>
    %133 = vector.multi_reduction <maximumf>, %132, %cst_46 [1] : vector<8x8xf32> to vector<8xf32>
    %134 = vector.shape_cast %133 : vector<8xf32> to vector<8x1xf32>
    %135 = vector.broadcast %134 : vector<8x1xf32> to vector<8x8xf32>
    %136 = arith.subf %132, %135 : vector<8x8xf32>
    %137 = math.exp %136 : vector<8x8xf32>
    %cst_47 = arith.constant dense<0.000000e+00> : vector<8xf32>
    %138 = vector.multi_reduction <add>, %137, %cst_47 [1] : vector<8x8xf32> to vector<8xf32>
    %139 = vector.shape_cast %138 : vector<8xf32> to vector<8x1xf32>
    %140 = tpu.reciprocal %139 {approx = true} : vector<8x1xf32> -> vector<8x1xf32>
    %141 = vector.broadcast %140 : vector<8x1xf32> to vector<8x8xf32>
    %142 = arith.mulf %137, %141 : vector<8x8xf32>
    %143 = arith.truncf %142 : vector<8x8xf32> to vector<8x8xbf16>
    %cst_48 = arith.constant dense<0.000000e+00> : vector<8x8xf32>
    %144 = tpu.matmul %143, %127, %cst_48 {dimension_numbers = #tpu.dot_dimension_numbers<[1], [0], [0], [1], [0, 0, 1, 1], [], []>} : vector<8x8xbf16>, vector<8x8xbf16>, vector<8x8xf32> -> vector<8x8xf32>
    %145 = arith.truncf %144 : vector<8x8xf32> to vector<8x8xbf16>
    %146 = vector.extract_strided_slice %37 {offsets = [24, 0], sizes = [8, 32], strides = [1, 1]} : vector<32x32xbf16> to vector<8x32xbf16>
    %cst_49 = arith.constant dense<0.000000e+00> : vector<8x32xf32>
    %147 = tpu.matmul %145, %146, %cst_49 {dimension_numbers = #tpu.dot_dimension_numbers<[1], [0], [0], [1], [0, 0, 1, 1], [], []>} : vector<8x8xbf16>, vector<8x32xbf16>, vector<8x32xf32> -> vector<8x32xf32>
    %148 = arith.addf %121, %147 : vector<8x32xf32>
    %149 = arith.addf %27, %148 : vector<8x32xf32>
    %c0_50 = arith.constant 0 : index
    %c0_51 = arith.constant 0 : index
    %c0_52 = arith.constant 0 : index
    %150 = vector.load %arg9[%c0_50, %c0_51, %c0_52] : memref<2x1x32xf32, #tpu.memory_space<vmem>>, vector<1x1x32xf32>
    %151 = vector.shape_cast %150 : vector<1x1x32xf32> to vector<1x32xf32>
    %c0_53 = arith.constant 0 : index
    %c0_54 = arith.constant 0 : index
    %c0_55 = arith.constant 0 : index
    %152 = vector.load %arg10[%c0_53, %c0_54, %c0_55] : memref<2x1x32xf32, #tpu.memory_space<vmem>>, vector<1x1x32xf32>
    %153 = vector.shape_cast %152 : vector<1x1x32xf32> to vector<1x32xf32>
    %cst_56 = arith.constant dense<0.000000e+00> : vector<8xf32>
    %154 = vector.multi_reduction <add>, %149, %cst_56 [1] : vector<8x32xf32> to vector<8xf32>
    %155 = vector.shape_cast %154 : vector<8xf32> to vector<8x1xf32>
    %cst_57 = arith.constant 3.200000e+01 : f32
    %156 = vector.broadcast %cst_57 : f32 to vector<8x1xf32>
    %157 = arith.divf %155, %156 : vector<8x1xf32>
    %158 = vector.broadcast %157 : vector<8x1xf32> to vector<8x32xf32>
    %159 = arith.subf %149, %158 : vector<8x32xf32>
    %160 = arith.mulf %159, %159 : vector<8x32xf32>
    %cst_58 = arith.constant dense<0.000000e+00> : vector<8xf32>
    %161 = vector.multi_reduction <add>, %160, %cst_58 [1] : vector<8x32xf32> to vector<8xf32>
    %162 = vector.shape_cast %161 : vector<8xf32> to vector<8x1xf32>
    %cst_59 = arith.constant 3.200000e+01 : f32
    %163 = vector.broadcast %cst_59 : f32 to vector<8x1xf32>
    %164 = arith.divf %162, %163 : vector<8x1xf32>
    %165 = vector.broadcast %157 : vector<8x1xf32> to vector<8x32xf32>
    %166 = arith.subf %149, %165 : vector<8x32xf32>
    %cst_60 = arith.constant 9.99999996E-13 : f32
    %167 = vector.broadcast %cst_60 : f32 to vector<8x1xf32>
    %168 = arith.addf %164, %167 : vector<8x1xf32>
    %169 = math.rsqrt %168 : vector<8x1xf32>
    %170 = vector.broadcast %169 : vector<8x1xf32> to vector<8x32xf32>
    %171 = arith.mulf %166, %170 : vector<8x32xf32>
    %172 = vector.broadcast %151 : vector<1x32xf32> to vector<8x32xf32>
    %173 = arith.mulf %171, %172 : vector<8x32xf32>
    %174 = vector.broadcast %153 : vector<1x32xf32> to vector<8x32xf32>
    %175 = arith.addf %173, %174 : vector<8x32xf32>
    %c0_61 = arith.constant 0 : index
    %c0_62 = arith.constant 0 : index
    %c0_63 = arith.constant 0 : index
    %176 = vector.load %arg11[%c0_61, %c0_62, %c0_63] : memref<2x32x64xbf16, #tpu.memory_space<vmem>>, vector<1x32x64xbf16>
    %177 = vector.shape_cast %176 : vector<1x32x64xbf16> to vector<32x64xbf16>
    %c0_64 = arith.constant 0 : index
    %c0_65 = arith.constant 0 : index
    %c0_66 = arith.constant 0 : index
    %178 = vector.load %arg12[%c0_64, %c0_65, %c0_66] : memref<2x1x64xf32, #tpu.memory_space<vmem>>, vector<1x1x64xf32>
    %179 = vector.shape_cast %178 : vector<1x1x64xf32> to vector<1x64xf32>
    %180 = arith.truncf %175 : vector<8x32xf32> to vector<8x32xbf16>
    %cst_67 = arith.constant dense<0.000000e+00> : vector<8x64xf32>
    %181 = tpu.matmul %180, %177, %cst_67 {dimension_numbers = #tpu.dot_dimension_numbers<[1], [0], [0], [1], [0, 0, 1, 1], [], []>} : vector<8x32xbf16>, vector<32x64xbf16>, vector<8x64xf32> -> vector<8x64xf32>
    %182 = vector.broadcast %179 : vector<1x64xf32> to vector<8x64xf32>
    %183 = arith.addf %181, %182 : vector<8x64xf32>
    %cst_68 = arith.constant 5.000000e-01 : f32
    %184 = vector.broadcast %cst_68 : f32 to vector<8x64xf32>
    %185 = arith.mulf %184, %183 : vector<8x64xf32>
    %cst_69 = arith.constant 0.707106769 : f32
    %186 = vector.broadcast %cst_69 : f32 to vector<8x64xf32>
    %187 = arith.mulf %183, %186 : vector<8x64xf32>
    %cst_70 = arith.constant 0.000000e+00 : f32
    %188 = vector.broadcast %cst_70 : f32 to vector<8x64xf32>
    %189 = arith.cmpf olt, %187, %188 : vector<8x64xf32>
    %cst_71 = arith.constant -1.000000e+00 : f32
    %cst_72 = arith.constant 1.000000e+00 : f32
    %190 = vector.broadcast %cst_71 : f32 to vector<8x64xf32>
    %191 = vector.broadcast %cst_72 : f32 to vector<8x64xf32>
    %192 = arith.select %189, %190, %191 : vector<8x64xi1>, vector<8x64xf32>
    %193 = math.absf %187 : vector<8x64xf32>
    %cst_73 = arith.constant 0.327591091 : f32
    %194 = vector.broadcast %cst_73 : f32 to vector<8x64xf32>
    %195 = arith.mulf %194, %193 : vector<8x64xf32>
    %cst_74 = arith.constant 1.000000e+00 : f32
    %196 = vector.broadcast %cst_74 : f32 to vector<8x64xf32>
    %197 = arith.addf %196, %195 : vector<8x64xf32>
    %cst_75 = arith.constant 1.000000e+00 : f32
    %198 = vector.broadcast %cst_75 : f32 to vector<8x64xf32>
    %199 = arith.divf %198, %197 : vector<8x64xf32>
    %cst_76 = arith.constant 1.06140542 : f32
    %200 = vector.broadcast %cst_76 : f32 to vector<8x64xf32>
    %201 = arith.mulf %200, %199 : vector<8x64xf32>
    %cst_77 = arith.constant -1.45315206 : f32
    %202 = vector.broadcast %cst_77 : f32 to vector<8x64xf32>
    %203 = arith.addf %201, %202 : vector<8x64xf32>
    %204 = arith.mulf %203, %199 : vector<8x64xf32>
    %cst_78 = arith.constant 1.42141378 : f32
    %205 = vector.broadcast %cst_78 : f32 to vector<8x64xf32>
    %206 = arith.addf %204, %205 : vector<8x64xf32>
    %207 = arith.mulf %206, %199 : vector<8x64xf32>
    %cst_79 = arith.constant -0.284496725 : f32
    %208 = vector.broadcast %cst_79 : f32 to vector<8x64xf32>
    %209 = arith.addf %207, %208 : vector<8x64xf32>
    %210 = arith.mulf %209, %199 : vector<8x64xf32>
    %cst_80 = arith.constant 0.254829586 : f32
    %211 = vector.broadcast %cst_80 : f32 to vector<8x64xf32>
    %212 = arith.addf %210, %211 : vector<8x64xf32>
    %213 = arith.mulf %212, %199 : vector<8x64xf32>
    %cst_81 = arith.constant 0.000000e+00 : f32
    %214 = vector.broadcast %cst_81 : f32 to vector<8x64xf32>
    %215 = arith.subf %214, %193 : vector<8x64xf32>
    %216 = arith.mulf %215, %193 : vector<8x64xf32>
    %217 = math.exp %216 : vector<8x64xf32>
    %218 = arith.mulf %213, %217 : vector<8x64xf32>
    %cst_82 = arith.constant 1.000000e+00 : f32
    %219 = vector.broadcast %cst_82 : f32 to vector<8x64xf32>
    %220 = arith.subf %219, %218 : vector<8x64xf32>
    %221 = arith.mulf %192, %220 : vector<8x64xf32>
    %cst_83 = arith.constant 1.000000e+00 : f32
    %222 = vector.broadcast %cst_83 : f32 to vector<8x64xf32>
    %223 = arith.addf %222, %221 : vector<8x64xf32>
    %224 = arith.mulf %185, %223 : vector<8x64xf32>
    %c0_84 = arith.constant 0 : index
    %c0_85 = arith.constant 0 : index
    %c0_86 = arith.constant 0 : index
    %225 = vector.load %arg13[%c0_84, %c0_85, %c0_86] : memref<2x64x32xbf16, #tpu.memory_space<vmem>>, vector<1x64x32xbf16>
    %226 = vector.shape_cast %225 : vector<1x64x32xbf16> to vector<64x32xbf16>
    %c0_87 = arith.constant 0 : index
    %c0_88 = arith.constant 0 : index
    %c0_89 = arith.constant 0 : index
    %227 = vector.load %arg14[%c0_87, %c0_88, %c0_89] : memref<2x1x32xf32, #tpu.memory_space<vmem>>, vector<1x1x32xf32>
    %228 = vector.shape_cast %227 : vector<1x1x32xf32> to vector<1x32xf32>
    %229 = arith.truncf %224 : vector<8x64xf32> to vector<8x64xbf16>
    %cst_90 = arith.constant dense<0.000000e+00> : vector<8x32xf32>
    %230 = tpu.matmul %229, %226, %cst_90 {dimension_numbers = #tpu.dot_dimension_numbers<[1], [0], [0], [1], [0, 0, 1, 1], [], []>} : vector<8x64xbf16>, vector<64x32xbf16>, vector<8x32xf32> -> vector<8x32xf32>
    %231 = vector.broadcast %228 : vector<1x32xf32> to vector<8x32xf32>
    %232 = arith.addf %230, %231 : vector<8x32xf32>
    %233 = arith.addf %175, %232 : vector<8x32xf32>
    %c0_91 = arith.constant 0 : index
    %c0_92 = arith.constant 0 : index
    %c0_93 = arith.constant 0 : index
    %234 = vector.load %arg15[%c0_91, %c0_92, %c0_93] : memref<2x1x32xf32, #tpu.memory_space<vmem>>, vector<1x1x32xf32>
    %235 = vector.shape_cast %234 : vector<1x1x32xf32> to vector<1x32xf32>
    %c0_94 = arith.constant 0 : index
    %c0_95 = arith.constant 0 : index
    %c0_96 = arith.constant 0 : index
    %236 = vector.load %arg16[%c0_94, %c0_95, %c0_96] : memref<2x1x32xf32, #tpu.memory_space<vmem>>, vector<1x1x32xf32>
    %237 = vector.shape_cast %236 : vector<1x1x32xf32> to vector<1x32xf32>
    %cst_97 = arith.constant dense<0.000000e+00> : vector<8xf32>
    %238 = vector.multi_reduction <add>, %233, %cst_97 [1] : vector<8x32xf32> to vector<8xf32>
    %239 = vector.shape_cast %238 : vector<8xf32> to vector<8x1xf32>
    %cst_98 = arith.constant 3.200000e+01 : f32
    %240 = vector.broadcast %cst_98 : f32 to vector<8x1xf32>
    %241 = arith.divf %239, %240 : vector<8x1xf32>
    %242 = vector.broadcast %241 : vector<8x1xf32> to vector<8x32xf32>
    %243 = arith.subf %233, %242 : vector<8x32xf32>
    %244 = arith.mulf %243, %243 : vector<8x32xf32>
    %cst_99 = arith.constant dense<0.000000e+00> : vector<8xf32>
    %245 = vector.multi_reduction <add>, %244, %cst_99 [1] : vector<8x32xf32> to vector<8xf32>
    %246 = vector.shape_cast %245 : vector<8xf32> to vector<8x1xf32>
    %cst_100 = arith.constant 3.200000e+01 : f32
    %247 = vector.broadcast %cst_100 : f32 to vector<8x1xf32>
    %248 = arith.divf %246, %247 : vector<8x1xf32>
    %249 = vector.broadcast %241 : vector<8x1xf32> to vector<8x32xf32>
    %250 = arith.subf %233, %249 : vector<8x32xf32>
    %cst_101 = arith.constant 9.99999996E-13 : f32
    %251 = vector.broadcast %cst_101 : f32 to vector<8x1xf32>
    %252 = arith.addf %248, %251 : vector<8x1xf32>
    %253 = math.rsqrt %252 : vector<8x1xf32>
    %254 = vector.broadcast %253 : vector<8x1xf32> to vector<8x32xf32>
    %255 = arith.mulf %250, %254 : vector<8x32xf32>
    %256 = vector.broadcast %235 : vector<1x32xf32> to vector<8x32xf32>
    %257 = arith.mulf %255, %256 : vector<8x32xf32>
    %258 = vector.broadcast %237 : vector<1x32xf32> to vector<8x32xf32>
    %259 = arith.addf %257, %258 : vector<8x32xf32>
    %c1 = arith.constant 1 : index
    %c0_102 = arith.constant 0 : index
    %c0_103 = arith.constant 0 : index
    %260 = vector.load %arg5[%c1, %c0_102, %c0_103] : memref<2x32x96xbf16, #tpu.memory_space<vmem>>, vector<1x32x96xbf16>
    %261 = vector.shape_cast %260 : vector<1x32x96xbf16> to vector<32x96xbf16>
    %c1_104 = arith.constant 1 : index
    %c0_105 = arith.constant 0 : index
    %c0_106 = arith.constant 0 : index
    %262 = vector.load %arg6[%c1_104, %c0_105, %c0_106] : memref<2x1x96xf32, #tpu.memory_space<vmem>>, vector<1x1x96xf32>
    %263 = vector.shape_cast %262 : vector<1x1x96xf32> to vector<1x96xf32>
    %264 = arith.truncf %259 : vector<8x32xf32> to vector<8x32xbf16>
    %cst_107 = arith.constant dense<0.000000e+00> : vector<8x96xf32>
    %265 = tpu.matmul %264, %261, %cst_107 {dimension_numbers = #tpu.dot_dimension_numbers<[1], [0], [0], [1], [0, 0, 1, 1], [], []>} : vector<8x32xbf16>, vector<32x96xbf16>, vector<8x96xf32> -> vector<8x96xf32>
    %266 = vector.broadcast %263 : vector<1x96xf32> to vector<8x96xf32>
    %267 = arith.addf %265, %266 : vector<8x96xf32>
    %c1_108 = arith.constant 1 : index
    %c0_109 = arith.constant 0 : index
    %c0_110 = arith.constant 0 : index
    %268 = vector.load %arg7[%c1_108, %c0_109, %c0_110] : memref<2x32x32xbf16, #tpu.memory_space<vmem>>, vector<1x32x32xbf16>
    %269 = vector.shape_cast %268 : vector<1x32x32xbf16> to vector<32x32xbf16>
    %c1_111 = arith.constant 1 : index
    %c0_112 = arith.constant 0 : index
    %c0_113 = arith.constant 0 : index
    %270 = vector.load %arg8[%c1_111, %c0_112, %c0_113] : memref<2x1x32xf32, #tpu.memory_space<vmem>>, vector<1x1x32xf32>
    %271 = vector.shape_cast %270 : vector<1x1x32xf32> to vector<1x32xf32>
    %272 = vector.extract_strided_slice %267 {offsets = [0, 0], sizes = [8, 8], strides = [1, 1]} : vector<8x96xf32> to vector<8x8xf32>
    %273 = arith.truncf %272 : vector<8x8xf32> to vector<8x8xbf16>
    %274 = vector.extract_strided_slice %267 {offsets = [0, 32], sizes = [8, 8], strides = [1, 1]} : vector<8x96xf32> to vector<8x8xf32>
    %275 = arith.truncf %274 : vector<8x8xf32> to vector<8x8xbf16>
    %276 = vector.extract_strided_slice %267 {offsets = [0, 64], sizes = [8, 8], strides = [1, 1]} : vector<8x96xf32> to vector<8x8xf32>
    %277 = arith.truncf %276 : vector<8x8xf32> to vector<8x8xbf16>
    %cst_114 = arith.constant dense<0.000000e+00> : vector<8x8xf32>
    %278 = tpu.matmul %273, %275, %cst_114 {dimension_numbers = #tpu.dot_dimension_numbers<[1], [1], [0], [0], [0, 0, 1, 0], [], []>} : vector<8x8xbf16>, vector<8x8xbf16>, vector<8x8xf32> -> vector<8x8xf32>
    %cst_115 = arith.constant 0.353553385 : f32
    %279 = vector.broadcast %cst_115 : f32 to vector<8x8xf32>
    %280 = arith.mulf %278, %279 : vector<8x8xf32>
    %281 = vector.broadcast %3 : vector<1x8xf32> to vector<8x8xf32>
    %282 = arith.addf %280, %281 : vector<8x8xf32>
    %cst_116 = arith.constant dense<0xFF800000> : vector<8xf32>
    %283 = vector.multi_reduction <maximumf>, %282, %cst_116 [1] : vector<8x8xf32> to vector<8xf32>
    %284 = vector.shape_cast %283 : vector<8xf32> to vector<8x1xf32>
    %285 = vector.broadcast %284 : vector<8x1xf32> to vector<8x8xf32>
    %286 = arith.subf %282, %285 : vector<8x8xf32>
    %287 = math.exp %286 : vector<8x8xf32>
    %cst_117 = arith.constant dense<0.000000e+00> : vector<8xf32>
    %288 = vector.multi_reduction <add>, %287, %cst_117 [1] : vector<8x8xf32> to vector<8xf32>
    %289 = vector.shape_cast %288 : vector<8xf32> to vector<8x1xf32>
    %290 = tpu.reciprocal %289 {approx = true} : vector<8x1xf32> -> vector<8x1xf32>
    %291 = vector.broadcast %290 : vector<8x1xf32> to vector<8x8xf32>
    %292 = arith.mulf %287, %291 : vector<8x8xf32>
    %293 = arith.truncf %292 : vector<8x8xf32> to vector<8x8xbf16>
    %cst_118 = arith.constant dense<0.000000e+00> : vector<8x8xf32>
    %294 = tpu.matmul %293, %277, %cst_118 {dimension_numbers = #tpu.dot_dimension_numbers<[1], [0], [0], [1], [0, 0, 1, 1], [], []>} : vector<8x8xbf16>, vector<8x8xbf16>, vector<8x8xf32> -> vector<8x8xf32>
    %295 = arith.truncf %294 : vector<8x8xf32> to vector<8x8xbf16>
    %296 = vector.extract_strided_slice %269 {offsets = [0, 0], sizes = [8, 32], strides = [1, 1]} : vector<32x32xbf16> to vector<8x32xbf16>
    %cst_119 = arith.constant dense<0.000000e+00> : vector<8x32xf32>
    %297 = tpu.matmul %295, %296, %cst_119 {dimension_numbers = #tpu.dot_dimension_numbers<[1], [0], [0], [1], [0, 0, 1, 1], [], []>} : vector<8x8xbf16>, vector<8x32xbf16>, vector<8x32xf32> -> vector<8x32xf32>
    %298 = vector.broadcast %271 : vector<1x32xf32> to vector<8x32xf32>
    %299 = arith.addf %298, %297 : vector<8x32xf32>
    %300 = vector.extract_strided_slice %267 {offsets = [0, 8], sizes = [8, 8], strides = [1, 1]} : vector<8x96xf32> to vector<8x8xf32>
    %301 = arith.truncf %300 : vector<8x8xf32> to vector<8x8xbf16>
    %302 = vector.extract_strided_slice %267 {offsets = [0, 40], sizes = [8, 8], strides = [1, 1]} : vector<8x96xf32> to vector<8x8xf32>
    %303 = arith.truncf %302 : vector<8x8xf32> to vector<8x8xbf16>
    %304 = vector.extract_strided_slice %267 {offsets = [0, 72], sizes = [8, 8], strides = [1, 1]} : vector<8x96xf32> to vector<8x8xf32>
    %305 = arith.truncf %304 : vector<8x8xf32> to vector<8x8xbf16>
    %cst_120 = arith.constant dense<0.000000e+00> : vector<8x8xf32>
    %306 = tpu.matmul %301, %303, %cst_120 {dimension_numbers = #tpu.dot_dimension_numbers<[1], [1], [0], [0], [0, 0, 1, 0], [], []>} : vector<8x8xbf16>, vector<8x8xbf16>, vector<8x8xf32> -> vector<8x8xf32>
    %cst_121 = arith.constant 0.353553385 : f32
    %307 = vector.broadcast %cst_121 : f32 to vector<8x8xf32>
    %308 = arith.mulf %306, %307 : vector<8x8xf32>
    %309 = vector.broadcast %3 : vector<1x8xf32> to vector<8x8xf32>
    %310 = arith.addf %308, %309 : vector<8x8xf32>
    %cst_122 = arith.constant dense<0xFF800000> : vector<8xf32>
    %311 = vector.multi_reduction <maximumf>, %310, %cst_122 [1] : vector<8x8xf32> to vector<8xf32>
    %312 = vector.shape_cast %311 : vector<8xf32> to vector<8x1xf32>
    %313 = vector.broadcast %312 : vector<8x1xf32> to vector<8x8xf32>
    %314 = arith.subf %310, %313 : vector<8x8xf32>
    %315 = math.exp %314 : vector<8x8xf32>
    %cst_123 = arith.constant dense<0.000000e+00> : vector<8xf32>
    %316 = vector.multi_reduction <add>, %315, %cst_123 [1] : vector<8x8xf32> to vector<8xf32>
    %317 = vector.shape_cast %316 : vector<8xf32> to vector<8x1xf32>
    %318 = tpu.reciprocal %317 {approx = true} : vector<8x1xf32> -> vector<8x1xf32>
    %319 = vector.broadcast %318 : vector<8x1xf32> to vector<8x8xf32>
    %320 = arith.mulf %315, %319 : vector<8x8xf32>
    %321 = arith.truncf %320 : vector<8x8xf32> to vector<8x8xbf16>
    %cst_124 = arith.constant dense<0.000000e+00> : vector<8x8xf32>
    %322 = tpu.matmul %321, %305, %cst_124 {dimension_numbers = #tpu.dot_dimension_numbers<[1], [0], [0], [1], [0, 0, 1, 1], [], []>} : vector<8x8xbf16>, vector<8x8xbf16>, vector<8x8xf32> -> vector<8x8xf32>
    %323 = arith.truncf %322 : vector<8x8xf32> to vector<8x8xbf16>
    %324 = vector.extract_strided_slice %269 {offsets = [8, 0], sizes = [8, 32], strides = [1, 1]} : vector<32x32xbf16> to vector<8x32xbf16>
    %cst_125 = arith.constant dense<0.000000e+00> : vector<8x32xf32>
    %325 = tpu.matmul %323, %324, %cst_125 {dimension_numbers = #tpu.dot_dimension_numbers<[1], [0], [0], [1], [0, 0, 1, 1], [], []>} : vector<8x8xbf16>, vector<8x32xbf16>, vector<8x32xf32> -> vector<8x32xf32>
    %326 = arith.addf %299, %325 : vector<8x32xf32>
    %327 = vector.extract_strided_slice %267 {offsets = [0, 16], sizes = [8, 8], strides = [1, 1]} : vector<8x96xf32> to vector<8x8xf32>
    %328 = arith.truncf %327 : vector<8x8xf32> to vector<8x8xbf16>
    %329 = vector.extract_strided_slice %267 {offsets = [0, 48], sizes = [8, 8], strides = [1, 1]} : vector<8x96xf32> to vector<8x8xf32>
    %330 = arith.truncf %329 : vector<8x8xf32> to vector<8x8xbf16>
    %331 = vector.extract_strided_slice %267 {offsets = [0, 80], sizes = [8, 8], strides = [1, 1]} : vector<8x96xf32> to vector<8x8xf32>
    %332 = arith.truncf %331 : vector<8x8xf32> to vector<8x8xbf16>
    %cst_126 = arith.constant dense<0.000000e+00> : vector<8x8xf32>
    %333 = tpu.matmul %328, %330, %cst_126 {dimension_numbers = #tpu.dot_dimension_numbers<[1], [1], [0], [0], [0, 0, 1, 0], [], []>} : vector<8x8xbf16>, vector<8x8xbf16>, vector<8x8xf32> -> vector<8x8xf32>
    %cst_127 = arith.constant 0.353553385 : f32
    %334 = vector.broadcast %cst_127 : f32 to vector<8x8xf32>
    %335 = arith.mulf %333, %334 : vector<8x8xf32>
    %336 = vector.broadcast %3 : vector<1x8xf32> to vector<8x8xf32>
    %337 = arith.addf %335, %336 : vector<8x8xf32>
    %cst_128 = arith.constant dense<0xFF800000> : vector<8xf32>
    %338 = vector.multi_reduction <maximumf>, %337, %cst_128 [1] : vector<8x8xf32> to vector<8xf32>
    %339 = vector.shape_cast %338 : vector<8xf32> to vector<8x1xf32>
    %340 = vector.broadcast %339 : vector<8x1xf32> to vector<8x8xf32>
    %341 = arith.subf %337, %340 : vector<8x8xf32>
    %342 = math.exp %341 : vector<8x8xf32>
    %cst_129 = arith.constant dense<0.000000e+00> : vector<8xf32>
    %343 = vector.multi_reduction <add>, %342, %cst_129 [1] : vector<8x8xf32> to vector<8xf32>
    %344 = vector.shape_cast %343 : vector<8xf32> to vector<8x1xf32>
    %345 = tpu.reciprocal %344 {approx = true} : vector<8x1xf32> -> vector<8x1xf32>
    %346 = vector.broadcast %345 : vector<8x1xf32> to vector<8x8xf32>
    %347 = arith.mulf %342, %346 : vector<8x8xf32>
    %348 = arith.truncf %347 : vector<8x8xf32> to vector<8x8xbf16>
    %cst_130 = arith.constant dense<0.000000e+00> : vector<8x8xf32>
    %349 = tpu.matmul %348, %332, %cst_130 {dimension_numbers = #tpu.dot_dimension_numbers<[1], [0], [0], [1], [0, 0, 1, 1], [], []>} : vector<8x8xbf16>, vector<8x8xbf16>, vector<8x8xf32> -> vector<8x8xf32>
    %350 = arith.truncf %349 : vector<8x8xf32> to vector<8x8xbf16>
    %351 = vector.extract_strided_slice %269 {offsets = [16, 0], sizes = [8, 32], strides = [1, 1]} : vector<32x32xbf16> to vector<8x32xbf16>
    %cst_131 = arith.constant dense<0.000000e+00> : vector<8x32xf32>
    %352 = tpu.matmul %350, %351, %cst_131 {dimension_numbers = #tpu.dot_dimension_numbers<[1], [0], [0], [1], [0, 0, 1, 1], [], []>} : vector<8x8xbf16>, vector<8x32xbf16>, vector<8x32xf32> -> vector<8x32xf32>
    %353 = arith.addf %326, %352 : vector<8x32xf32>
    %354 = vector.extract_strided_slice %267 {offsets = [0, 24], sizes = [8, 8], strides = [1, 1]} : vector<8x96xf32> to vector<8x8xf32>
    %355 = arith.truncf %354 : vector<8x8xf32> to vector<8x8xbf16>
    %356 = vector.extract_strided_slice %267 {offsets = [0, 56], sizes = [8, 8], strides = [1, 1]} : vector<8x96xf32> to vector<8x8xf32>
    %357 = arith.truncf %356 : vector<8x8xf32> to vector<8x8xbf16>
    %358 = vector.extract_strided_slice %267 {offsets = [0, 88], sizes = [8, 8], strides = [1, 1]} : vector<8x96xf32> to vector<8x8xf32>
    %359 = arith.truncf %358 : vector<8x8xf32> to vector<8x8xbf16>
    %cst_132 = arith.constant dense<0.000000e+00> : vector<8x8xf32>
    %360 = tpu.matmul %355, %357, %cst_132 {dimension_numbers = #tpu.dot_dimension_numbers<[1], [1], [0], [0], [0, 0, 1, 0], [], []>} : vector<8x8xbf16>, vector<8x8xbf16>, vector<8x8xf32> -> vector<8x8xf32>
    %cst_133 = arith.constant 0.353553385 : f32
    %361 = vector.broadcast %cst_133 : f32 to vector<8x8xf32>
    %362 = arith.mulf %360, %361 : vector<8x8xf32>
    %363 = vector.broadcast %3 : vector<1x8xf32> to vector<8x8xf32>
    %364 = arith.addf %362, %363 : vector<8x8xf32>
    %cst_134 = arith.constant dense<0xFF800000> : vector<8xf32>
    %365 = vector.multi_reduction <maximumf>, %364, %cst_134 [1] : vector<8x8xf32> to vector<8xf32>
    %366 = vector.shape_cast %365 : vector<8xf32> to vector<8x1xf32>
    %367 = vector.broadcast %366 : vector<8x1xf32> to vector<8x8xf32>
    %368 = arith.subf %364, %367 : vector<8x8xf32>
    %369 = math.exp %368 : vector<8x8xf32>
    %cst_135 = arith.constant dense<0.000000e+00> : vector<8xf32>
    %370 = vector.multi_reduction <add>, %369, %cst_135 [1] : vector<8x8xf32> to vector<8xf32>
    %371 = vector.shape_cast %370 : vector<8xf32> to vector<8x1xf32>
    %372 = tpu.reciprocal %371 {approx = true} : vector<8x1xf32> -> vector<8x1xf32>
    %373 = vector.broadcast %372 : vector<8x1xf32> to vector<8x8xf32>
    %374 = arith.mulf %369, %373 : vector<8x8xf32>
    %375 = arith.truncf %374 : vector<8x8xf32> to vector<8x8xbf16>
    %cst_136 = arith.constant dense<0.000000e+00> : vector<8x8xf32>
    %376 = tpu.matmul %375, %359, %cst_136 {dimension_numbers = #tpu.dot_dimension_numbers<[1], [0], [0], [1], [0, 0, 1, 1], [], []>} : vector<8x8xbf16>, vector<8x8xbf16>, vector<8x8xf32> -> vector<8x8xf32>
    %377 = arith.truncf %376 : vector<8x8xf32> to vector<8x8xbf16>
    %378 = vector.extract_strided_slice %269 {offsets = [24, 0], sizes = [8, 32], strides = [1, 1]} : vector<32x32xbf16> to vector<8x32xbf16>
    %cst_137 = arith.constant dense<0.000000e+00> : vector<8x32xf32>
    %379 = tpu.matmul %377, %378, %cst_137 {dimension_numbers = #tpu.dot_dimension_numbers<[1], [0], [0], [1], [0, 0, 1, 1], [], []>} : vector<8x8xbf16>, vector<8x32xbf16>, vector<8x32xf32> -> vector<8x32xf32>
    %380 = arith.addf %353, %379 : vector<8x32xf32>
    %381 = arith.addf %259, %380 : vector<8x32xf32>
    %c1_138 = arith.constant 1 : index
    %c0_139 = arith.constant 0 : index
    %c0_140 = arith.constant 0 : index
    %382 = vector.load %arg9[%c1_138, %c0_139, %c0_140] : memref<2x1x32xf32, #tpu.memory_space<vmem>>, vector<1x1x32xf32>
    %383 = vector.shape_cast %382 : vector<1x1x32xf32> to vector<1x32xf32>
    %c1_141 = arith.constant 1 : index
    %c0_142 = arith.constant 0 : index
    %c0_143 = arith.constant 0 : index
    %384 = vector.load %arg10[%c1_141, %c0_142, %c0_143] : memref<2x1x32xf32, #tpu.memory_space<vmem>>, vector<1x1x32xf32>
    %385 = vector.shape_cast %384 : vector<1x1x32xf32> to vector<1x32xf32>
    %cst_144 = arith.constant dense<0.000000e+00> : vector<8xf32>
    %386 = vector.multi_reduction <add>, %381, %cst_144 [1] : vector<8x32xf32> to vector<8xf32>
    %387 = vector.shape_cast %386 : vector<8xf32> to vector<8x1xf32>
    %cst_145 = arith.constant 3.200000e+01 : f32
    %388 = vector.broadcast %cst_145 : f32 to vector<8x1xf32>
    %389 = arith.divf %387, %388 : vector<8x1xf32>
    %390 = vector.broadcast %389 : vector<8x1xf32> to vector<8x32xf32>
    %391 = arith.subf %381, %390 : vector<8x32xf32>
    %392 = arith.mulf %391, %391 : vector<8x32xf32>
    %cst_146 = arith.constant dense<0.000000e+00> : vector<8xf32>
    %393 = vector.multi_reduction <add>, %392, %cst_146 [1] : vector<8x32xf32> to vector<8xf32>
    %394 = vector.shape_cast %393 : vector<8xf32> to vector<8x1xf32>
    %cst_147 = arith.constant 3.200000e+01 : f32
    %395 = vector.broadcast %cst_147 : f32 to vector<8x1xf32>
    %396 = arith.divf %394, %395 : vector<8x1xf32>
    %397 = vector.broadcast %389 : vector<8x1xf32> to vector<8x32xf32>
    %398 = arith.subf %381, %397 : vector<8x32xf32>
    %cst_148 = arith.constant 9.99999996E-13 : f32
    %399 = vector.broadcast %cst_148 : f32 to vector<8x1xf32>
    %400 = arith.addf %396, %399 : vector<8x1xf32>
    %401 = math.rsqrt %400 : vector<8x1xf32>
    %402 = vector.broadcast %401 : vector<8x1xf32> to vector<8x32xf32>
    %403 = arith.mulf %398, %402 : vector<8x32xf32>
    %404 = vector.broadcast %383 : vector<1x32xf32> to vector<8x32xf32>
    %405 = arith.mulf %403, %404 : vector<8x32xf32>
    %406 = vector.broadcast %385 : vector<1x32xf32> to vector<8x32xf32>
    %407 = arith.addf %405, %406 : vector<8x32xf32>
    %c1_149 = arith.constant 1 : index
    %c0_150 = arith.constant 0 : index
    %c0_151 = arith.constant 0 : index
    %408 = vector.load %arg11[%c1_149, %c0_150, %c0_151] : memref<2x32x64xbf16, #tpu.memory_space<vmem>>, vector<1x32x64xbf16>
    %409 = vector.shape_cast %408 : vector<1x32x64xbf16> to vector<32x64xbf16>
    %c1_152 = arith.constant 1 : index
    %c0_153 = arith.constant 0 : index
    %c0_154 = arith.constant 0 : index
    %410 = vector.load %arg12[%c1_152, %c0_153, %c0_154] : memref<2x1x64xf32, #tpu.memory_space<vmem>>, vector<1x1x64xf32>
    %411 = vector.shape_cast %410 : vector<1x1x64xf32> to vector<1x64xf32>
    %412 = arith.truncf %407 : vector<8x32xf32> to vector<8x32xbf16>
    %cst_155 = arith.constant dense<0.000000e+00> : vector<8x64xf32>
    %413 = tpu.matmul %412, %409, %cst_155 {dimension_numbers = #tpu.dot_dimension_numbers<[1], [0], [0], [1], [0, 0, 1, 1], [], []>} : vector<8x32xbf16>, vector<32x64xbf16>, vector<8x64xf32> -> vector<8x64xf32>
    %414 = vector.broadcast %411 : vector<1x64xf32> to vector<8x64xf32>
    %415 = arith.addf %413, %414 : vector<8x64xf32>
    %cst_156 = arith.constant 5.000000e-01 : f32
    %416 = vector.broadcast %cst_156 : f32 to vector<8x64xf32>
    %417 = arith.mulf %416, %415 : vector<8x64xf32>
    %cst_157 = arith.constant 0.707106769 : f32
    %418 = vector.broadcast %cst_157 : f32 to vector<8x64xf32>
    %419 = arith.mulf %415, %418 : vector<8x64xf32>
    %cst_158 = arith.constant 0.000000e+00 : f32
    %420 = vector.broadcast %cst_158 : f32 to vector<8x64xf32>
    %421 = arith.cmpf olt, %419, %420 : vector<8x64xf32>
    %cst_159 = arith.constant -1.000000e+00 : f32
    %cst_160 = arith.constant 1.000000e+00 : f32
    %422 = vector.broadcast %cst_159 : f32 to vector<8x64xf32>
    %423 = vector.broadcast %cst_160 : f32 to vector<8x64xf32>
    %424 = arith.select %421, %422, %423 : vector<8x64xi1>, vector<8x64xf32>
    %425 = math.absf %419 : vector<8x64xf32>
    %cst_161 = arith.constant 0.327591091 : f32
    %426 = vector.broadcast %cst_161 : f32 to vector<8x64xf32>
    %427 = arith.mulf %426, %425 : vector<8x64xf32>
    %cst_162 = arith.constant 1.000000e+00 : f32
    %428 = vector.broadcast %cst_162 : f32 to vector<8x64xf32>
    %429 = arith.addf %428, %427 : vector<8x64xf32>
    %cst_163 = arith.constant 1.000000e+00 : f32
    %430 = vector.broadcast %cst_163 : f32 to vector<8x64xf32>
    %431 = arith.divf %430, %429 : vector<8x64xf32>
    %cst_164 = arith.constant 1.06140542 : f32
    %432 = vector.broadcast %cst_164 : f32 to vector<8x64xf32>
    %433 = arith.mulf %432, %431 : vector<8x64xf32>
    %cst_165 = arith.constant -1.45315206 : f32
    %434 = vector.broadcast %cst_165 : f32 to vector<8x64xf32>
    %435 = arith.addf %433, %434 : vector<8x64xf32>
    %436 = arith.mulf %435, %431 : vector<8x64xf32>
    %cst_166 = arith.constant 1.42141378 : f32
    %437 = vector.broadcast %cst_166 : f32 to vector<8x64xf32>
    %438 = arith.addf %436, %437 : vector<8x64xf32>
    %439 = arith.mulf %438, %431 : vector<8x64xf32>
    %cst_167 = arith.constant -0.284496725 : f32
    %440 = vector.broadcast %cst_167 : f32 to vector<8x64xf32>
    %441 = arith.addf %439, %440 : vector<8x64xf32>
    %442 = arith.mulf %441, %431 : vector<8x64xf32>
    %cst_168 = arith.constant 0.254829586 : f32
    %443 = vector.broadcast %cst_168 : f32 to vector<8x64xf32>
    %444 = arith.addf %442, %443 : vector<8x64xf32>
    %445 = arith.mulf %444, %431 : vector<8x64xf32>
    %cst_169 = arith.constant 0.000000e+00 : f32
    %446 = vector.broadcast %cst_169 : f32 to vector<8x64xf32>
    %447 = arith.subf %446, %425 : vector<8x64xf32>
    %448 = arith.mulf %447, %425 : vector<8x64xf32>
    %449 = math.exp %448 : vector<8x64xf32>
    %450 = arith.mulf %445, %449 : vector<8x64xf32>
    %cst_170 = arith.constant 1.000000e+00 : f32
    %451 = vector.broadcast %cst_170 : f32 to vector<8x64xf32>
    %452 = arith.subf %451, %450 : vector<8x64xf32>
    %453 = arith.mulf %424, %452 : vector<8x64xf32>
    %cst_171 = arith.constant 1.000000e+00 : f32
    %454 = vector.broadcast %cst_171 : f32 to vector<8x64xf32>
    %455 = arith.addf %454, %453 : vector<8x64xf32>
    %456 = arith.mulf %417, %455 : vector<8x64xf32>
    %c1_172 = arith.constant 1 : index
    %c0_173 = arith.constant 0 : index
    %c0_174 = arith.constant 0 : index
    %457 = vector.load %arg13[%c1_172, %c0_173, %c0_174] : memref<2x64x32xbf16, #tpu.memory_space<vmem>>, vector<1x64x32xbf16>
    %458 = vector.shape_cast %457 : vector<1x64x32xbf16> to vector<64x32xbf16>
    %c1_175 = arith.constant 1 : index
    %c0_176 = arith.constant 0 : index
    %c0_177 = arith.constant 0 : index
    %459 = vector.load %arg14[%c1_175, %c0_176, %c0_177] : memref<2x1x32xf32, #tpu.memory_space<vmem>>, vector<1x1x32xf32>
    %460 = vector.shape_cast %459 : vector<1x1x32xf32> to vector<1x32xf32>
    %461 = arith.truncf %456 : vector<8x64xf32> to vector<8x64xbf16>
    %cst_178 = arith.constant dense<0.000000e+00> : vector<8x32xf32>
    %462 = tpu.matmul %461, %458, %cst_178 {dimension_numbers = #tpu.dot_dimension_numbers<[1], [0], [0], [1], [0, 0, 1, 1], [], []>} : vector<8x64xbf16>, vector<64x32xbf16>, vector<8x32xf32> -> vector<8x32xf32>
    %463 = vector.broadcast %460 : vector<1x32xf32> to vector<8x32xf32>
    %464 = arith.addf %462, %463 : vector<8x32xf32>
    %465 = arith.addf %407, %464 : vector<8x32xf32>
    %c1_179 = arith.constant 1 : index
    %c0_180 = arith.constant 0 : index
    %c0_181 = arith.constant 0 : index
    %466 = vector.load %arg15[%c1_179, %c0_180, %c0_181] : memref<2x1x32xf32, #tpu.memory_space<vmem>>, vector<1x1x32xf32>
    %467 = vector.shape_cast %466 : vector<1x1x32xf32> to vector<1x32xf32>
    %c1_182 = arith.constant 1 : index
    %c0_183 = arith.constant 0 : index
    %c0_184 = arith.constant 0 : index
    %468 = vector.load %arg16[%c1_182, %c0_183, %c0_184] : memref<2x1x32xf32, #tpu.memory_space<vmem>>, vector<1x1x32xf32>
    %469 = vector.shape_cast %468 : vector<1x1x32xf32> to vector<1x32xf32>
    %cst_185 = arith.constant dense<0.000000e+00> : vector<8xf32>
    %470 = vector.multi_reduction <add>, %465, %cst_185 [1] : vector<8x32xf32> to vector<8xf32>
    %471 = vector.shape_cast %470 : vector<8xf32> to vector<8x1xf32>
    %cst_186 = arith.constant 3.200000e+01 : f32
    %472 = vector.broadcast %cst_186 : f32 to vector<8x1xf32>
    %473 = arith.divf %471, %472 : vector<8x1xf32>
    %474 = vector.broadcast %473 : vector<8x1xf32> to vector<8x32xf32>
    %475 = arith.subf %465, %474 : vector<8x32xf32>
    %476 = arith.mulf %475, %475 : vector<8x32xf32>
    %cst_187 = arith.constant dense<0.000000e+00> : vector<8xf32>
    %477 = vector.multi_reduction <add>, %476, %cst_187 [1] : vector<8x32xf32> to vector<8xf32>
    %478 = vector.shape_cast %477 : vector<8xf32> to vector<8x1xf32>
    %cst_188 = arith.constant 3.200000e+01 : f32
    %479 = vector.broadcast %cst_188 : f32 to vector<8x1xf32>
    %480 = arith.divf %478, %479 : vector<8x1xf32>
    %481 = vector.broadcast %473 : vector<8x1xf32> to vector<8x32xf32>
    %482 = arith.subf %465, %481 : vector<8x32xf32>
    %cst_189 = arith.constant 9.99999996E-13 : f32
    %483 = vector.broadcast %cst_189 : f32 to vector<8x1xf32>
    %484 = arith.addf %480, %483 : vector<8x1xf32>
    %485 = math.rsqrt %484 : vector<8x1xf32>
    %486 = vector.broadcast %485 : vector<8x1xf32> to vector<8x32xf32>
    %487 = arith.mulf %482, %486 : vector<8x32xf32>
    %488 = vector.broadcast %467 : vector<1x32xf32> to vector<8x32xf32>
    %489 = arith.mulf %487, %488 : vector<8x32xf32>
    %490 = vector.broadcast %469 : vector<1x32xf32> to vector<8x32xf32>
    %491 = arith.addf %489, %490 : vector<8x32xf32>
    %492 = vector.extract_strided_slice %491 {offsets = [0, 0], sizes = [1, 32], strides = [1, 1]} : vector<8x32xf32> to vector<1x32xf32>
    %c0_190 = arith.constant 0 : index
    %c0_191 = arith.constant 0 : index
    %493 = vector.load %arg17[%c0_190, %c0_191] : memref<32x64xbf16, #tpu.memory_space<vmem>>, vector<32x64xbf16>
    %c0_192 = arith.constant 0 : index
    %c0_193 = arith.constant 0 : index
    %494 = vector.load %arg18[%c0_192, %c0_193] : memref<1x64xf32, #tpu.memory_space<vmem>>, vector<1x64xf32>
    %495 = arith.truncf %492 : vector<1x32xf32> to vector<1x32xbf16>
    %cst_194 = arith.constant dense<0.000000e+00> : vector<1x64xf32>
    %496 = tpu.matmul %495, %493, %cst_194 {dimension_numbers = #tpu.dot_dimension_numbers<[1], [0], [0], [1], [0, 0, 1, 1], [], []>} : vector<1x32xbf16>, vector<32x64xbf16>, vector<1x64xf32> -> vector<1x64xf32>
    %497 = arith.addf %496, %494 : vector<1x64xf32>
    %c0_195 = arith.constant 0 : index
    %c0_196 = arith.constant 0 : index
    %c0_197 = arith.constant 0 : index
    %498 = vector.load %arg19[%c0_195, %c0_196, %c0_197] : memref<1x1x64xf32, #tpu.memory_space<vmem>>, vector<1x1x64xf32>
    %499 = vector.shape_cast %498 : vector<1x1x64xf32> to vector<1x64xf32>
    %500 = vector.shape_cast %497 : vector<1x64xf32> to vector<1x1x64xf32>
    tpu.vector_store %arg19[%c0_195, %c0_196, %c0_197], %500 {strides = array<i32>} : memref<1x1x64xf32, #tpu.memory_space<vmem>>, vector<1x1x64xf32>,
    return
  }
  func.func @transform_0(%arg0: i32) -> (i32, i32, i32) {
    %c0_i32 = arith.constant 0 : i32
    %c0_i32_0 = arith.constant 0 : i32
    %c0_i32_1 = arith.constant 0 : i32
    return %arg0, %c0_i32, %c0_i32_0 : i32, i32, i32
  }
  func.func @transform_1(%arg0: i32) -> (i32, i32, i32) {
    %c0_i32 = arith.constant 0 : i32
    %c0_i32_0 = arith.constant 0 : i32
    %c0_i32_1 = arith.constant 0 : i32
    return %arg0, %c0_i32, %c0_i32_0 : i32, i32, i32
  }
  func.func @transform_2(%arg0: i32) -> (i32, i32) {
    %c0_i32 = arith.constant 0 : i32
    %c0_i32_0 = arith.constant 0 : i32
    %c0_i32_1 = arith.constant 0 : i32
    return %c0_i32, %c0_i32_0 : i32, i32
  }
  func.func @transform_3(%arg0: i32) -> (i32, i32) {
    %c0_i32 = arith.constant 0 : i32
    %c0_i32_0 = arith.constant 0 : i32
    %c0_i32_1 = arith.constant 0 : i32
    return %c0_i32, %c0_i32_0 : i32, i32
  }
  func.func @transform_4(%arg0: i32) -> (i32, i32, i32) {
    %c0_i32 = arith.constant 0 : i32
    %c0_i32_0 = arith.constant 0 : i32
    %c0_i32_1 = arith.constant 0 : i32
    %c0_i32_2 = arith.constant 0 : i32
    return %c0_i32, %c0_i32_0, %c0_i32_1 : i32, i32, i32
  }
  func.func @transform_5(%arg0: i32) -> (i32, i32, i32) {
    %c0_i32 = arith.constant 0 : i32
    %c0_i32_0 = arith.constant 0 : i32
    %c0_i32_1 = arith.constant 0 : i32
    %c0_i32_2 = arith.constant 0 : i32
    return %c0_i32, %c0_i32_0, %c0_i32_1 : i32, i32, i32
  }
  func.func @transform_6(%arg0: i32) -> (i32, i32, i32) {
    %c0_i32 = arith.constant 0 : i32
    %c0_i32_0 = arith.constant 0 : i32
    %c0_i32_1 = arith.constant 0 : i32
    %c0_i32_2 = arith.constant 0 : i32
    return %c0_i32, %c0_i32_0, %c0_i32_1 : i32, i32, i32
  }
  func.func @transform_7(%arg0: i32) -> (i32, i32, i32) {
    %c0_i32 = arith.constant 0 : i32
    %c0_i32_0 = arith.constant 0 : i32
    %c0_i32_1 = arith.constant 0 : i32
    %c0_i32_2 = arith.constant 0 : i32
    return %c0_i32, %c0_i32_0, %c0_i32_1 : i32, i32, i32
  }
  func.func @transform_8(%arg0: i32) -> (i32, i32, i32) {
    %c0_i32 = arith.constant 0 : i32
    %c0_i32_0 = arith.constant 0 : i32
    %c0_i32_1 = arith.constant 0 : i32
    %c0_i32_2 = arith.constant 0 : i32
    return %c0_i32, %c0_i32_0, %c0_i32_1 : i32, i32, i32
  }
  func.func @transform_9(%arg0: i32) -> (i32, i32, i32) {
    %c0_i32 = arith.constant 0 : i32
    %c0_i32_0 = arith.constant 0 : i32
    %c0_i32_1 = arith.constant 0 : i32
    %c0_i32_2 = arith.constant 0 : i32
    return %c0_i32, %c0_i32_0, %c0_i32_1 : i32, i32, i32
  }
  func.func @transform_10(%arg0: i32) -> (i32, i32, i32) {
    %c0_i32 = arith.constant 0 : i32
    %c0_i32_0 = arith.constant 0 : i32
    %c0_i32_1 = arith.constant 0 : i32
    %c0_i32_2 = arith.constant 0 : i32
    return %c0_i32, %c0_i32_0, %c0_i32_1 : i32, i32, i32
  }
  func.func @transform_11(%arg0: i32) -> (i32, i32, i32) {
    %c0_i32 = arith.constant 0 : i32
    %c0_i32_0 = arith.constant 0 : i32
    %c0_i32_1 = arith.constant 0 : i32
    %c0_i32_2 = arith.constant 0 : i32
    return %c0_i32, %c0_i32_0, %c0_i32_1 : i32, i32, i32
  }
  func.func @transform_12(%arg0: i32) -> (i32, i32, i32) {
    %c0_i32 = arith.constant 0 : i32
    %c0_i32_0 = arith.constant 0 : i32
    %c0_i32_1 = arith.constant 0 : i32
    %c0_i32_2 = arith.constant 0 : i32
    return %c0_i32, %c0_i32_0, %c0_i32_1 : i32, i32, i32
  }
  func.func @transform_13(%arg0: i32) -> (i32, i32, i32) {
    %c0_i32 = arith.constant 0 : i32
    %c0_i32_0 = arith.constant 0 : i32
    %c0_i32_1 = arith.constant 0 : i32
    %c0_i32_2 = arith.constant 0 : i32
    return %c0_i32, %c0_i32_0, %c0_i32_1 : i32, i32, i32
  }
  func.func @transform_14(%arg0: i32) -> (i32, i32, i32) {
    %c0_i32 = arith.constant 0 : i32
    %c0_i32_0 = arith.constant 0 : i32
    %c0_i32_1 = arith.constant 0 : i32
    %c0_i32_2 = arith.constant 0 : i32
    return %c0_i32, %c0_i32_0, %c0_i32_1 : i32, i32, i32
  }
  func.func @transform_15(%arg0: i32) -> (i32, i32, i32) {
    %c0_i32 = arith.constant 0 : i32
    %c0_i32_0 = arith.constant 0 : i32
    %c0_i32_1 = arith.constant 0 : i32
    %c0_i32_2 = arith.constant 0 : i32
    return %c0_i32, %c0_i32_0, %c0_i32_1 : i32, i32, i32
  }
  func.func @transform_16(%arg0: i32) -> (i32, i32) {
    %c0_i32 = arith.constant 0 : i32
    %c0_i32_0 = arith.constant 0 : i32
    %c0_i32_1 = arith.constant 0 : i32
    return %c0_i32, %c0_i32_0 : i32, i32
  }
  func.func @transform_17(%arg0: i32) -> (i32, i32) {
    %c0_i32 = arith.constant 0 : i32
    %c0_i32_0 = arith.constant 0 : i32
    %c0_i32_1 = arith.constant 0 : i32
    return %c0_i32, %c0_i32_0 : i32, i32
  }
  func.func @transform_18(%arg0: i32) -> (i32, i32, i32) {
    %c0_i32 = arith.constant 0 : i32
    %c0_i32_0 = arith.constant 0 : i32
    %c0_i32_1 = arith.constant 0 : i32
    return %arg0, %c0_i32, %c0_i32_0 : i32, i32, i32
  }
}

</mosaic_0001>

<llo_original>
// kernel: tpu_custom_call.1
$region0: #{tpu_custom_call.1}
  #allocation0 [shape = 'u32[]', space=smem, size = 0x4, offset = 0x4, fixed_abs, tag = 'smem constant byte address 0x4 - core index']
  #allocation1 [shape = 'u32[144,128]{1,0:T(1,128)}', space=vmem, size = 0x12000, scoped, tag = 'internal scratch']
  %s0 = inlined_call_operand.hbm [shape: f32[2,8,32], index: 0, kind: input, shape index: {}]
  %s1 = inlined_call_operand.hbm [shape: f32[2,1,8], index: 1, kind: input, shape index: {}]
  %s2 = inlined_call_operand.vmem [shape: f32[1,32], index: 2, kind: input, shape index: {}]
  %s3 = inlined_call_operand.hbm [shape: f32[1,32], index: 3, kind: input, shape index: {}]
  %s4 = inlined_call_operand.vmem [shape: bf16[2,32,96], index: 4, kind: input, shape index: {}]
  %s5 = inlined_call_operand.hbm [shape: f32[2,1,96], index: 5, kind: input, shape index: {}]
  %s6 = inlined_call_operand.vmem [shape: bf16[2,32,32], index: 6, kind: input, shape index: {}]
  %s7 = inlined_call_operand.hbm [shape: f32[2,1,32], index: 7, kind: input, shape index: {}]
  %s8 = inlined_call_operand.hbm [shape: f32[2,1,32], index: 8, kind: input, shape index: {}]
  %s9 = inlined_call_operand.hbm [shape: f32[2,1,32], index: 9, kind: input, shape index: {}]
  %s10 = inlined_call_operand.vmem [shape: bf16[2,32,64], index: 10, kind: input, shape index: {}]
  %s11 = inlined_call_operand.hbm [shape: f32[2,1,64], index: 11, kind: input, shape index: {}]
  %s12 = inlined_call_operand.vmem [shape: bf16[2,64,32], index: 12, kind: input, shape index: {}]
  %s13 = inlined_call_operand.hbm [shape: f32[2,1,32], index: 13, kind: input, shape index: {}]
  %s14 = inlined_call_operand.vmem [shape: f32[2,1,32], index: 14, kind: input, shape index: {}]
  %s15 = inlined_call_operand.vmem [shape: f32[2,1,32], index: 15, kind: input, shape index: {}]
  %s16 = inlined_call_operand.vmem [shape: bf16[32,64], index: 16, kind: input, shape index: {}]
  %s17 = inlined_call_operand.vmem [shape: f32[1,64], index: 17, kind: input, shape index: {}]
  %s18 = inlined_call_operand.hbm [shape: f32[2,1,64], index: 18, kind: output, shape index: {}]
  %s19 = sld [smem:[#allocation0]]
  $region141: #{tpu_custom_call.1} parent=0
    _
  %s21 = ssub.s32 1, %s19
  %s22 = scalar_select 0, %s21, %s19
  $region1: #{tpu_custom_call.1} parent=0
    #allocation2 [shape = 'u8[8192]{0}', space=vmem, size = 0x2000, scoped, tag = 'input window, operand 0']
    #allocation3 [shape = 's32[2]{0}', space=sflag, size = 0x8, scoped, tag = 'scoped memory for tpu_custom_call.1']
    #allocation4 [shape = 's32[2]{0}', space=sflag, size = 0x8, scoped, tag = 'scoped memory for tpu_custom_call.1']
    #allocation5 [shape = 'u8[1024]{0}', space=vmem, size = 0x400, scoped, tag = 'input window, operand 1']
    #allocation6 [shape = 's32[2]{0}', space=sflag, size = 0x8, scoped, tag = 'scoped memory for tpu_custom_call.1']
    #allocation7 [shape = 'u8[512]{0}', space=vmem, size = 0x400, scoped, tag = 'input window, operand 3, single buffered']
    #allocation8 [shape = 'u8[1024]{0}', space=vmem, size = 0x400, scoped, tag = 'input window, operand 5, single buffered']
    #allocation9 [shape = 's32[1]{0}', space=sflag, size = 0x4, scoped, tag = 'scoped memory for tpu_custom_call.1']
    #allocation10 [shape = 'u8[1024]{0}', space=vmem, size = 0x400, scoped, tag = 'input window, operand 7, single buffered']
    #allocation11 [shape = 'u8[1024]{0}', space=vmem, size = 0x400, scoped, tag = 'input window, operand 8, single buffered']
    #allocation12 [shape = 's32[1]{0}', space=sflag, size = 0x4, scoped, tag = 'scoped memory for tpu_custom_call.1']
    #allocation13 [shape = 'u8[1024]{0}', space=vmem, size = 0x400, scoped, tag = 'input window, operand 9, single buffered']
    #allocation14 [shape = 'u8[1024]{0}', space=vmem, size = 0x400, scoped, tag = 'input window, operand 11, single buffered']
    #allocation15 [shape = 's32[1]{0}', space=sflag, size = 0x4, scoped, tag = 'scoped memory for tpu_custom_call.1']
    #allocation16 [shape = 'u8[1024]{0}', space=vmem, size = 0x400, scoped, tag = 'input window, operand 13, single buffered']
    #allocation17 [shape = 'u8[1024]{0}', space=vmem, size = 0x400, scoped, tag = 'output window, operand 0']
    %23 = vsyncpa [#allocation3], 0
    %s24 = scalar_lea.sflag [#allocation3], 1
    %25 = vsyncpa %s24, 0
    %26 = vsyncpa [#allocation6], 0
    %s27 = scalar_lea.sflag [#allocation6], 1
    %28 = vsyncpa %s27, 0
    %29 = vsyncpa [#allocation9], 0
    %30 = vsyncpa [#allocation12], 0
    %31 = vsyncpa [#allocation15], 0
    %32 = vsyncpa [#allocation4], 0
    %s33 = scalar_lea.sflag [#allocation4], 1
    %34 = vsyncpa %s33, 0
    loop: start=0, step=1, limit=4
    $region2: #{tpu_custom_call.1} parent=1 // loop_pre_header
      _
    $region3: #{tpu_custom_call.1} parent=1 // loop_header
      %s36 = sphi 0, %s40
      %p37 = scmp.ge.s32.totalorder %s36, 4
      %s46 = sphi 0, %s48
      %s49 = sphi 0, %s46
      %s50 = sphi 0, %s49
      %s66 = sphi 0, %s50
      %s72 = sphi 0, %s74
      %s75 = sphi 0, %s72
      %s76 = sphi 0, %s75
      %s92 = sphi 0, %s76
      %s96 = sphi 0, %s96
      %s98 = sphi 0, %s96
      %s99 = sphi 0, %s98
      %s113 = sphi 0, %s99
      %s117 = sphi 0, %s117
      %s119 = sphi 0, %s117
      %s120 = sphi 0, %s119
      %s134 = sphi 0, %s120
      %s138 = sphi 0, %s138
      %s140 = sphi 0, %s138
      %s141 = sphi 0, %s140
      %s155 = sphi 0, %s141
      %s159 = sphi 0, %s159
      %s161 = sphi 0, %s159
      %s162 = sphi 0, %s161
      %s176 = sphi 0, %s162
      %s180 = sphi 0, %s180
      %s182 = sphi 0, %s180
      %s183 = sphi 0, %s182
      %s197 = sphi 0, %s183
      %s201 = sphi 0, %s201
      %s203 = sphi 0, %s201
      %s204 = sphi 0, %s203
      %s218 = sphi 0, %s204
      %s222 = sphi 0, %s222
      %s224 = sphi 0, %s222
      %s225 = sphi 0, %s224
      %s239 = sphi 0, %s225
      %s243 = sphi 0, %s243
      %s245 = sphi 0, %s243
      %s246 = sphi 0, %s245
      %s260 = sphi 0, %s246
      %s264 = sphi 0, %s264
      %s266 = sphi 0, %s264
      %s267 = sphi 0, %s266
      %s281 = sphi 0, %s267
      %s285 = sphi 0, %s285
      %s287 = sphi 0, %s285
      %s288 = sphi 0, %s287
      %s302 = sphi 0, %s288
      %s306 = sphi 0, %s306
      %s308 = sphi 0, %s306
      %s309 = sphi 0, %s308
      %s323 = sphi 0, %s309
      %s327 = sphi 0, %s327
      %s329 = sphi 0, %s327
      %s330 = sphi 0, %s329
      %s344 = sphi 0, %s330
      %s348 = sphi 0, %s348
      %s350 = sphi 0, %s348
      %s351 = sphi 0, %s350
      %s365 = sphi 0, %s351
      %s369 = sphi 0, %s369
      %s371 = sphi 0, %s369
      %s372 = sphi 0, %s371
      %s386 = sphi 0, %s372
      %s390 = sphi 0, %s390
      %s392 = sphi 0, %s390
      %s393 = sphi 0, %s392
      %s407 = sphi 0, %s393
      %s411 = sphi 0, %s411
      %s413 = sphi 0, %s411
      %s414 = sphi 0, %s413
      %s428 = sphi 0, %s414
      %s434 = sphi 0, %s436
      %s437 = sphi 0, %s434
      %s438 = sphi 0, %s437
      %s454 = sphi 0, %s438
    $region4: #{tpu_custom_call.1} parent=1 // loop_header_branch
      %39 = sbr.rel (%p37) target = $region8
    $region5: #{tpu_custom_call.1} parent=1 // loop_body
      %s41 = ssub.s32 %s36, 1
      %s42 = ssub.s32 %s36, 2
      %s43 = sadd.s32 %s36, 1
      %s44 = ssub.s32 %s36, %s43
      %p45 = scmp.eq.s32.totalorder %s44, 0
      %s47 = sadd.s32 %s46, 1
      %s48 = scalar_select %p45, %s46, %s47
      %p51 = pneg %p45
      %p52 = scmp.eq.s32.totalorder %s36, 1
      %p53 = por %p51, %p52
      %p54 = scmp.ne.s32.totalorder %s46, %s49
      %p55 = scmp.eq.s32.totalorder %s36, 0
      %p56 = por %p54, %p55
      %p57 = scmp.ne.s32.totalorder %s46, %s49
      %p58 = scmp.eq.s32.totalorder %s41, 1
      %p59 = por %p57, %p58
      %p60 = scmp.ne.s32.totalorder %s49, %s50
      %p61 = scmp.eq.s32.totalorder %s41, 0
      %p62 = por %p60, %p61
      %p63 = scmp.ne.s32.totalorder %s49, %s50
      %p64 = scmp.eq.s32.totalorder %s42, 1
      %p65 = por %p63, %p64
      %p67 = scmp.ne.s32.totalorder %s50, %s66
      %p68 = scmp.eq.s32.totalorder %s42, 0
      %p69 = por %p67, %p68
      %s70 = ssub.s32 %s36, %s43
      %p71 = scmp.eq.s32.totalorder %s70, 0
      %s73 = sadd.s32 %s72, 1
      %s74 = scalar_select %p71, %s72, %s73
      %p77 = pneg %p71
      %p78 = scmp.eq.s32.totalorder %s36, 1
      %p79 = por %p77, %p78
      %p80 = scmp.ne.s32.totalorder %s72, %s75
      %p81 = scmp.eq.s32.totalorder %s36, 0
      %p82 = por %p80, %p81
      %p83 = scmp.ne.s32.totalorder %s72, %s75
      %p84 = scmp.eq.s32.totalorder %s41, 1
      %p85 = por %p83, %p84
      %p86 = scmp.ne.s32.totalorder %s75, %s76
      %p87 = scmp.eq.s32.totalorder %s41, 0
      %p88 = por %p86, %p87
      %p89 = scmp.ne.s32.totalorder %s75, %s76
      %p90 = scmp.eq.s32.totalorder %s42, 1
      %p91 = por %p89, %p90
      %p93 = scmp.ne.s32.totalorder %s76, %s92
      %p94 = scmp.eq.s32.totalorder %s42, 0
      %p95 = por %p93, %p94
      %s97 = sadd.s32 %s96, 1
      %p100 = scmp.eq.s32.totalorder %s36, 1
      %p101 = scmp.ne.s32.totalorder %s96, %s98
      %p102 = scmp.eq.s32.totalorder %s36, 0
      %p103 = por %p101, %p102
      %p104 = scmp.ne.s32.totalorder %s96, %s98
      %p105 = scmp.eq.s32.totalorder %s41, 1
      %p106 = por %p104, %p105
      %p107 = scmp.ne.s32.totalorder %s98, %s99
      %p108 = scmp.eq.s32.totalorder %s41, 0
      %p109 = por %p107, %p108
      %p110 = scmp.ne.s32.totalorder %s98, %s99
      %p111 = scmp.eq.s32.totalorder %s42, 1
      %p112 = por %p110, %p111
      %p114 = scmp.ne.s32.totalorder %s99, %s113
      %p115 = scmp.eq.s32.totalorder %s42, 0
      %p116 = por %p114, %p115
      %s118 = sadd.s32 %s117, 1
      %p121 = scmp.eq.s32.totalorder %s36, 1
      %p122 = scmp.ne.s32.totalorder %s117, %s119
      %p123 = scmp.eq.s32.totalorder %s36, 0
      %p124 = por %p122, %p123
      %p125 = scmp.ne.s32.totalorder %s117, %s119
      %p126 = scmp.eq.s32.totalorder %s41, 1
      %p127 = por %p125, %p126
      %p128 = scmp.ne.s32.totalorder %s119, %s120
      %p129 = scmp.eq.s32.totalorder %s41, 0
      %p130 = por %p128, %p129
      %p131 = scmp.ne.s32.totalorder %s119, %s120
      %p132 = scmp.eq.s32.totalorder %s42, 1
      %p133 = por %p131, %p132
      %p135 = scmp.ne.s32.totalorder %s120, %s134
      %p136 = scmp.eq.s32.totalorder %s42, 0
      %p137 = por %p135, %p136
      %s139 = sadd.s32 %s138, 1
      %p142 = scmp.eq.s32.totalorder %s36, 1
      %p143 = scmp.ne.s32.totalorder %s138, %s140
      %p144 = scmp.eq.s32.totalorder %s36, 0
      %p145 = por %p143, %p144
      %p146 = scmp.ne.s32.totalorder %s138, %s140
      %p147 = scmp.eq.s32.totalorder %s41, 1
      %p148 = por %p146, %p147
      %p149 = scmp.ne.s32.totalorder %s140, %s141
      %p150 = scmp.eq.s32.totalorder %s41, 0
      %p151 = por %p149, %p150
      %p152 = scmp.ne.s32.totalorder %s140, %s141
      %p153 = scmp.eq.s32.totalorder %s42, 1
      %p154 = por %p152, %p153
      %p156 = scmp.ne.s32.totalorder %s141, %s155
      %p157 = scmp.eq.s32.totalorder %s42, 0
      %p158 = por %p156, %p157
      %s160 = sadd.s32 %s159, 1
      %p163 = scmp.eq.s32.totalorder %s36, 1
      %p164 = scmp.ne.s32.totalorder %s159, %s161
      %p165 = scmp.eq.s32.totalorder %s36, 0
      %p166 = por %p164, %p165
      %p167 = scmp.ne.s32.totalorder %s159, %s161
      %p168 = scmp.eq.s32.totalorder %s41, 1
      %p169 = por %p167, %p168
      %p170 = scmp.ne.s32.totalorder %s161, %s162
      %p171 = scmp.eq.s32.totalorder %s41, 0
      %p172 = por %p170, %p171
      %p173 = scmp.ne.s32.totalorder %s161, %s162
      %p174 = scmp.eq.s32.totalorder %s42, 1
      %p175 = por %p173, %p174
      %p177 = scmp.ne.s32.totalorder %s162, %s176
      %p178 = scmp.eq.s32.totalorder %s42, 0
      %p179 = por %p177, %p178
      %s181 = sadd.s32 %s180, 1
      %p184 = scmp.eq.s32.totalorder %s36, 1
      %p185 = scmp.ne.s32.totalorder %s180, %s182
      %p186 = scmp.eq.s32.totalorder %s36, 0
      %p187 = por %p185, %p186
      %p188 = scmp.ne.s32.totalorder %s180, %s182
      %p189 = scmp.eq.s32.totalorder %s41, 1
      %p190 = por %p188, %p189
      %p191 = scmp.ne.s32.totalorder %s182, %s183
      %p192 = scmp.eq.s32.totalorder %s41, 0
      %p193 = por %p191, %p192
      %p194 = scmp.ne.s32.totalorder %s182, %s183
      %p195 = scmp.eq.s32.totalorder %s42, 1
      %p196 = por %p194, %p195
      %p198 = scmp.ne.s32.totalorder %s183, %s197
      %p199 = scmp.eq.s32.totalorder %s42, 0
      %p200 = por %p198, %p199
      %s202 = sadd.s32 %s201, 1
      %p205 = scmp.eq.s32.totalorder %s36, 1
      %p206 = scmp.ne.s32.totalorder %s201, %s203
      %p207 = scmp.eq.s32.totalorder %s36, 0
      %p208 = por %p206, %p207
      %p209 = scmp.ne.s32.totalorder %s201, %s203
      %p210 = scmp.eq.s32.totalorder %s41, 1
      %p211 = por %p209, %p210
      %p212 = scmp.ne.s32.totalorder %s203, %s204
      %p213 = scmp.eq.s32.totalorder %s41, 0
      %p214 = por %p212, %p213
      %p215 = scmp.ne.s32.totalorder %s203, %s204
      %p216 = scmp.eq.s32.totalorder %s42, 1
      %p217 = por %p215, %p216
      %p219 = scmp.ne.s32.totalorder %s204, %s218
      %p220 = scmp.eq.s32.totalorder %s42, 0
      %p221 = por %p219, %p220
      %s223 = sadd.s32 %s222, 1
      %p226 = scmp.eq.s32.totalorder %s36, 1
      %p227 = scmp.ne.s32.totalorder %s222, %s224
      %p228 = scmp.eq.s32.totalorder %s36, 0
      %p229 = por %p227, %p228
      %p230 = scmp.ne.s32.totalorder %s222, %s224
      %p231 = scmp.eq.s32.totalorder %s41, 1
      %p232 = por %p230, %p231
      %p233 = scmp.ne.s32.totalorder %s224, %s225
      %p234 = scmp.eq.s32.totalorder %s41, 0
      %p235 = por %p233, %p234
      %p236 = scmp.ne.s32.totalorder %s224, %s225
      %p237 = scmp.eq.s32.totalorder %s42, 1
      %p238 = por %p236, %p237
      %p240 = scmp.ne.s32.totalorder %s225, %s239
      %p241 = scmp.eq.s32.totalorder %s42, 0
      %p242 = por %p240, %p241
      %s244 = sadd.s32 %s243, 1
      %p247 = scmp.eq.s32.totalorder %s36, 1
      %p248 = scmp.ne.s32.totalorder %s243, %s245
      %p249 = scmp.eq.s32.totalorder %s36, 0
      %p250 = por %p248, %p249
      %p251 = scmp.ne.s32.totalorder %s243, %s245
      %p252 = scmp.eq.s32.totalorder %s41, 1
      %p253 = por %p251, %p252
      %p254 = scmp.ne.s32.totalorder %s245, %s246
      %p255 = scmp.eq.s32.totalorder %s41, 0
      %p256 = por %p254, %p255
      %p257 = scmp.ne.s32.totalorder %s245, %s246
      %p258 = scmp.eq.s32.totalorder %s42, 1
      %p259 = por %p257, %p258
      %p261 = scmp.ne.s32.totalorder %s246, %s260
      %p262 = scmp.eq.s32.totalorder %s42, 0
      %p263 = por %p261, %p262
      %s265 = sadd.s32 %s264, 1
      %p268 = scmp.eq.s32.totalorder %s36, 1
      %p269 = scmp.ne.s32.totalorder %s264, %s266
      %p270 = scmp.eq.s32.totalorder %s36, 0
      %p271 = por %p269, %p270
      %p272 = scmp.ne.s32.totalorder %s264, %s266
      %p273 = scmp.eq.s32.totalorder %s41, 1
      %p274 = por %p272, %p273
      %p275 = scmp.ne.s32.totalorder %s266, %s267
      %p276 = scmp.eq.s32.totalorder %s41, 0
      %p277 = por %p275, %p276
      %p278 = scmp.ne.s32.totalorder %s266, %s267
      %p279 = scmp.eq.s32.totalorder %s42, 1
      %p280 = por %p278, %p279
      %p282 = scmp.ne.s32.totalorder %s267, %s281
      %p283 = scmp.eq.s32.totalorder %s42, 0
      %p284 = por %p282, %p283
      %s286 = sadd.s32 %s285, 1
      %p289 = scmp.eq.s32.totalorder %s36, 1
      %p290 = scmp.ne.s32.totalorder %s285, %s287
      %p291 = scmp.eq.s32.totalorder %s36, 0
      %p292 = por %p290, %p291
      %p293 = scmp.ne.s32.totalorder %s285, %s287
      %p294 = scmp.eq.s32.totalorder %s41, 1
      %p295 = por %p293, %p294
      %p296 = scmp.ne.s32.totalorder %s287, %s288
      %p297 = scmp.eq.s32.totalorder %s41, 0
      %p298 = por %p296, %p297
      %p299 = scmp.ne.s32.totalorder %s287, %s288
      %p300 = scmp.eq.s32.totalorder %s42, 1
      %p301 = por %p299, %p300
      %p303 = scmp.ne.s32.totalorder %s288, %s302
      %p304 = scmp.eq.s32.totalorder %s42, 0
      %p305 = por %p303, %p304
      %s307 = sadd.s32 %s306, 1
      %p310 = scmp.eq.s32.totalorder %s36, 1
      %p311 = scmp.ne.s32.totalorder %s306, %s308
      %p312 = scmp.eq.s32.totalorder %s36, 0
      %p313 = por %p311, %p312
      %p314 = scmp.ne.s32.totalorder %s306, %s308
      %p315 = scmp.eq.s32.totalorder %s41, 1
      %p316 = por %p314, %p315
      %p317 = scmp.ne.s32.totalorder %s308, %s309
      %p318 = scmp.eq.s32.totalorder %s41, 0
      %p319 = por %p317, %p318
      %p320 = scmp.ne.s32.totalorder %s308, %s309
      %p321 = scmp.eq.s32.totalorder %s42, 1
      %p322 = por %p320, %p321
      %p324 = scmp.ne.s32.totalorder %s309, %s323
      %p325 = scmp.eq.s32.totalorder %s42, 0
      %p326 = por %p324, %p325
      %s328 = sadd.s32 %s327, 1
      %p331 = scmp.eq.s32.totalorder %s36, 1
      %p332 = scmp.ne.s32.totalorder %s327, %s329
      %p333 = scmp.eq.s32.totalorder %s36, 0
      %p334 = por %p332, %p333
      %p335 = scmp.ne.s32.totalorder %s327, %s329
      %p336 = scmp.eq.s32.totalorder %s41, 1
      %p337 = por %p335, %p336
      %p338 = scmp.ne.s32.totalorder %s329, %s330
      %p339 = scmp.eq.s32.totalorder %s41, 0
      %p340 = por %p338, %p339
      %p341 = scmp.ne.s32.totalorder %s329, %s330
      %p342 = scmp.eq.s32.totalorder %s42, 1
      %p343 = por %p341, %p342
      %p345 = scmp.ne.s32.totalorder %s330, %s344
      %p346 = scmp.eq.s32.totalorder %s42, 0
      %p347 = por %p345, %p346
      %s349 = sadd.s32 %s348, 1
      %p352 = scmp.eq.s32.totalorder %s36, 1
      %p353 = scmp.ne.s32.totalorder %s348, %s350
      %p354 = scmp.eq.s32.totalorder %s36, 0
      %p355 = por %p353, %p354
      %p356 = scmp.ne.s32.totalorder %s348, %s350
      %p357 = scmp.eq.s32.totalorder %s41, 1
      %p358 = por %p356, %p357
      %p359 = scmp.ne.s32.totalorder %s350, %s351
      %p360 = scmp.eq.s32.totalorder %s41, 0
      %p361 = por %p359, %p360
      %p362 = scmp.ne.s32.totalorder %s350, %s351
      %p363 = scmp.eq.s32.totalorder %s42, 1
      %p364 = por %p362, %p363
      %p366 = scmp.ne.s32.totalorder %s351, %s365
      %p367 = scmp.eq.s32.totalorder %s42, 0
      %p368 = por %p366, %p367
      %s370 = sadd.s32 %s369, 1
      %p373 = scmp.eq.s32.totalorder %s36, 1
      %p374 = scmp.ne.s32.totalorder %s369, %s371
      %p375 = scmp.eq.s32.totalorder %s36, 0
      %p376 = por %p374, %p375
      %p377 = scmp.ne.s32.totalorder %s369, %s371
      %p378 = scmp.eq.s32.totalorder %s41, 1
      %p379 = por %p377, %p378
      %p380 = scmp.ne.s32.totalorder %s371, %s372
      %p381 = scmp.eq.s32.totalorder %s41, 0
      %p382 = por %p380, %p381
      %p383 = scmp.ne.s32.totalorder %s371, %s372
      %p384 = scmp.eq.s32.totalorder %s42, 1
      %p385 = por %p383, %p384
      %p387 = scmp.ne.s32.totalorder %s372, %s386
      %p388 = scmp.eq.s32.totalorder %s42, 0
      %p389 = por %p387, %p388
      %s391 = sadd.s32 %s390, 1
      %p394 = scmp.eq.s32.totalorder %s36, 1
      %p395 = scmp.ne.s32.totalorder %s390, %s392
      %p396 = scmp.eq.s32.totalorder %s36, 0
      %p397 = por %p395, %p396
      %p398 = scmp.ne.s32.totalorder %s390, %s392
      %p399 = scmp.eq.s32.totalorder %s41, 1
      %p400 = por %p398, %p399
      %p401 = scmp.ne.s32.totalorder %s392, %s393
      %p402 = scmp.eq.s32.totalorder %s41, 0
      %p403 = por %p401, %p402
      %p404 = scmp.ne.s32.totalorder %s392, %s393
      %p405 = scmp.eq.s32.totalorder %s42, 1
      %p406 = por %p404, %p405
      %p408 = scmp.ne.s32.totalorder %s393, %s407
      %p409 = scmp.eq.s32.totalorder %s42, 0
      %p410 = por %p408, %p409
      %s412 = sadd.s32 %s411, 1
      %p415 = scmp.eq.s32.totalorder %s36, 1
      %p416 = scmp.ne.s32.totalorder %s411, %s413
      %p417 = scmp.eq.s32.totalorder %s36, 0
      %p418 = por %p416, %p417
      %p419 = scmp.ne.s32.totalorder %s411, %s413
      %p420 = scmp.eq.s32.totalorder %s41, 1
      %p421 = por %p419, %p420
      %p422 = scmp.ne.s32.totalorder %s413, %s414
      %p423 = scmp.eq.s32.totalorder %s41, 0
      %p424 = por %p422, %p423
      %p425 = scmp.ne.s32.totalorder %s413, %s414
      %p426 = scmp.eq.s32.totalorder %s42, 1
      %p427 = por %p425, %p426
      %p429 = scmp.ne.s32.totalorder %s414, %s428
      %p430 = scmp.eq.s32.totalorder %s42, 0
      %p431 = por %p429, %p430
      %s432 = ssub.s32 %s36, %s43
      %p433 = scmp.eq.s32.totalorder %s432, 0
      %s435 = sadd.s32 %s434, 1
      %s436 = scalar_select %p433, %s434, %s435
      %p439 = pneg %p433
      %p440 = scmp.eq.s32.totalorder %s36, 1
      %p441 = por %p439, %p440
      %p442 = scmp.ne.s32.totalorder %s434, %s437
      %p443 = scmp.eq.s32.totalorder %s36, 0
      %p444 = por %p442, %p443
      %p445 = scmp.ne.s32.totalorder %s434, %s437
      %p446 = scmp.eq.s32.totalorder %s41, 1
      %p447 = por %p445, %p446
      %p448 = scmp.ne.s32.totalorder %s437, %s438
      %p449 = scmp.eq.s32.totalorder %s41, 0
      %p450 = por %p448, %p449
      %p451 = scmp.ne.s32.totalorder %s437, %s438
      %p452 = scmp.eq.s32.totalorder %s42, 1
      %p453 = por %p451, %p452
      %p455 = scmp.ne.s32.totalorder %s438, %s454
      %p456 = scmp.eq.s32.totalorder %s42, 0
      %p457 = por %p455, %p456
      %p458 = scmp.le.s32.totalorder 1, %s36
      %p459 = scmp.lt.s32.totalorder %s36, 3
      %p460 = pnand %p458, %p459
      %p461 = pneg %p460
      // Predicated region
      $region9: #{tpu_custom_call.1} parent=5 // pred_check
        _
      $region10: #{tpu_custom_call.1} parent=5 // pred_check_branch
        %463 = sbr.rel (%p460) target = $region12
      $region11: #{tpu_custom_call.1} parent=5 // pred_region
        %s464 = ssub.s32 %s36, 1
        // Predicated region
        $region13: #{tpu_custom_call.1} parent=11 // pred_check
          %p465 = pneg %p109
        $region14: #{tpu_custom_call.1} parent=11 // pred_check_branch
          %467 = sbr.rel (%p465) target = $region16
        $region15: #{tpu_custom_call.1} parent=11 // pred_region
          _
        $region16: #{tpu_custom_call.1} parent=11 // pred_fallthru
          _
        // Predicated region
        $region17: #{tpu_custom_call.1} parent=11 // pred_check
          %p468 = pneg %p130
        $region18: #{tpu_custom_call.1} parent=11 // pred_check_branch
          %470 = sbr.rel (%p468) target = $region20
        $region19: #{tpu_custom_call.1} parent=11 // pred_region
          %s472 = ssub.s32 16, 16
          %473 = vsyncadd [#allocation6], %s472
          %s475 = sshll.u32 [#allocation7], 4
          %s476 = int_to_ptr.vmem [resolvable:$true] %s475
          %478 = dma.hbm_to_vmem [thread:$0]  %s3, 16, %s476, [#allocation6]
        $region20: #{tpu_custom_call.1} parent=11 // pred_fallthru
          _
        // Predicated region
        $region21: #{tpu_custom_call.1} parent=11 // pred_check
          %p479 = pneg %p151
        $region22: #{tpu_custom_call.1} parent=11 // pred_check_branch
          %481 = sbr.rel (%p479) target = $region24
        $region23: #{tpu_custom_call.1} parent=11 // pred_region
          _
        $region24: #{tpu_custom_call.1} parent=11 // pred_fallthru
          _
        // Predicated region
        $region25: #{tpu_custom_call.1} parent=11 // pred_check
          %p482 = pneg %p172
        $region26: #{tpu_custom_call.1} parent=11 // pred_check_branch
          %484 = sbr.rel (%p482) target = $region28
        $region27: #{tpu_custom_call.1} parent=11 // pred_region
          %s486 = ssub.s32 32, 32
          %487 = vsyncadd [#allocation9], %s486
          %s488 = sshll.u32 [#allocation8], 4
          %s489 = int_to_ptr.vmem [resolvable:$true] %s488
          %494 = dma.hbm_to_vmem [thread:$0]  %s5, 32, %s489, [#allocation9], 16, 16, 1
        $region28: #{tpu_custom_call.1} parent=11 // pred_fallthru
          _
        // Predicated region
        $region29: #{tpu_custom_call.1} parent=11 // pred_check
          %p495 = pneg %p193
        $region30: #{tpu_custom_call.1} parent=11 // pred_check_branch
          %497 = sbr.rel (%p495) target = $region32
        $region31: #{tpu_custom_call.1} parent=11 // pred_region
          _
        $region32: #{tpu_custom_call.1} parent=11 // pred_fallthru
          _
        // Predicated region
        $region33: #{tpu_custom_call.1} parent=11 // pred_check
          %p498 = pneg %p214
        $region34: #{tpu_custom_call.1} parent=11 // pred_check_branch
          %500 = sbr.rel (%p498) target = $region36
        $region35: #{tpu_custom_call.1} parent=11 // pred_region
          %s502 = ssub.s32 32, 32
          %503 = vsyncadd [#allocation9], %s502
          %s504 = sshll.u32 [#allocation10], 4
          %s505 = int_to_ptr.vmem [resolvable:$true] %s504
          %510 = dma.hbm_to_vmem [thread:$0]  %s7, 32, %s505, [#allocation9], 16, 16, 1
        $region36: #{tpu_custom_call.1} parent=11 // pred_fallthru
          _
        // Predicated region
        $region37: #{tpu_custom_call.1} parent=11 // pred_check
          %p511 = pneg %p235
        $region38: #{tpu_custom_call.1} parent=11 // pred_check_branch
          %513 = sbr.rel (%p511) target = $region40
        $region39: #{tpu_custom_call.1} parent=11 // pred_region
          %s515 = ssub.s32 32, 32
          %516 = vsyncadd [#allocation12], %s515
          %s517 = sshll.u32 [#allocation11], 4
          %s518 = int_to_ptr.vmem [resolvable:$true] %s517
          %523 = dma.hbm_to_vmem [thread:$0]  %s8, 32, %s518, [#allocation12], 16, 16, 1
        $region40: #{tpu_custom_call.1} parent=11 // pred_fallthru
          _
        // Predicated region
        $region41: #{tpu_custom_call.1} parent=11 // pred_check
          %p524 = pneg %p256
        $region42: #{tpu_custom_call.1} parent=11 // pred_check_branch
          %526 = sbr.rel (%p524) target = $region44
        $region43: #{tpu_custom_call.1} parent=11 // pred_region
          %s528 = ssub.s32 32, 32
          %529 = vsyncadd [#allocation12], %s528
          %s530 = sshll.u32 [#allocation13], 4
          %s531 = int_to_ptr.vmem [resolvable:$true] %s530
          %536 = dma.hbm_to_vmem [thread:$0]  %s9, 32, %s531, [#allocation12], 16, 16, 1
        $region44: #{tpu_custom_call.1} parent=11 // pred_fallthru
          _
        // Predicated region
        $region45: #{tpu_custom_call.1} parent=11 // pred_check
          %p537 = pneg %p277
        $region46: #{tpu_custom_call.1} parent=11 // pred_check_branch
          %539 = sbr.rel (%p537) target = $region48
        $region47: #{tpu_custom_call.1} parent=11 // pred_region
          _
        $region48: #{tpu_custom_call.1} parent=11 // pred_fallthru
          _
        // Predicated region
        $region49: #{tpu_custom_call.1} parent=11 // pred_check
          %p540 = pneg %p298
        $region50: #{tpu_custom_call.1} parent=11 // pred_check_branch
          %542 = sbr.rel (%p540) target = $region52
        $region51: #{tpu_custom_call.1} parent=11 // pred_region
          %s544 = ssub.s32 32, 32
          %545 = vsyncadd [#allocation15], %s544
          %s546 = sshll.u32 [#allocation14], 4
          %s547 = int_to_ptr.vmem [resolvable:$true] %s546
          %552 = dma.hbm_to_vmem [thread:$0]  %s11, 32, %s547, [#allocation15], 16, 16, 1
        $region52: #{tpu_custom_call.1} parent=11 // pred_fallthru
          _
        // Predicated region
        $region53: #{tpu_custom_call.1} parent=11 // pred_check
          %p553 = pneg %p319
        $region54: #{tpu_custom_call.1} parent=11 // pred_check_branch
          %555 = sbr.rel (%p553) target = $region56
        $region55: #{tpu_custom_call.1} parent=11 // pred_region
          _
        $region56: #{tpu_custom_call.1} parent=11 // pred_fallthru
          _
        // Predicated region
        $region57: #{tpu_custom_call.1} parent=11 // pred_check
          %p556 = pneg %p340
        $region58: #{tpu_custom_call.1} parent=11 // pred_check_branch
          %558 = sbr.rel (%p556) target = $region60
        $region59: #{tpu_custom_call.1} parent=11 // pred_region
          %s560 = ssub.s32 32, 32
          %561 = vsyncadd [#allocation15], %s560
          %s562 = sshll.u32 [#allocation16], 4
          %s563 = int_to_ptr.vmem [resolvable:$true] %s562
          %568 = dma.hbm_to_vmem [thread:$0]  %s13, 32, %s563, [#allocation15], 16, 16, 1
        $region60: #{tpu_custom_call.1} parent=11 // pred_fallthru
          _
        // Predicated region
        $region61: #{tpu_custom_call.1} parent=11 // pred_check
          %p569 = pneg %p361
        $region62: #{tpu_custom_call.1} parent=11 // pred_check_branch
          %571 = sbr.rel (%p569) target = $region64
        $region63: #{tpu_custom_call.1} parent=11 // pred_region
          _
        $region64: #{tpu_custom_call.1} parent=11 // pred_fallthru
          _
        // Predicated region
        $region65: #{tpu_custom_call.1} parent=11 // pred_check
          %p572 = pneg %p382
        $region66: #{tpu_custom_call.1} parent=11 // pred_check_branch
          %574 = sbr.rel (%p572) target = $region68
        $region67: #{tpu_custom_call.1} parent=11 // pred_region
          _
        $region68: #{tpu_custom_call.1} parent=11 // pred_fallthru
          _
        // Predicated region
        $region69: #{tpu_custom_call.1} parent=11 // pred_check
          %p575 = pneg %p403
        $region70: #{tpu_custom_call.1} parent=11 // pred_check_branch
          %577 = sbr.rel (%p575) target = $region72
        $region71: #{tpu_custom_call.1} parent=11 // pred_region
          _
        $region72: #{tpu_custom_call.1} parent=11 // pred_fallthru
          _
        // Predicated region
        $region73: #{tpu_custom_call.1} parent=11 // pred_check
          %p578 = pneg %p424
        $region74: #{tpu_custom_call.1} parent=11 // pred_check_branch
          %580 = sbr.rel (%p578) target = $region76
        $region75: #{tpu_custom_call.1} parent=11 // pred_region
          _
        $region76: #{tpu_custom_call.1} parent=11 // pred_fallthru
          _
      $region12: #{tpu_custom_call.1} parent=5 // pred_fallthru
        _
      %p581 = scmp.lt.s32.totalorder %s36, 2
      // Predicated region
      $region77: #{tpu_custom_call.1} parent=5 // pred_check
        %p582 = pneg %p581
      $region78: #{tpu_custom_call.1} parent=5 // pred_check_branch
        %584 = sbr.rel (%p582) target = $region80
      $region79: #{tpu_custom_call.1} parent=5 // pred_region
        // Predicated region
        $region81: #{tpu_custom_call.1} parent=79 // pred_check
          %p585 = pneg %p56
        $region82: #{tpu_custom_call.1} parent=79 // pred_check_branch
          %587 = sbr.rel (%p585) target = $region84
        $region83: #{tpu_custom_call.1} parent=79 // pred_region
          %s588 = sand.u32 %s46, 1
          %s589 = scalar_lea.sflag [#allocation3], %s588
          %s590 = sand.u32 %s46, 1
          %s591 = smul.addr %s590, 8
          %s592 = scalar_lea.vmem [#allocation2], %s591
          %s594 = ssub.s32 128, 128
          %595 = vsyncadd %s589, %s594
          %s596 = smul.addr %s36, 128
          %s597 = scalar_lea.hbm %s0, %s596
          %s599 = sshll.u32 %s592, 4
          %s600 = int_to_ptr.vmem [resolvable:$true] %s599
          %602 = dma.hbm_to_vmem [thread:$0]  %s597, 128, %s600, %s589
        $region84: #{tpu_custom_call.1} parent=79 // pred_fallthru
          _
        // Predicated region
        $region85: #{tpu_custom_call.1} parent=79 // pred_check
          %p603 = pneg %p82
        $region86: #{tpu_custom_call.1} parent=79 // pred_check_branch
          %605 = sbr.rel (%p603) target = $region88
        $region87: #{tpu_custom_call.1} parent=79 // pred_region
          %s606 = sand.u32 %s36, 1
          %s607 = scalar_lea.sflag [#allocation6], %s606
          %s608 = sand.u32 %s72, 1
          %s609 = scalar_lea.vmem [#allocation5], %s608
          %s611 = ssub.s32 16, 16
          %612 = vsyncadd %s607, %s611
          %s613 = smul.addr %s36, 16
          %s614 = scalar_lea.hbm %s1, %s613
          %s616 = sshll.u32 %s609, 4
          %s617 = int_to_ptr.vmem [resolvable:$true] %s616
          %619 = dma.hbm_to_vmem [thread:$0]  %s614, 16, %s617, %s607
        $region88: #{tpu_custom_call.1} parent=79 // pred_fallthru
          _
      $region80: #{tpu_custom_call.1} parent=5 // pred_fallthru
        _
      %p620 = scmp.le.s32.totalorder 1, %s36
      %p621 = scmp.lt.s32.totalorder %s36, 3
      %p622 = pnand %p620, %p621
      %p623 = pneg %p622
      // Predicated region
      $region89: #{tpu_custom_call.1} parent=5 // pred_check
        _
      $region90: #{tpu_custom_call.1} parent=5 // pred_check_branch
        %625 = sbr.rel (%p622) target = $region92
      $region91: #{tpu_custom_call.1} parent=5 // pred_region
        %s626 = ssub.s32 %s36, 1
        %s627 = sand.u32 %s49, 1
        %s628 = scalar_lea.sflag [#allocation3], %s627
        %s629 = sand.u32 %s49, 1
        %s630 = smul.addr %s629, 8
        %s631 = scalar_lea.vmem [#allocation2], %s630
        // Predicated region
        $region93: #{tpu_custom_call.1} parent=91 // pred_check
          %p632 = pneg %p62
        $region94: #{tpu_custom_call.1} parent=91 // pred_check_branch
          %634 = sbr.rel (%p632) target = $region96
        $region95: #{tpu_custom_call.1} parent=91 // pred_region
          %635 = dma.done %s628, 128
        $region96: #{tpu_custom_call.1} parent=91 // pred_fallthru
          _
        %s636 = sand.u32 %s41, 1
        %s637 = scalar_lea.sflag [#allocation6], %s636
        %s638 = sand.u32 %s75, 1
        %s639 = scalar_lea.vmem [#allocation5], %s638
        // Predicated region
        $region97: #{tpu_custom_call.1} parent=91 // pred_check
          %p640 = pneg %p88
        $region98: #{tpu_custom_call.1} parent=91 // pred_check_branch
          %642 = sbr.rel (%p640) target = $region100
        $region99: #{tpu_custom_call.1} parent=91 // pred_region
          %643 = dma.done %s637, 16
        $region100: #{tpu_custom_call.1} parent=91 // pred_fallthru
          _
        // Predicated region
        $region101: #{tpu_custom_call.1} parent=91 // pred_check
          %p644 = pneg %p130
        $region102: #{tpu_custom_call.1} parent=91 // pred_check_branch
          %646 = sbr.rel (%p644) target = $region104
        $region103: #{tpu_custom_call.1} parent=91 // pred_region
          %647 = dma.done [#allocation6], 16
        $region104: #{tpu_custom_call.1} parent=91 // pred_fallthru
          _
        // Predicated region
        $region105: #{tpu_custom_call.1} parent=91 // pred_check
          %p648 = pneg %p172
        $region106: #{tpu_custom_call.1} parent=91 // pred_check_branch
          %650 = sbr.rel (%p648) target = $region108
        $region107: #{tpu_custom_call.1} parent=91 // pred_region
          %651 = dma.done [#allocation9], 32
        $region108: #{tpu_custom_call.1} parent=91 // pred_fallthru
          _
        // Predicated region
        $region109: #{tpu_custom_call.1} parent=91 // pred_check
          %p652 = pneg %p214
        $region110: #{tpu_custom_call.1} parent=91 // pred_check_branch
          %654 = sbr.rel (%p652) target = $region112
        $region111: #{tpu_custom_call.1} parent=91 // pred_region
          %655 = dma.done [#allocation9], 32
        $region112: #{tpu_custom_call.1} parent=91 // pred_fallthru
          _
        // Predicated region
        $region113: #{tpu_custom_call.1} parent=91 // pred_check
          %p656 = pneg %p235
        $region114: #{tpu_custom_call.1} parent=91 // pred_check_branch
          %658 = sbr.rel (%p656) target = $region116
        $region115: #{tpu_custom_call.1} parent=91 // pred_region
          %659 = dma.done [#allocation12], 32
        $region116: #{tpu_custom_call.1} parent=91 // pred_fallthru
          _
        // Predicated region
        $region117: #{tpu_custom_call.1} parent=91 // pred_check
          %p660 = pneg %p256
        $region118: #{tpu_custom_call.1} parent=91 // pred_check_branch
          %662 = sbr.rel (%p660) target = $region120
        $region119: #{tpu_custom_call.1} parent=91 // pred_region
          %663 = dma.done [#allocation12], 32
        $region120: #{tpu_custom_call.1} parent=91 // pred_fallthru
          _
        // Predicated region
        $region121: #{tpu_custom_call.1} parent=91 // pred_check
          %p664 = pneg %p298
        $region122: #{tpu_custom_call.1} parent=91 // pred_check_branch
          %666 = sbr.rel (%p664) target = $region124
        $region123: #{tpu_custom_call.1} parent=91 // pred_region
          %667 = dma.done [#allocation15], 32
        $region124: #{tpu_custom_call.1} parent=91 // pred_fallthru
          _
        // Predicated region
        $region125: #{tpu_custom_call.1} parent=91 // pred_check
          %p668 = pneg %p340
        $region126: #{tpu_custom_call.1} parent=91 // pred_check_branch
          %670 = sbr.rel (%p668) target = $region128
        $region127: #{tpu_custom_call.1} parent=91 // pred_region
          %671 = dma.done [#allocation15], 32
        $region128: #{tpu_custom_call.1} parent=91 // pred_fallthru
          _
        %s672 = sand.u32 %s49, 1
        %s673 = scalar_lea.sflag [#allocation3], %s672
        %s674 = sand.u32 %s49, 1
        %s675 = smul.addr %s674, 8
        %s676 = scalar_lea.vmem [#allocation2], %s675
        %p677 = pneg %p62
        %p678 = pneg %p59
        %s679 = sand.u32 %s41, 1
        %s680 = scalar_lea.sflag [#allocation6], %s679
        %s681 = sand.u32 %s75, 1
        %s682 = scalar_lea.vmem [#allocation5], %s681
        %p683 = pneg %p88
        %p684 = pneg %p85
        %p685 = pneg %p109
        %p686 = pneg %p106
        %p687 = pneg %p130
        %p688 = pneg %p127
        %p689 = pneg %p151
        %p690 = pneg %p148
        %p691 = pneg %p172
        %p692 = pneg %p169
        %p693 = pneg %p193
        %p694 = pneg %p190
        %p695 = pneg %p214
        %p696 = pneg %p211
        %p697 = pneg %p235
        %p698 = pneg %p232
        %p699 = pneg %p256
        %p700 = pneg %p253
        %p701 = pneg %p277
        %p702 = pneg %p274
        %p703 = pneg %p298
        %p704 = pneg %p295
        %p705 = pneg %p319
        %p706 = pneg %p316
        %p707 = pneg %p340
        %p708 = pneg %p337
        %p709 = pneg %p361
        %p710 = pneg %p358
        %p711 = pneg %p382
        %p712 = pneg %p379
        %p713 = pneg %p403
        %p714 = pneg %p400
        %p715 = pneg %p424
        %p716 = pneg %p421
        %p717 = pneg %p450
        %p718 = pneg %p447
        %s719 = sand.u32 %s437, 1
        %s720 = scalar_lea.sflag [#allocation4], %s719
        %s721 = sand.u32 %s437, 1
        %s722 = scalar_lea.vmem [#allocation17], %s721
        %v724 = vld [vmem:[%s631] sm:$0xff]
        %v725 = vld [vmem:[%s639] sm:$0x1]
        %v726 = vld [vmem:[%s2] sm:$0x1]
        %v727 = vld [vmem:[#allocation7] sm:$0x1]
        %vm728 = vcmask 261120
        %v729 = vsel %vm728, %v724, 0.0
        %730 = vadd.xlane.f32.xlu0 %v729
        %v731 = vpop.xlane.xlu0 %730
        %v732 = vrcp.pop 32.0
        %v733 = vmul.f32 %v731, %v732
        %v734 = vsub.f32 %v724, %v733
        %v735 = vmul.f32 %v734, %v734
        %v736 = vsel %vm728, %v735, 0.0
        %737 = vadd.xlane.f32.xlu0 %v736
        %v738 = vpop.xlane.xlu0 %737
        %v739 = vmul.f32 %v738, %v732
        %v740 = vadd.f32 %v739, 1e-12
        %v741 = vrsqrt.pop %v740
        %v742 = vmul.f32 %v734, %v741
        %v744 = vlaneseq
        %v745 = vshrl.u32 %v744, 7
        %v746 = vsub.s32 0, %v745
        %v747 = vrot.slane %v726, %v746
        %v749 = vmul.f32 %v742, %v747
        %v751 = vlaneseq
        %v752 = vshrl.u32 %v751, 7
        %v753 = vsub.s32 0, %v752
        %v754 = vrot.slane %v727, %v753
        %v756 = vadd.f32 %v749, %v754
        %v757 = vld [vmem:[%s4] sm:$0xf]
        %v758 = vld [vmem:[%s4 + $0x4] sm:$0xf]
        %v759 = vld [vmem:[%s4 + $0x8] sm:$0xf]
        %v760 = vld [vmem:[%s4 + $0xc] sm:$0xf]
        %v761 = vld [vmem:[#allocation8] sm:$0x1]
        %v762 = vpack.c.bf16 %v756, %v756
        %v764 = vlaneseq
        %v765 = vshrl.u32 %v764, 7
        %v766 = vsub.s32 0, %v765
        %v767 = vrot.slane %v761, %v766
        %v773 = vunpack.c.l.b16 %v757
        %v774 = vunpack.c.l.b16 %v758
        %v775 = vunpack.c.l.b16 %v759
        %v776 = vunpack.c.l.b16 %v760
        %v777 = vpack.c.b16 %v774, %v773
        %v778 = vpack.c.b16 %v776, %v775
        %v782 = vsel %vm728, %v762, 0
        %784 = vmatprep.subr.bf16.mxu0 0
        %785 = vmatpush1.bf16.msra.mxu0 %v777
        %786 = vmatprep.subr.bf16.mxu0 0
        %787 = vmatpush1.bf16.msra.mxu0 %v778
        %788 = vmatprep.subr.bf16.mxu0 0
        %789 = vmatpush1.bf16.msra.mxu0 0
        %790 = vmatprep.subr.bf16.mxu0 0
        %791 = vmatpush1.bf16.msra.mxu0 0
        %792 = vmatprep.subr.bf16.mxu0 0
        %793 = vmatpush1.bf16.msra.mxu0 0
        %794 = vmatprep.subr.bf16.mxu0 0
        %795 = vmatpush1.bf16.msra.mxu0 0
        %796 = vmatprep.subr.bf16.mxu0 0
        %797 = vmatpush1.bf16.msra.mxu0 0
        %798 = vmatprep.subr.bf16.mxu0 0
        %799 = vmatpush1.bf16.msra.mxu0 0
        %800 = vmatprep.subr.bf16.mxu0 0
        %801 = vmatpush1.bf16.msra.mxu0 0
        %802 = vmatprep.subr.bf16.mxu0 0
        %803 = vmatpush1.bf16.msra.mxu0 0
        %804 = vmatprep.subr.bf16.mxu0 0
        %805 = vmatpush1.bf16.msra.mxu0 0
        %806 = vmatprep.subr.bf16.mxu0 0
        %807 = vmatpush1.bf16.msra.mxu0 0
        %808 = vmatprep.subr.bf16.mxu0 0
        %809 = vmatpush1.bf16.msra.mxu0 0
        %810 = vmatprep.subr.bf16.mxu0 0
        %811 = vmatpush1.bf16.msra.mxu0 0
        %812 = vmatprep.subr.bf16.mxu0 0
        %813 = vmatpush1.bf16.msra.mxu0 0
        %814 = vmatprep.subr.bf16.mxu0 0
        %815 = vmatpush1.bf16.msra.mxu0 0
        %816 = vmatprep.mubr.bf16.mxu0 0
        %817 = vmatmul.mubr.bf16.gmra.mrb[0].mxu0 %v782
        %v818 = vpop.f32.mrb[0].mxu0
        %v819 = vadd.f32 %v767, %v818
        %v820 = vpop.f32.mrb[0].mxu0
        %v821 = vpop.f32.mrb[0].mxu0
        %v822 = vpop.f32.mrb[0].mxu0
        %823 = vdwg.mxu0
        %v824 = vld [vmem:[%s6] sm:$0xf]
        %v825 = vld [vmem:[%s6 + $0x4] sm:$0xf]
        %v826 = vld [vmem:[%s6 + $0x8] sm:$0xf]
        %v827 = vld [vmem:[%s6 + $0xc] sm:$0xf]
        %v828 = vld [vmem:[#allocation10] sm:$0x1]
        %v829 = vpack.c.bf16 %v819, %v819
        %831 = vrot.lane.b32.xlu0 %v829, 96
        %v832 = vpop.permute.xlu0 %831
        %vm833 = vcmask 64512
        %v835 = vsel %vm833, %v829, 0
        %v838 = vsel %vm833, %v832, 0
        %840 = vmatprep.subr.bf16.mxu0 0
        %841 = vmatpush1.bf16.xpose.msra.mxu0 %v838
        %842 = vmatprep.subr.bf16.mxu0 0
        %843 = vmatpush1.bf16.xpose.msra.mxu0 0
        %844 = vmatprep.subr.bf16.mxu0 0
        %845 = vmatpush1.bf16.xpose.msra.mxu0 0
        %846 = vmatprep.subr.bf16.mxu0 0
        %847 = vmatpush1.bf16.xpose.msra.mxu0 0
        %848 = vmatprep.subr.bf16.mxu0 0
        %849 = vmatpush1.bf16.xpose.msra.mxu0 0
        %850 = vmatprep.subr.bf16.mxu0 0
        %851 = vmatpush1.bf16.xpose.msra.mxu0 0
        %852 = vmatprep.subr.bf16.mxu0 0
        %853 = vmatpush1.bf16.xpose.msra.mxu0 0
        %854 = vmatprep.subr.bf16.mxu0 0
        %855 = vmatpush1.bf16.xpose.msra.mxu0 0
        %856 = vmatprep.subr.bf16.mxu0 0
        %857 = vmatpush1.bf16.xpose.msra.mxu0 0
        %858 = vmatprep.subr.bf16.mxu0 0
        %859 = vmatpush1.bf16.xpose.msra.mxu0 0
        %860 = vmatprep.subr.bf16.mxu0 0
        %861 = vmatpush1.bf16.xpose.msra.mxu0 0
        %862 = vmatprep.subr.bf16.mxu0 0
        %863 = vmatpush1.bf16.xpose.msra.mxu0 0
        %864 = vmatprep.subr.bf16.mxu0 0
        %865 = vmatpush1.bf16.xpose.msra.mxu0 0
        %866 = vmatprep.subr.bf16.mxu0 0
        %867 = vmatpush1.bf16.xpose.msra.mxu0 0
        %868 = vmatprep.subr.bf16.mxu0 0
        %869 = vmatpush1.bf16.xpose.msra.mxu0 0
        %870 = vmatprep.subr.bf16.mxu0 0
        %871 = vmatpush1.bf16.xpose.msra.mxu0 0
        %872 = vmatprep.mubr.bf16.mxu0 0
        %873 = vmatmul.mubr.bf16.gmra.mrb[0].mxu0 %v835
        %v874 = vpop.f32.mrb[0].mxu0
        %v875 = vadd.f32 0.0, %v874
        %v876 = vpop.f32.mrb[0].mxu0
        %v877 = vpop.f32.mrb[0].mxu0
        %v878 = vpop.f32.mrb[0].mxu0
        %879 = vdwg.mxu0
        %v880 = vmul.f32 %v875, 0.35355338
        %v882 = vlaneseq
        %v883 = vshrl.u32 %v882, 7
        %v884 = vsub.s32 0, %v883
        %v885 = vrot.slane %v725, %v884
        %v887 = vadd.f32 %v880, %v885
        %v888 = vsel %vm833, %v887, -inf
        %889 = vmax.xlane.f32.xlu0 %v888
        %v890 = vpop.xlane.xlu0 %889
        %v891 = vsub.f32 %v887, %v890
        %v892 = vmul.f32 %v891, 1.442695
        %v893 = vpow.pop %v892
        %v894 = vsel %vm833, %v893, 0.0
        %895 = vadd.xlane.f32.xlu0 %v894
        %v896 = vpop.xlane.xlu0 %895
        %v897 = vrcp.pop %v896
        %v898 = vmul.f32 %v893, %v897
        %v899 = vpack.c.bf16 %v898, %v898
        %900 = vrot.lane.b32.xlu0 %v829, 64
        %v901 = vpop.permute.xlu0 %900
        %v903 = vsel %vm833, %v899, 0
        %vm905 = vcmask 1043456
        %v907 = vsel %vm905, %v901, 0
        %909 = vmatprep.subr.bf16.mxu0 0
        %910 = vmatpush1.bf16.msra.mxu0 %v907
        %911 = vmatprep.subr.bf16.mxu0 0
        %912 = vmatpush1.bf16.msra.mxu0 0
        %913 = vmatprep.subr.bf16.mxu0 0
        %914 = vmatpush1.bf16.msra.mxu0 0
        %915 = vmatprep.subr.bf16.mxu0 0
        %916 = vmatpush1.bf16.msra.mxu0 0
        %917 = vmatprep.subr.bf16.mxu0 0
        %918 = vmatpush1.bf16.msra.mxu0 0
        %919 = vmatprep.subr.bf16.mxu0 0
        %920 = vmatpush1.bf16.msra.mxu0 0
        %921 = vmatprep.subr.bf16.mxu0 0
        %922 = vmatpush1.bf16.msra.mxu0 0
        %923 = vmatprep.subr.bf16.mxu0 0
        %924 = vmatpush1.bf16.msra.mxu0 0
        %925 = vmatprep.subr.bf16.mxu0 0
        %926 = vmatpush1.bf16.msra.mxu0 0
        %927 = vmatprep.subr.bf16.mxu0 0
        %928 = vmatpush1.bf16.msra.mxu0 0
        %929 = vmatprep.subr.bf16.mxu0 0
        %930 = vmatpush1.bf16.msra.mxu0 0
        %931 = vmatprep.subr.bf16.mxu0 0
        %932 = vmatpush1.bf16.msra.mxu0 0
        %933 = vmatprep.subr.bf16.mxu0 0
        %934 = vmatpush1.bf16.msra.mxu0 0
        %935 = vmatprep.subr.bf16.mxu0 0
        %936 = vmatpush1.bf16.msra.mxu0 0
        %937 = vmatprep.subr.bf16.mxu0 0
        %938 = vmatpush1.bf16.msra.mxu0 0
        %939 = vmatprep.subr.bf16.mxu0 0
        %940 = vmatpush1.bf16.msra.mxu0 0
        %941 = vmatprep.mubr.bf16.mxu0 0
        %942 = vmatmul.mubr.bf16.gmra.mrb[0].mxu0 %v903
        %v943 = vpop.f32.mrb[0].mxu0
        %v944 = vadd.f32 0.0, %v943
        %v945 = vpop.f32.mrb[0].mxu0
        %v946 = vpop.f32.mrb[0].mxu0
        %v947 = vpop.f32.mrb[0].mxu0
        %948 = vdwg.mxu0
        %v949 = vpack.c.bf16 %v944, %v944
        %v951 = vsel %vm833, %v949, 0
        %v954 = vsel %vm905, %v824, 0
        %956 = vmatprep.subr.bf16.mxu0 0
        %957 = vmatpush1.bf16.msra.mxu0 %v954
        %958 = vmatprep.subr.bf16.mxu0 0
        %959 = vmatpush1.bf16.msra.mxu0 0
        %960 = vmatprep.subr.bf16.mxu0 0
        %961 = vmatpush1.bf16.msra.mxu0 0
        %962 = vmatprep.subr.bf16.mxu0 0
        %963 = vmatpush1.bf16.msra.mxu0 0
        %964 = vmatprep.subr.bf16.mxu0 0
        %965 = vmatpush1.bf16.msra.mxu0 0
        %966 = vmatprep.subr.bf16.mxu0 0
        %967 = vmatpush1.bf16.msra.mxu0 0
        %968 = vmatprep.subr.bf16.mxu0 0
        %969 = vmatpush1.bf16.msra.mxu0 0
        %970 = vmatprep.subr.bf16.mxu0 0
        %971 = vmatpush1.bf16.msra.mxu0 0
        %972 = vmatprep.subr.bf16.mxu0 0
        %973 = vmatpush1.bf16.msra.mxu0 0
        %974 = vmatprep.subr.bf16.mxu0 0
        %975 = vmatpush1.bf16.msra.mxu0 0
        %976 = vmatprep.subr.bf16.mxu0 0
        %977 = vmatpush1.bf16.msra.mxu0 0
        %978 = vmatprep.subr.bf16.mxu0 0
        %979 = vmatpush1.bf16.msra.mxu0 0
        %980 = vmatprep.subr.bf16.mxu0 0
        %981 = vmatpush1.bf16.msra.mxu0 0
        %982 = vmatprep.subr.bf16.mxu0 0
        %983 = vmatpush1.bf16.msra.mxu0 0
        %984 = vmatprep.subr.bf16.mxu0 0
        %985 = vmatpush1.bf16.msra.mxu0 0
        %986 = vmatprep.subr.bf16.mxu0 0
        %987 = vmatpush1.bf16.msra.mxu0 0
        %988 = vmatprep.mubr.bf16.mxu0 0
        %989 = vmatmul.mubr.bf16.gmra.mrb[0].mxu0 %v951
        %v990 = vpop.f32.mrb[0].mxu0
        %v991 = vadd.f32 0.0, %v990
        %v992 = vpop.f32.mrb[0].mxu0
        %v993 = vpop.f32.mrb[0].mxu0
        %v994 = vpop.f32.mrb[0].mxu0
        %995 = vdwg.mxu0
        %v997 = vlaneseq
        %v998 = vshrl.u32 %v997, 7
        %v999 = vsub.s32 0, %v998
        %v1000 = vrot.slane %v828, %v999
        %v1002 = vadd.f32 %v1000, %v991
        %1003 = vrot.lane.b32.xlu0 %v829, 120
        %v1004 = vpop.permute.xlu0 %1003
        %1005 = vrot.lane.b32.xlu0 %v829, 88
        %v1006 = vpop.permute.xlu0 %1005
        %v1008 = vsel %vm833, %v1004, 0
        %v1011 = vsel %vm833, %v1006, 0
        %1013 = vmatprep.subr.bf16.mxu0 0
        %1014 = vmatpush1.bf16.xpose.msra.mxu0 %v1011
        %1015 = vmatprep.subr.bf16.mxu0 0
        %1016 = vmatpush1.bf16.xpose.msra.mxu0 0
        %1017 = vmatprep.subr.bf16.mxu0 0
        %1018 = vmatpush1.bf16.xpose.msra.mxu0 0
        %1019 = vmatprep.subr.bf16.mxu0 0
        %1020 = vmatpush1.bf16.xpose.msra.mxu0 0
        %1021 = vmatprep.subr.bf16.mxu0 0
        %1022 = vmatpush1.bf16.xpose.msra.mxu0 0
        %1023 = vmatprep.subr.bf16.mxu0 0
        %1024 = vmatpush1.bf16.xpose.msra.mxu0 0
        %1025 = vmatprep.subr.bf16.mxu0 0
        %1026 = vmatpush1.bf16.xpose.msra.mxu0 0
        %1027 = vmatprep.subr.bf16.mxu0 0
        %1028 = vmatpush1.bf16.xpose.msra.mxu0 0
        %1029 = vmatprep.subr.bf16.mxu0 0
        %1030 = vmatpush1.bf16.xpose.msra.mxu0 0
        %1031 = vmatprep.subr.bf16.mxu0 0
        %1032 = vmatpush1.bf16.xpose.msra.mxu0 0
        %1033 = vmatprep.subr.bf16.mxu0 0
        %1034 = vmatpush1.bf16.xpose.msra.mxu0 0
        %1035 = vmatprep.subr.bf16.mxu0 0
        %1036 = vmatpush1.bf16.xpose.msra.mxu0 0
        %1037 = vmatprep.subr.bf16.mxu0 0
        %1038 = vmatpush1.bf16.xpose.msra.mxu0 0
        %1039 = vmatprep.subr.bf16.mxu0 0
        %1040 = vmatpush1.bf16.xpose.msra.mxu0 0
        %1041 = vmatprep.subr.bf16.mxu0 0
        %1042 = vmatpush1.bf16.xpose.msra.mxu0 0
        %1043 = vmatprep.subr.bf16.mxu0 0
        %1044 = vmatpush1.bf16.xpose.msra.mxu0 0
        %1045 = vmatprep.mubr.bf16.mxu0 0
        %1046 = vmatmul.mubr.bf16.gmra.mrb[0].mxu0 %v1008
        %v1047 = vpop.f32.mrb[0].mxu0
        %v1048 = vadd.f32 0.0, %v1047
        %v1049 = vpop.f32.mrb[0].mxu0
        %v1050 = vpop.f32.mrb[0].mxu0
        %v1051 = vpop.f32.mrb[0].mxu0
        %1052 = vdwg.mxu0
        %v1053 = vmul.f32 %v1048, 0.35355338
        %v1054 = vadd.f32 %v1053, %v885
        %v1055 = vsel %vm833, %v1054, -inf
        %1056 = vmax.xlane.f32.xlu0 %v1055
        %v1057 = vpop.xlane.xlu0 %1056
        %v1058 = vsub.f32 %v1054, %v1057
        %v1059 = vmul.f32 %v1058, 1.442695
        %v1060 = vpow.pop %v1059
        %v1061 = vsel %vm833, %v1060, 0.0
        %1062 = vadd.xlane.f32.xlu0 %v1061
        %v1063 = vpop.xlane.xlu0 %1062
        %v1064 = vrcp.pop %v1063
        %v1065 = vmul.f32 %v1060, %v1064
        %v1066 = vpack.c.bf16 %v1065, %v1065
        %1067 = vrot.lane.b32.xlu0 %v829, 56
        %v1068 = vpop.permute.xlu0 %1067
        %v1070 = vsel %vm833, %v1066, 0
        %v1073 = vsel %vm905, %v1068, 0
        %1075 = vmatprep.subr.bf16.mxu0 0
        %1076 = vmatpush1.bf16.msra.mxu0 %v1073
        %1077 = vmatprep.subr.bf16.mxu0 0
        %1078 = vmatpush1.bf16.msra.mxu0 0
        %1079 = vmatprep.subr.bf16.mxu0 0
        %1080 = vmatpush1.bf16.msra.mxu0 0
        %1081 = vmatprep.subr.bf16.mxu0 0
        %1082 = vmatpush1.bf16.msra.mxu0 0
        %1083 = vmatprep.subr.bf16.mxu0 0
        %1084 = vmatpush1.bf16.msra.mxu0 0
        %1085 = vmatprep.subr.bf16.mxu0 0
        %1086 = vmatpush1.bf16.msra.mxu0 0
        %1087 = vmatprep.subr.bf16.mxu0 0
        %1088 = vmatpush1.bf16.msra.mxu0 0
        %1089 = vmatprep.subr.bf16.mxu0 0
        %1090 = vmatpush1.bf16.msra.mxu0 0
        %1091 = vmatprep.subr.bf16.mxu0 0
        %1092 = vmatpush1.bf16.msra.mxu0 0
        %1093 = vmatprep.subr.bf16.mxu0 0
        %1094 = vmatpush1.bf16.msra.mxu0 0
        %1095 = vmatprep.subr.bf16.mxu0 0
        %1096 = vmatpush1.bf16.msra.mxu0 0
        %1097 = vmatprep.subr.bf16.mxu0 0
        %1098 = vmatpush1.bf16.msra.mxu0 0
        %1099 = vmatprep.subr.bf16.mxu0 0
        %1100 = vmatpush1.bf16.msra.mxu0 0
        %1101 = vmatprep.subr.bf16.mxu0 0
        %1102 = vmatpush1.bf16.msra.mxu0 0
        %1103 = vmatprep.subr.bf16.mxu0 0
        %1104 = vmatpush1.bf16.msra.mxu0 0
        %1105 = vmatprep.subr.bf16.mxu0 0
        %1106 = vmatpush1.bf16.msra.mxu0 0
        %1107 = vmatprep.mubr.bf16.mxu0 0
        %1108 = vmatmul.mubr.bf16.gmra.mrb[0].mxu0 %v1070
        %v1109 = vpop.f32.mrb[0].mxu0
        %v1110 = vadd.f32 0.0, %v1109
        %v1111 = vpop.f32.mrb[0].mxu0
        %v1112 = vpop.f32.mrb[0].mxu0
        %v1113 = vpop.f32.mrb[0].mxu0
        %1114 = vdwg.mxu0
        %v1115 = vpack.c.bf16 %v1110, %v1110
        %v1117 = vsel %vm833, %v1115, 0
        %v1120 = vsel %vm905, %v825, 0
        %1122 = vmatprep.subr.bf16.mxu0 0
        %1123 = vmatpush1.bf16.msra.mxu0 %v1120
        %1124 = vmatprep.subr.bf16.mxu0 0
        %1125 = vmatpush1.bf16.msra.mxu0 0
        %1126 = vmatprep.subr.bf16.mxu0 0
        %1127 = vmatpush1.bf16.msra.mxu0 0
        %1128 = vmatprep.subr.bf16.mxu0 0
        %1129 = vmatpush1.bf16.msra.mxu0 0
        %1130 = vmatprep.subr.bf16.mxu0 0
        %1131 = vmatpush1.bf16.msra.mxu0 0
        %1132 = vmatprep.subr.bf16.mxu0 0
        %1133 = vmatpush1.bf16.msra.mxu0 0
        %1134 = vmatprep.subr.bf16.mxu0 0
        %1135 = vmatpush1.bf16.msra.mxu0 0
        %1136 = vmatprep.subr.bf16.mxu0 0
        %1137 = vmatpush1.bf16.msra.mxu0 0
        %1138 = vmatprep.subr.bf16.mxu0 0
        %1139 = vmatpush1.bf16.msra.mxu0 0
        %1140 = vmatprep.subr.bf16.mxu0 0
        %1141 = vmatpush1.bf16.msra.mxu0 0
        %1142 = vmatprep.subr.bf16.mxu0 0
        %1143 = vmatpush1.bf16.msra.mxu0 0
        %1144 = vmatprep.subr.bf16.mxu0 0
        %1145 = vmatpush1.bf16.msra.mxu0 0
        %1146 = vmatprep.subr.bf16.mxu0 0
        %1147 = vmatpush1.bf16.msra.mxu0 0
        %1148 = vmatprep.subr.bf16.mxu0 0
        %1149 = vmatpush1.bf16.msra.mxu0 0
        %1150 = vmatprep.subr.bf16.mxu0 0
        %1151 = vmatpush1.bf16.msra.mxu0 0
        %1152 = vmatprep.subr.bf16.mxu0 0
        %1153 = vmatpush1.bf16.msra.mxu0 0
        %1154 = vmatprep.mubr.bf16.mxu0 0
        %1155 = vmatmul.mubr.bf16.gmra.mrb[0].mxu0 %v1117
        %v1156 = vpop.f32.mrb[0].mxu0
        %v1157 = vadd.f32 0.0, %v1156
        %v1158 = vpop.f32.mrb[0].mxu0
        %v1159 = vpop.f32.mrb[0].mxu0
        %v1160 = vpop.f32.mrb[0].mxu0
        %1161 = vdwg.mxu0
        %v1162 = vadd.f32 %v1002, %v1157
        %1163 = vrot.lane.b32.xlu0 %v829, 112
        %v1164 = vpop.permute.xlu0 %1163
        %1165 = vrot.lane.b32.xlu0 %v829, 80
        %v1166 = vpop.permute.xlu0 %1165
        %v1168 = vsel %vm833, %v1164, 0
        %v1171 = vsel %vm833, %v1166, 0
        %1173 = vmatprep.subr.bf16.mxu0 0
        %1174 = vmatpush1.bf16.xpose.msra.mxu0 %v1171
        %1175 = vmatprep.subr.bf16.mxu0 0
        %1176 = vmatpush1.bf16.xpose.msra.mxu0 0
        %1177 = vmatprep.subr.bf16.mxu0 0
        %1178 = vmatpush1.bf16.xpose.msra.mxu0 0
        %1179 = vmatprep.subr.bf16.mxu0 0
        %1180 = vmatpush1.bf16.xpose.msra.mxu0 0
        %1181 = vmatprep.subr.bf16.mxu0 0
        %1182 = vmatpush1.bf16.xpose.msra.mxu0 0
        %1183 = vmatprep.subr.bf16.mxu0 0
        %1184 = vmatpush1.bf16.xpose.msra.mxu0 0
        %1185 = vmatprep.subr.bf16.mxu0 0
        %1186 = vmatpush1.bf16.xpose.msra.mxu0 0
        %1187 = vmatprep.subr.bf16.mxu0 0
        %1188 = vmatpush1.bf16.xpose.msra.mxu0 0
        %1189 = vmatprep.subr.bf16.mxu0 0
        %1190 = vmatpush1.bf16.xpose.msra.mxu0 0
        %1191 = vmatprep.subr.bf16.mxu0 0
        %1192 = vmatpush1.bf16.xpose.msra.mxu0 0
        %1193 = vmatprep.subr.bf16.mxu0 0
        %1194 = vmatpush1.bf16.xpose.msra.mxu0 0
        %1195 = vmatprep.subr.bf16.mxu0 0
        %1196 = vmatpush1.bf16.xpose.msra.mxu0 0
        %1197 = vmatprep.subr.bf16.mxu0 0
        %1198 = vmatpush1.bf16.xpose.msra.mxu0 0
        %1199 = vmatprep.subr.bf16.mxu0 0
        %1200 = vmatpush1.bf16.xpose.msra.mxu0 0
        %1201 = vmatprep.subr.bf16.mxu0 0
        %1202 = vmatpush1.bf16.xpose.msra.mxu0 0
        %1203 = vmatprep.subr.bf16.mxu0 0
        %1204 = vmatpush1.bf16.xpose.msra.mxu0 0
        %1205 = vmatprep.mubr.bf16.mxu0 0
        %1206 = vmatmul.mubr.bf16.gmra.mrb[0].mxu0 %v1168
        %v1207 = vpop.f32.mrb[0].mxu0
        %v1208 = vadd.f32 0.0, %v1207
        %v1209 = vpop.f32.mrb[0].mxu0
        %v1210 = vpop.f32.mrb[0].mxu0
        %v1211 = vpop.f32.mrb[0].mxu0
        %1212 = vdwg.mxu0
        %v1213 = vmul.f32 %v1208, 0.35355338
        %v1214 = vadd.f32 %v1213, %v885
        %v1215 = vsel %vm833, %v1214, -inf
        %1216 = vmax.xlane.f32.xlu0 %v1215
        %v1217 = vpop.xlane.xlu0 %1216
        %v1218 = vsub.f32 %v1214, %v1217
        %v1219 = vmul.f32 %v1218, 1.442695
        %v1220 = vpow.pop %v1219
        %v1221 = vsel %vm833, %v1220, 0.0
        %1222 = vadd.xlane.f32.xlu0 %v1221
        %v1223 = vpop.xlane.xlu0 %1222
        %v1224 = vrcp.pop %v1223
        %v1225 = vmul.f32 %v1220, %v1224
        %v1226 = vpack.c.bf16 %v1225, %v1225
        %1227 = vrot.lane.b32.xlu0 %v829, 48
        %v1228 = vpop.permute.xlu0 %1227
        %v1230 = vsel %vm833, %v1226, 0
        %v1233 = vsel %vm905, %v1228, 0
        %1235 = vmatprep.subr.bf16.mxu0 0
        %1236 = vmatpush1.bf16.msra.mxu0 %v1233
        %1237 = vmatprep.subr.bf16.mxu0 0
        %1238 = vmatpush1.bf16.msra.mxu0 0
        %1239 = vmatprep.subr.bf16.mxu0 0
        %1240 = vmatpush1.bf16.msra.mxu0 0
        %1241 = vmatprep.subr.bf16.mxu0 0
        %1242 = vmatpush1.bf16.msra.mxu0 0
        %1243 = vmatprep.subr.bf16.mxu0 0
        %1244 = vmatpush1.bf16.msra.mxu0 0
        %1245 = vmatprep.subr.bf16.mxu0 0
        %1246 = vmatpush1.bf16.msra.mxu0 0
        %1247 = vmatprep.subr.bf16.mxu0 0
        %1248 = vmatpush1.bf16.msra.mxu0 0
        %1249 = vmatprep.subr.bf16.mxu0 0
        %1250 = vmatpush1.bf16.msra.mxu0 0
        %1251 = vmatprep.subr.bf16.mxu0 0
        %1252 = vmatpush1.bf16.msra.mxu0 0
        %1253 = vmatprep.subr.bf16.mxu0 0
        %1254 = vmatpush1.bf16.msra.mxu0 0
        %1255 = vmatprep.subr.bf16.mxu0 0
        %1256 = vmatpush1.bf16.msra.mxu0 0
        %1257 = vmatprep.subr.bf16.mxu0 0
        %1258 = vmatpush1.bf16.msra.mxu0 0
        %1259 = vmatprep.subr.bf16.mxu0 0
        %1260 = vmatpush1.bf16.msra.mxu0 0
        %1261 = vmatprep.subr.bf16.mxu0 0
        %1262 = vmatpush1.bf16.msra.mxu0 0
        %1263 = vmatprep.subr.bf16.mxu0 0
        %1264 = vmatpush1.bf16.msra.mxu0 0
        %1265 = vmatprep.subr.bf16.mxu0 0
        %1266 = vmatpush1.bf16.msra.mxu0 0
        %1267 = vmatprep.mubr.bf16.mxu0 0
        %1268 = vmatmul.mubr.bf16.gmra.mrb[0].mxu0 %v1230
        %v1269 = vpop.f32.mrb[0].mxu0
        %v1270 = vadd.f32 0.0, %v1269
        %v1271 = vpop.f32.mrb[0].mxu0
        %v1272 = vpop.f32.mrb[0].mxu0
        %v1273 = vpop.f32.mrb[0].mxu0
        %1274 = vdwg.mxu0
        %v1275 = vpack.c.bf16 %v1270, %v1270
        %v1277 = vsel %vm833, %v1275, 0
        %v1280 = vsel %vm905, %v826, 0
        %1282 = vmatprep.subr.bf16.mxu0 0
        %1283 = vmatpush1.bf16.msra.mxu0 %v1280
        %1284 = vmatprep.subr.bf16.mxu0 0
        %1285 = vmatpush1.bf16.msra.mxu0 0
        %1286 = vmatprep.subr.bf16.mxu0 0
        %1287 = vmatpush1.bf16.msra.mxu0 0
        %1288 = vmatprep.subr.bf16.mxu0 0
        %1289 = vmatpush1.bf16.msra.mxu0 0
        %1290 = vmatprep.subr.bf16.mxu0 0
        %1291 = vmatpush1.bf16.msra.mxu0 0
        %1292 = vmatprep.subr.bf16.mxu0 0
        %1293 = vmatpush1.bf16.msra.mxu0 0
        %1294 = vmatprep.subr.bf16.mxu0 0
        %1295 = vmatpush1.bf16.msra.mxu0 0
        %1296 = vmatprep.subr.bf16.mxu0 0
        %1297 = vmatpush1.bf16.msra.mxu0 0
        %1298 = vmatprep.subr.bf16.mxu0 0
        %1299 = vmatpush1.bf16.msra.mxu0 0
        %1300 = vmatprep.subr.bf16.mxu0 0
        %1301 = vmatpush1.bf16.msra.mxu0 0
        %1302 = vmatprep.subr.bf16.mxu0 0
        %1303 = vmatpush1.bf16.msra.mxu0 0
        %1304 = vmatprep.subr.bf16.mxu0 0
        %1305 = vmatpush1.bf16.msra.mxu0 0
        %1306 = vmatprep.subr.bf16.mxu0 0
        %1307 = vmatpush1.bf16.msra.mxu0 0
        %1308 = vmatprep.subr.bf16.mxu0 0
        %1309 = vmatpush1.bf16.msra.mxu0 0
        %1310 = vmatprep.subr.bf16.mxu0 0
        %1311 = vmatpush1.bf16.msra.mxu0 0
        %1312 = vmatprep.subr.bf16.mxu0 0
        %1313 = vmatpush1.bf16.msra.mxu0 0
        %1314 = vmatprep.mubr.bf16.mxu0 0
        %1315 = vmatmul.mubr.bf16.gmra.mrb[0].mxu0 %v1277
        %v1316 = vpop.f32.mrb[0].mxu0
        %v1317 = vadd.f32 0.0, %v1316
        %v1318 = vpop.f32.mrb[0].mxu0
        %v1319 = vpop.f32.mrb[0].mxu0
        %v1320 = vpop.f32.mrb[0].mxu0
        %1321 = vdwg.mxu0
        %v1322 = vadd.f32 %v1162, %v1317
        %1323 = vrot.lane.b32.xlu0 %v829, 104
        %v1324 = vpop.permute.xlu0 %1323
        %1325 = vrot.lane.b32.xlu0 %v829, 72
        %v1326 = vpop.permute.xlu0 %1325
        %v1328 = vsel %vm833, %v1324, 0
        %v1331 = vsel %vm833, %v1326, 0
        %1333 = vmatprep.subr.bf16.mxu0 0
        %1334 = vmatpush1.bf16.xpose.msra.mxu0 %v1331
        %1335 = vmatprep.subr.bf16.mxu0 0
        %1336 = vmatpush1.bf16.xpose.msra.mxu0 0
        %1337 = vmatprep.subr.bf16.mxu0 0
        %1338 = vmatpush1.bf16.xpose.msra.mxu0 0
        %1339 = vmatprep.subr.bf16.mxu0 0
        %1340 = vmatpush1.bf16.xpose.msra.mxu0 0
        %1341 = vmatprep.subr.bf16.mxu0 0
        %1342 = vmatpush1.bf16.xpose.msra.mxu0 0
        %1343 = vmatprep.subr.bf16.mxu0 0
        %1344 = vmatpush1.bf16.xpose.msra.mxu0 0
        %1345 = vmatprep.subr.bf16.mxu0 0
        %1346 = vmatpush1.bf16.xpose.msra.mxu0 0
        %1347 = vmatprep.subr.bf16.mxu0 0
        %1348 = vmatpush1.bf16.xpose.msra.mxu0 0
        %1349 = vmatprep.subr.bf16.mxu0 0
        %1350 = vmatpush1.bf16.xpose.msra.mxu0 0
        %1351 = vmatprep.subr.bf16.mxu0 0
        %1352 = vmatpush1.bf16.xpose.msra.mxu0 0
        %1353 = vmatprep.subr.bf16.mxu0 0
        %1354 = vmatpush1.bf16.xpose.msra.mxu0 0
        %1355 = vmatprep.subr.bf16.mxu0 0
        %1356 = vmatpush1.bf16.xpose.msra.mxu0 0
        %1357 = vmatprep.subr.bf16.mxu0 0
        %1358 = vmatpush1.bf16.xpose.msra.mxu0 0
        %1359 = vmatprep.subr.bf16.mxu0 0
        %1360 = vmatpush1.bf16.xpose.msra.mxu0 0
        %1361 = vmatprep.subr.bf16.mxu0 0
        %1362 = vmatpush1.bf16.xpose.msra.mxu0 0
        %1363 = vmatprep.subr.bf16.mxu0 0
        %1364 = vmatpush1.bf16.xpose.msra.mxu0 0
        %1365 = vmatprep.mubr.bf16.mxu0 0
        %1366 = vmatmul.mubr.bf16.gmra.mrb[0].mxu0 %v1328
        %v1367 = vpop.f32.mrb[0].mxu0
        %v1368 = vadd.f32 0.0, %v1367
        %v1369 = vpop.f32.mrb[0].mxu0
        %v1370 = vpop.f32.mrb[0].mxu0
        %v1371 = vpop.f32.mrb[0].mxu0
        %1372 = vdwg.mxu0
        %v1373 = vmul.f32 %v1368, 0.35355338
        %v1374 = vadd.f32 %v1373, %v885
        %v1375 = vsel %vm833, %v1374, -inf
        %1376 = vmax.xlane.f32.xlu0 %v1375
        %v1377 = vpop.xlane.xlu0 %1376
        %v1378 = vsub.f32 %v1374, %v1377
        %v1379 = vmul.f32 %v1378, 1.442695
        %v1380 = vpow.pop %v1379
        %v1381 = vsel %vm833, %v1380, 0.0
        %1382 = vadd.xlane.f32.xlu0 %v1381
        %v1383 = vpop.xlane.xlu0 %1382
        %v1384 = vrcp.pop %v1383
        %v1385 = vmul.f32 %v1380, %v1384
        %v1386 = vpack.c.bf16 %v1385, %v1385
        %1387 = vrot.lane.b32.xlu0 %v829, 40
        %v1388 = vpop.permute.xlu0 %1387
        %v1390 = vsel %vm833, %v1386, 0
        %v1393 = vsel %vm905, %v1388, 0
        %1395 = vmatprep.subr.bf16.mxu0 0
        %1396 = vmatpush1.bf16.msra.mxu0 %v1393
        %1397 = vmatprep.subr.bf16.mxu0 0
        %1398 = vmatpush1.bf16.msra.mxu0 0
        %1399 = vmatprep.subr.bf16.mxu0 0
        %1400 = vmatpush1.bf16.msra.mxu0 0
        %1401 = vmatprep.subr.bf16.mxu0 0
        %1402 = vmatpush1.bf16.msra.mxu0 0
        %1403 = vmatprep.subr.bf16.mxu0 0
        %1404 = vmatpush1.bf16.msra.mxu0 0
        %1405 = vmatprep.subr.bf16.mxu0 0
        %1406 = vmatpush1.bf16.msra.mxu0 0
        %1407 = vmatprep.subr.bf16.mxu0 0
        %1408 = vmatpush1.bf16.msra.mxu0 0
        %1409 = vmatprep.subr.bf16.mxu0 0
        %1410 = vmatpush1.bf16.msra.mxu0 0
        %1411 = vmatprep.subr.bf16.mxu0 0
        %1412 = vmatpush1.bf16.msra.mxu0 0
        %1413 = vmatprep.subr.bf16.mxu0 0
        %1414 = vmatpush1.bf16.msra.mxu0 0
        %1415 = vmatprep.subr.bf16.mxu0 0
        %1416 = vmatpush1.bf16.msra.mxu0 0
        %1417 = vmatprep.subr.bf16.mxu0 0
        %1418 = vmatpush1.bf16.msra.mxu0 0
        %1419 = vmatprep.subr.bf16.mxu0 0
        %1420 = vmatpush1.bf16.msra.mxu0 0
        %1421 = vmatprep.subr.bf16.mxu0 0
        %1422 = vmatpush1.bf16.msra.mxu0 0
        %1423 = vmatprep.subr.bf16.mxu0 0
        %1424 = vmatpush1.bf16.msra.mxu0 0
        %1425 = vmatprep.subr.bf16.mxu0 0
        %1426 = vmatpush1.bf16.msra.mxu0 0
        %1427 = vmatprep.mubr.bf16.mxu0 0
        %1428 = vmatmul.mubr.bf16.gmra.mrb[0].mxu0 %v1390
        %v1429 = vpop.f32.mrb[0].mxu0
        %v1430 = vadd.f32 0.0, %v1429
        %v1431 = vpop.f32.mrb[0].mxu0
        %v1432 = vpop.f32.mrb[0].mxu0
        %v1433 = vpop.f32.mrb[0].mxu0
        %1434 = vdwg.mxu0
        %v1435 = vpack.c.bf16 %v1430, %v1430
        %v1437 = vsel %vm833, %v1435, 0
        %v1440 = vsel %vm905, %v827, 0
        %1442 = vmatprep.subr.bf16.mxu0 0
        %1443 = vmatpush1.bf16.msra.mxu0 %v1440
        %1444 = vmatprep.subr.bf16.mxu0 0
        %1445 = vmatpush1.bf16.msra.mxu0 0
        %1446 = vmatprep.subr.bf16.mxu0 0
        %1447 = vmatpush1.bf16.msra.mxu0 0
        %1448 = vmatprep.subr.bf16.mxu0 0
        %1449 = vmatpush1.bf16.msra.mxu0 0
        %1450 = vmatprep.subr.bf16.mxu0 0
        %1451 = vmatpush1.bf16.msra.mxu0 0
        %1452 = vmatprep.subr.bf16.mxu0 0
        %1453 = vmatpush1.bf16.msra.mxu0 0
        %1454 = vmatprep.subr.bf16.mxu0 0
        %1455 = vmatpush1.bf16.msra.mxu0 0
        %1456 = vmatprep.subr.bf16.mxu0 0
        %1457 = vmatpush1.bf16.msra.mxu0 0
        %1458 = vmatprep.subr.bf16.mxu0 0
        %1459 = vmatpush1.bf16.msra.mxu0 0
        %1460 = vmatprep.subr.bf16.mxu0 0
        %1461 = vmatpush1.bf16.msra.mxu0 0
        %1462 = vmatprep.subr.bf16.mxu0 0
        %1463 = vmatpush1.bf16.msra.mxu0 0
        %1464 = vmatprep.subr.bf16.mxu0 0
        %1465 = vmatpush1.bf16.msra.mxu0 0
        %1466 = vmatprep.subr.bf16.mxu0 0
        %1467 = vmatpush1.bf16.msra.mxu0 0
        %1468 = vmatprep.subr.bf16.mxu0 0
        %1469 = vmatpush1.bf16.msra.mxu0 0
        %1470 = vmatprep.subr.bf16.mxu0 0
        %1471 = vmatpush1.bf16.msra.mxu0 0
        %1472 = vmatprep.subr.bf16.mxu0 0
        %1473 = vmatpush1.bf16.msra.mxu0 0
        %1474 = vmatprep.mubr.bf16.mxu0 0
        %1475 = vmatmul.mubr.bf16.gmra.mrb[0].mxu0 %v1437
        %v1476 = vpop.f32.mrb[0].mxu0
        %v1477 = vadd.f32 0.0, %v1476
        %v1478 = vpop.f32.mrb[0].mxu0
        %v1479 = vpop.f32.mrb[0].mxu0
        %v1480 = vpop.f32.mrb[0].mxu0
        %1481 = vdwg.mxu0
        %v1482 = vadd.f32 %v1322, %v1477
        %v1483 = vadd.f32 %v756, %v1482
        %v1484 = vld [vmem:[#allocation11] sm:$0x1]
        %v1485 = vld [vmem:[#allocation13] sm:$0x1]
        %v1486 = vsel %vm728, %v1483, 0.0
        %1487 = vadd.xlane.f32.xlu0 %v1486
        %v1488 = vpop.xlane.xlu0 %1487
        %v1489 = vmul.f32 %v1488, %v732
        %v1490 = vsub.f32 %v1483, %v1489
        %v1491 = vmul.f32 %v1490, %v1490
        %v1492 = vsel %vm728, %v1491, 0.0
        %1493 = vadd.xlane.f32.xlu0 %v1492
        %v1494 = vpop.xlane.xlu0 %1493
        %v1495 = vmul.f32 %v1494, %v732
        %v1496 = vadd.f32 %v1495, 1e-12
        %v1497 = vrsqrt.pop %v1496
        %v1498 = vmul.f32 %v1490, %v1497
        %v1500 = vlaneseq
        %v1501 = vshrl.u32 %v1500, 7
        %v1502 = vsub.s32 0, %v1501
        %v1503 = vrot.slane %v1484, %v1502
        %v1505 = vmul.f32 %v1498, %v1503
        %v1507 = vlaneseq
        %v1508 = vshrl.u32 %v1507, 7
        %v1509 = vsub.s32 0, %v1508
        %v1510 = vrot.slane %v1485, %v1509
        %v1512 = vadd.f32 %v1505, %v1510
        %v1513 = vld [vmem:[%s10] sm:$0xf]
        %v1514 = vld [vmem:[%s10 + $0x4] sm:$0xf]
        %v1515 = vld [vmem:[%s10 + $0x8] sm:$0xf]
        %v1516 = vld [vmem:[%s10 + $0xc] sm:$0xf]
        %v1517 = vld [vmem:[#allocation14] sm:$0x1]
        %v1518 = vpack.c.bf16 %v1512, %v1512
        %v1520 = vlaneseq
        %v1521 = vshrl.u32 %v1520, 7
        %v1522 = vsub.s32 0, %v1521
        %v1523 = vrot.slane %v1517, %v1522
        %v1529 = vunpack.c.l.b16 %v1513
        %v1530 = vunpack.c.l.b16 %v1514
        %v1531 = vunpack.c.l.b16 %v1515
        %v1532 = vunpack.c.l.b16 %v1516
        %v1533 = vpack.c.b16 %v1530, %v1529
        %v1534 = vpack.c.b16 %v1532, %v1531
        %v1538 = vsel %vm728, %v1518, 0
        %1540 = vmatprep.subr.bf16.mxu0 0
        %1541 = vmatpush1.bf16.msra.mxu0 %v1533
        %1542 = vmatprep.subr.bf16.mxu0 0
        %1543 = vmatpush1.bf16.msra.mxu0 %v1534
        %1544 = vmatprep.subr.bf16.mxu0 0
        %1545 = vmatpush1.bf16.msra.mxu0 0
        %1546 = vmatprep.subr.bf16.mxu0 0
        %1547 = vmatpush1.bf16.msra.mxu0 0
        %1548 = vmatprep.subr.bf16.mxu0 0
        %1549 = vmatpush1.bf16.msra.mxu0 0
        %1550 = vmatprep.subr.bf16.mxu0 0
        %1551 = vmatpush1.bf16.msra.mxu0 0
        %1552 = vmatprep.subr.bf16.mxu0 0
        %1553 = vmatpush1.bf16.msra.mxu0 0
        %1554 = vmatprep.subr.bf16.mxu0 0
        %1555 = vmatpush1.bf16.msra.mxu0 0
        %1556 = vmatprep.subr.bf16.mxu0 0
        %1557 = vmatpush1.bf16.msra.mxu0 0
        %1558 = vmatprep.subr.bf16.mxu0 0
        %1559 = vmatpush1.bf16.msra.mxu0 0
        %1560 = vmatprep.subr.bf16.mxu0 0
        %1561 = vmatpush1.bf16.msra.mxu0 0
        %1562 = vmatprep.subr.bf16.mxu0 0
        %1563 = vmatpush1.bf16.msra.mxu0 0
        %1564 = vmatprep.subr.bf16.mxu0 0
        %1565 = vmatpush1.bf16.msra.mxu0 0
        %1566 = vmatprep.subr.bf16.mxu0 0
        %1567 = vmatpush1.bf16.msra.mxu0 0
        %1568 = vmatprep.subr.bf16.mxu0 0
        %1569 = vmatpush1.bf16.msra.mxu0 0
        %1570 = vmatprep.subr.bf16.mxu0 0
        %1571 = vmatpush1.bf16.msra.mxu0 0
        %1572 = vmatprep.mubr.bf16.mxu0 0
        %1573 = vmatmul.mubr.bf16.gmra.mrb[0].mxu0 %v1538
        %v1574 = vpop.f32.mrb[0].mxu0
        %v1575 = vadd.f32 %v1523, %v1574
        %v1576 = vpop.f32.mrb[0].mxu0
        %v1577 = vpop.f32.mrb[0].mxu0
        %v1578 = vpop.f32.mrb[0].mxu0
        %1579 = vdwg.mxu0
        %v1580 = vmul.f32 %v1575, 0.5
        %v1581 = vmul.f32 %v1575, 0.70710677
        %vm1582 = vcmp.lt.f32.partialorder %v1581, 0.0
        %v1583 = vsel %vm1582, -1.0, 1.0
        %v1584 = vand.u32 2147483647, %v1581
        %v1585 = vmul.f32 %v1584, 0.3275911
        %v1586 = vadd.f32 %v1585, 1.0
        %v1587 = vrcp.pop %v1586
        %v1588 = vmul.f32 1.0, %v1587
        %v1589 = vmul.f32 %v1588, 1.0614054
        %v1590 = vadd.f32 %v1589, -1.4531521
        %v1591 = vmul.f32 %v1590, %v1588
        %v1592 = vadd.f32 %v1591, 1.4214138
        %v1593 = vmul.f32 %v1592, %v1588
        %v1594 = vadd.f32 %v1593, -0.28449672
        %v1595 = vmul.f32 %v1594, %v1588
        %v1596 = vadd.f32 %v1595, 0.2548296
        %v1597 = vmul.f32 %v1596, %v1588
        %v1598 = vsub.f32 0.0, %v1584
        %v1599 = vmul.f32 %v1598, %v1584
        %v1600 = vmul.f32 %v1599, 1.442695
        %v1601 = vpow.pop %v1600
        %v1602 = vmul.f32 %v1597, %v1601
        %v1603 = vsub.f32 1.0, %v1602
        %v1604 = vmul.f32 %v1583, %v1603
        %v1605 = vadd.f32 %v1604, 1.0
        %v1606 = vmul.f32 %v1580, %v1605
        %v1607 = vld [vmem:[%s12] sm:$0xf]
        %v1608 = vld [vmem:[%s12 + $0x4] sm:$0xf]
        %v1609 = vld [vmem:[%s12 + $0x8] sm:$0xf]
        %v1610 = vld [vmem:[%s12 + $0xc] sm:$0xf]
        %v1611 = vld [vmem:[%s12 + $0x10] sm:$0xf]
        %v1612 = vld [vmem:[%s12 + $0x14] sm:$0xf]
        %v1613 = vld [vmem:[%s12 + $0x18] sm:$0xf]
        %v1614 = vld [vmem:[%s12 + $0x1c] sm:$0xf]
        %v1615 = vld [vmem:[#allocation16] sm:$0x1]
        %v1616 = vpack.c.bf16 %v1606, %v1606
        %v1618 = vlaneseq
        %v1619 = vshrl.u32 %v1618, 7
        %v1620 = vsub.s32 0, %v1619
        %v1621 = vrot.slane %v1615, %v1620
        %v1631 = vunpack.c.l.b16 %v1607
        %v1632 = vunpack.c.l.b16 %v1608
        %v1633 = vunpack.c.l.b16 %v1609
        %v1634 = vunpack.c.l.b16 %v1610
        %v1635 = vunpack.c.l.b16 %v1611
        %v1636 = vunpack.c.l.b16 %v1612
        %v1637 = vunpack.c.l.b16 %v1613
        %v1638 = vunpack.c.l.b16 %v1614
        %v1639 = vpack.c.b16 %v1632, %v1631
        %v1640 = vpack.c.b16 %v1634, %v1633
        %v1641 = vpack.c.b16 %v1636, %v1635
        %v1642 = vpack.c.b16 %v1638, %v1637
        %vm1647 = vcmask 523264
        %v1649 = vsel %vm1647, %v1616, 0
        %1651 = vmatprep.subr.bf16.mxu0 0
        %1652 = vmatpush1.bf16.msra.mxu0 %v1639
        %1653 = vmatprep.subr.bf16.mxu0 0
        %1654 = vmatpush1.bf16.msra.mxu0 %v1640
        %1655 = vmatprep.subr.bf16.mxu0 0
        %1656 = vmatpush1.bf16.msra.mxu0 %v1641
        %1657 = vmatprep.subr.bf16.mxu0 0
        %1658 = vmatpush1.bf16.msra.mxu0 %v1642
        %1659 = vmatprep.subr.bf16.mxu0 0
        %1660 = vmatpush1.bf16.msra.mxu0 0
        %1661 = vmatprep.subr.bf16.mxu0 0
        %1662 = vmatpush1.bf16.msra.mxu0 0
        %1663 = vmatprep.subr.bf16.mxu0 0
        %1664 = vmatpush1.bf16.msra.mxu0 0
        %1665 = vmatprep.subr.bf16.mxu0 0
        %1666 = vmatpush1.bf16.msra.mxu0 0
        %1667 = vmatprep.subr.bf16.mxu0 0
        %1668 = vmatpush1.bf16.msra.mxu0 0
        %1669 = vmatprep.subr.bf16.mxu0 0
        %1670 = vmatpush1.bf16.msra.mxu0 0
        %1671 = vmatprep.subr.bf16.mxu0 0
        %1672 = vmatpush1.bf16.msra.mxu0 0
        %1673 = vmatprep.subr.bf16.mxu0 0
        %1674 = vmatpush1.bf16.msra.mxu0 0
        %1675 = vmatprep.subr.bf16.mxu0 0
        %1676 = vmatpush1.bf16.msra.mxu0 0
        %1677 = vmatprep.subr.bf16.mxu0 0
        %1678 = vmatpush1.bf16.msra.mxu0 0
        %1679 = vmatprep.subr.bf16.mxu0 0
        %1680 = vmatpush1.bf16.msra.mxu0 0
        %1681 = vmatprep.subr.bf16.mxu0 0
        %1682 = vmatpush1.bf16.msra.mxu0 0
        %1683 = vmatprep.mubr.bf16.mxu0 0
        %1684 = vmatmul.mubr.bf16.gmra.mrb[0].mxu0 %v1649
        %v1685 = vpop.f32.mrb[0].mxu0
        %v1686 = vadd.f32 %v1621, %v1685
        %v1687 = vpop.f32.mrb[0].mxu0
        %v1688 = vpop.f32.mrb[0].mxu0
        %v1689 = vpop.f32.mrb[0].mxu0
        %1690 = vdwg.mxu0
        %v1691 = vadd.f32 %v1512, %v1686
        %v1692 = vld [vmem:[%s14] sm:$0x1]
        %v1693 = vld [vmem:[%s15] sm:$0x1]
        %v1694 = vsel %vm728, %v1691, 0.0
        %1695 = vadd.xlane.f32.xlu0 %v1694
        %v1696 = vpop.xlane.xlu0 %1695
        %v1697 = vmul.f32 %v1696, %v732
        %v1698 = vsub.f32 %v1691, %v1697
        %v1699 = vmul.f32 %v1698, %v1698
        %v1700 = vsel %vm728, %v1699, 0.0
        %1701 = vadd.xlane.f32.xlu0 %v1700
        %v1702 = vpop.xlane.xlu0 %1701
        %v1703 = vmul.f32 %v1702, %v732
        %v1704 = vadd.f32 %v1703, 1e-12
        %v1705 = vrsqrt.pop %v1704
        %v1706 = vmul.f32 %v1698, %v1705
        %v1708 = vlaneseq
        %v1709 = vshrl.u32 %v1708, 7
        %v1710 = vsub.s32 0, %v1709
        %v1711 = vrot.slane %v1692, %v1710
        %v1713 = vmul.f32 %v1706, %v1711
        %v1715 = vlaneseq
        %v1716 = vshrl.u32 %v1715, 7
        %v1717 = vsub.s32 0, %v1716
        %v1718 = vrot.slane %v1693, %v1717
        %v1720 = vadd.f32 %v1713, %v1718
        %s1721 = scalar_lea.vmem %s4, 16
        %v1722 = vld [vmem:[%s1721] sm:$0xf]
        %v1723 = vld [vmem:[%s1721 + $0x4] sm:$0xf]
        %v1724 = vld [vmem:[%s1721 + $0x8] sm:$0xf]
        %v1725 = vld [vmem:[%s1721 + $0xc] sm:$0xf]
        %s1726 = scalar_lea.vmem [#allocation8], 1
        %v1727 = vld [vmem:[%s1726] sm:$0x1]
        %v1728 = vpack.c.bf16 %v1720, %v1720
        %v1730 = vlaneseq
        %v1731 = vshrl.u32 %v1730, 7
        %v1732 = vsub.s32 0, %v1731
        %v1733 = vrot.slane %v1727, %v1732
        %v1739 = vunpack.c.l.b16 %v1722
        %v1740 = vunpack.c.l.b16 %v1723
        %v1741 = vunpack.c.l.b16 %v1724
        %v1742 = vunpack.c.l.b16 %v1725
        %v1743 = vpack.c.b16 %v1740, %v1739
        %v1744 = vpack.c.b16 %v1742, %v1741
        %v1748 = vsel %vm728, %v1728, 0
        %1750 = vmatprep.subr.bf16.mxu0 0
        %1751 = vmatpush1.bf16.msra.mxu0 %v1743
        %1752 = vmatprep.subr.bf16.mxu0 0
        %1753 = vmatpush1.bf16.msra.mxu0 %v1744
        %1754 = vmatprep.subr.bf16.mxu0 0
        %1755 = vmatpush1.bf16.msra.mxu0 0
        %1756 = vmatprep.subr.bf16.mxu0 0
        %1757 = vmatpush1.bf16.msra.mxu0 0
        %1758 = vmatprep.subr.bf16.mxu0 0
        %1759 = vmatpush1.bf16.msra.mxu0 0
        %1760 = vmatprep.subr.bf16.mxu0 0
        %1761 = vmatpush1.bf16.msra.mxu0 0
        %1762 = vmatprep.subr.bf16.mxu0 0
        %1763 = vmatpush1.bf16.msra.mxu0 0
        %1764 = vmatprep.subr.bf16.mxu0 0
        %1765 = vmatpush1.bf16.msra.mxu0 0
        %1766 = vmatprep.subr.bf16.mxu0 0
        %1767 = vmatpush1.bf16.msra.mxu0 0
        %1768 = vmatprep.subr.bf16.mxu0 0
        %1769 = vmatpush1.bf16.msra.mxu0 0
        %1770 = vmatprep.subr.bf16.mxu0 0
        %1771 = vmatpush1.bf16.msra.mxu0 0
        %1772 = vmatprep.subr.bf16.mxu0 0
        %1773 = vmatpush1.bf16.msra.mxu0 0
        %1774 = vmatprep.subr.bf16.mxu0 0
        %1775 = vmatpush1.bf16.msra.mxu0 0
        %1776 = vmatprep.subr.bf16.mxu0 0
        %1777 = vmatpush1.bf16.msra.mxu0 0
        %1778 = vmatprep.subr.bf16.mxu0 0
        %1779 = vmatpush1.bf16.msra.mxu0 0
        %1780 = vmatprep.subr.bf16.mxu0 0
        %1781 = vmatpush1.bf16.msra.mxu0 0
        %1782 = vmatprep.mubr.bf16.mxu0 0
        %1783 = vmatmul.mubr.bf16.gmra.mrb[0].mxu0 %v1748
        %v1784 = vpop.f32.mrb[0].mxu0
        %v1785 = vadd.f32 %v1733, %v1784
        %v1786 = vpop.f32.mrb[0].mxu0
        %v1787 = vpop.f32.mrb[0].mxu0
        %v1788 = vpop.f32.mrb[0].mxu0
        %1789 = vdwg.mxu0
        %s1790 = scalar_lea.vmem %s6, 16
        %v1791 = vld [vmem:[%s1790] sm:$0xf]
        %v1792 = vld [vmem:[%s1790 + $0x4] sm:$0xf]
        %v1793 = vld [vmem:[%s1790 + $0x8] sm:$0xf]
        %v1794 = vld [vmem:[%s1790 + $0xc] sm:$0xf]
        %s1795 = scalar_lea.vmem [#allocation10], 1
        %v1796 = vld [vmem:[%s1795] sm:$0x1]
        %v1797 = vpack.c.bf16 %v1785, %v1785
        %1799 = vrot.lane.b32.xlu0 %v1797, 96
        %v1800 = vpop.permute.xlu0 %1799
        %v1802 = vsel %vm833, %v1797, 0
        %v1805 = vsel %vm833, %v1800, 0
        %1807 = vmatprep.subr.bf16.mxu0 0
        %1808 = vmatpush1.bf16.xpose.msra.mxu0 %v1805
        %1809 = vmatprep.subr.bf16.mxu0 0
        %1810 = vmatpush1.bf16.xpose.msra.mxu0 0
        %1811 = vmatprep.subr.bf16.mxu0 0
        %1812 = vmatpush1.bf16.xpose.msra.mxu0 0
        %1813 = vmatprep.subr.bf16.mxu0 0
        %1814 = vmatpush1.bf16.xpose.msra.mxu0 0
        %1815 = vmatprep.subr.bf16.mxu0 0
        %1816 = vmatpush1.bf16.xpose.msra.mxu0 0
        %1817 = vmatprep.subr.bf16.mxu0 0
        %1818 = vmatpush1.bf16.xpose.msra.mxu0 0
        %1819 = vmatprep.subr.bf16.mxu0 0
        %1820 = vmatpush1.bf16.xpose.msra.mxu0 0
        %1821 = vmatprep.subr.bf16.mxu0 0
        %1822 = vmatpush1.bf16.xpose.msra.mxu0 0
        %1823 = vmatprep.subr.bf16.mxu0 0
        %1824 = vmatpush1.bf16.xpose.msra.mxu0 0
        %1825 = vmatprep.subr.bf16.mxu0 0
        %1826 = vmatpush1.bf16.xpose.msra.mxu0 0
        %1827 = vmatprep.subr.bf16.mxu0 0
        %1828 = vmatpush1.bf16.xpose.msra.mxu0 0
        %1829 = vmatprep.subr.bf16.mxu0 0
        %1830 = vmatpush1.bf16.xpose.msra.mxu0 0
        %1831 = vmatprep.subr.bf16.mxu0 0
        %1832 = vmatpush1.bf16.xpose.msra.mxu0 0
        %1833 = vmatprep.subr.bf16.mxu0 0
        %1834 = vmatpush1.bf16.xpose.msra.mxu0 0
        %1835 = vmatprep.subr.bf16.mxu0 0
        %1836 = vmatpush1.bf16.xpose.msra.mxu0 0
        %1837 = vmatprep.subr.bf16.mxu0 0
        %1838 = vmatpush1.bf16.xpose.msra.mxu0 0
        %1839 = vmatprep.mubr.bf16.mxu0 0
        %1840 = vmatmul.mubr.bf16.gmra.mrb[0].mxu0 %v1802
        %v1841 = vpop.f32.mrb[0].mxu0
        %v1842 = vadd.f32 0.0, %v1841
        %v1843 = vpop.f32.mrb[0].mxu0
        %v1844 = vpop.f32.mrb[0].mxu0
        %v1845 = vpop.f32.mrb[0].mxu0
        %1846 = vdwg.mxu0
        %v1847 = vmul.f32 %v1842, 0.35355338
        %v1848 = vadd.f32 %v1847, %v885
        %v1849 = vsel %vm833, %v1848, -inf
        %1850 = vmax.xlane.f32.xlu0 %v1849
        %v1851 = vpop.xlane.xlu0 %1850
        %v1852 = vsub.f32 %v1848, %v1851
        %v1853 = vmul.f32 %v1852, 1.442695
        %v1854 = vpow.pop %v1853
        %v1855 = vsel %vm833, %v1854, 0.0
        %1856 = vadd.xlane.f32.xlu0 %v1855
        %v1857 = vpop.xlane.xlu0 %1856
        %v1858 = vrcp.pop %v1857
        %v1859 = vmul.f32 %v1854, %v1858
        %v1860 = vpack.c.bf16 %v1859, %v1859
        %1861 = vrot.lane.b32.xlu0 %v1797, 64
        %v1862 = vpop.permute.xlu0 %1861
        %v1864 = vsel %vm833, %v1860, 0
        %v1867 = vsel %vm905, %v1862, 0
        %1869 = vmatprep.subr.bf16.mxu0 0
        %1870 = vmatpush1.bf16.msra.mxu0 %v1867
        %1871 = vmatprep.subr.bf16.mxu0 0
        %1872 = vmatpush1.bf16.msra.mxu0 0
        %1873 = vmatprep.subr.bf16.mxu0 0
        %1874 = vmatpush1.bf16.msra.mxu0 0
        %1875 = vmatprep.subr.bf16.mxu0 0
        %1876 = vmatpush1.bf16.msra.mxu0 0
        %1877 = vmatprep.subr.bf16.mxu0 0
        %1878 = vmatpush1.bf16.msra.mxu0 0
        %1879 = vmatprep.subr.bf16.mxu0 0
        %1880 = vmatpush1.bf16.msra.mxu0 0
        %1881 = vmatprep.subr.bf16.mxu0 0
        %1882 = vmatpush1.bf16.msra.mxu0 0
        %1883 = vmatprep.subr.bf16.mxu0 0
        %1884 = vmatpush1.bf16.msra.mxu0 0
        %1885 = vmatprep.subr.bf16.mxu0 0
        %1886 = vmatpush1.bf16.msra.mxu0 0
        %1887 = vmatprep.subr.bf16.mxu0 0
        %1888 = vmatpush1.bf16.msra.mxu0 0
        %1889 = vmatprep.subr.bf16.mxu0 0
        %1890 = vmatpush1.bf16.msra.mxu0 0
        %1891 = vmatprep.subr.bf16.mxu0 0
        %1892 = vmatpush1.bf16.msra.mxu0 0
        %1893 = vmatprep.subr.bf16.mxu0 0
        %1894 = vmatpush1.bf16.msra.mxu0 0
        %1895 = vmatprep.subr.bf16.mxu0 0
        %1896 = vmatpush1.bf16.msra.mxu0 0
        %1897 = vmatprep.subr.bf16.mxu0 0
        %1898 = vmatpush1.bf16.msra.mxu0 0
        %1899 = vmatprep.subr.bf16.mxu0 0
        %1900 = vmatpush1.bf16.msra.mxu0 0
        %1901 = vmatprep.mubr.bf16.mxu0 0
        %1902 = vmatmul.mubr.bf16.gmra.mrb[0].mxu0 %v1864
        %v1903 = vpop.f32.mrb[0].mxu0
        %v1904 = vadd.f32 0.0, %v1903
        %v1905 = vpop.f32.mrb[0].mxu0
        %v1906 = vpop.f32.mrb[0].mxu0
        %v1907 = vpop.f32.mrb[0].mxu0
        %1908 = vdwg.mxu0
        %v1909 = vpack.c.bf16 %v1904, %v1904
        %v1911 = vsel %vm833, %v1909, 0
        %v1914 = vsel %vm905, %v1791, 0
        %1916 = vmatprep.subr.bf16.mxu0 0
        %1917 = vmatpush1.bf16.msra.mxu0 %v1914
        %1918 = vmatprep.subr.bf16.mxu0 0
        %1919 = vmatpush1.bf16.msra.mxu0 0
        %1920 = vmatprep.subr.bf16.mxu0 0
        %1921 = vmatpush1.bf16.msra.mxu0 0
        %1922 = vmatprep.subr.bf16.mxu0 0
        %1923 = vmatpush1.bf16.msra.mxu0 0
        %1924 = vmatprep.subr.bf16.mxu0 0
        %1925 = vmatpush1.bf16.msra.mxu0 0
        %1926 = vmatprep.subr.bf16.mxu0 0
        %1927 = vmatpush1.bf16.msra.mxu0 0
        %1928 = vmatprep.subr.bf16.mxu0 0
        %1929 = vmatpush1.bf16.msra.mxu0 0
        %1930 = vmatprep.subr.bf16.mxu0 0
        %1931 = vmatpush1.bf16.msra.mxu0 0
        %1932 = vmatprep.subr.bf16.mxu0 0
        %1933 = vmatpush1.bf16.msra.mxu0 0
        %1934 = vmatprep.subr.bf16.mxu0 0
        %1935 = vmatpush1.bf16.msra.mxu0 0
        %1936 = vmatprep.subr.bf16.mxu0 0
        %1937 = vmatpush1.bf16.msra.mxu0 0
        %1938 = vmatprep.subr.bf16.mxu0 0
        %1939 = vmatpush1.bf16.msra.mxu0 0
        %1940 = vmatprep.subr.bf16.mxu0 0
        %1941 = vmatpush1.bf16.msra.mxu0 0
        %1942 = vmatprep.subr.bf16.mxu0 0
        %1943 = vmatpush1.bf16.msra.mxu0 0
        %1944 = vmatprep.subr.bf16.mxu0 0
        %1945 = vmatpush1.bf16.msra.mxu0 0
        %1946 = vmatprep.subr.bf16.mxu0 0
        %1947 = vmatpush1.bf16.msra.mxu0 0
        %1948 = vmatprep.mubr.bf16.mxu0 0
        %1949 = vmatmul.mubr.bf16.gmra.mrb[0].mxu0 %v1911
        %v1950 = vpop.f32.mrb[0].mxu0
        %v1951 = vadd.f32 0.0, %v1950
        %v1952 = vpop.f32.mrb[0].mxu0
        %v1953 = vpop.f32.mrb[0].mxu0
        %v1954 = vpop.f32.mrb[0].mxu0
        %1955 = vdwg.mxu0
        %v1957 = vlaneseq
        %v1958 = vshrl.u32 %v1957, 7
        %v1959 = vsub.s32 0, %v1958
        %v1960 = vrot.slane %v1796, %v1959
        %v1962 = vadd.f32 %v1960, %v1951
        %1963 = vrot.lane.b32.xlu0 %v1797, 120
        %v1964 = vpop.permute.xlu0 %1963
        %1965 = vrot.lane.b32.xlu0 %v1797, 88
        %v1966 = vpop.permute.xlu0 %1965
        %v1968 = vsel %vm833, %v1964, 0
        %v1971 = vsel %vm833, %v1966, 0
        %1973 = vmatprep.subr.bf16.mxu0 0
        %1974 = vmatpush1.bf16.xpose.msra.mxu0 %v1971
        %1975 = vmatprep.subr.bf16.mxu0 0
        %1976 = vmatpush1.bf16.xpose.msra.mxu0 0
        %1977 = vmatprep.subr.bf16.mxu0 0
        %1978 = vmatpush1.bf16.xpose.msra.mxu0 0
        %1979 = vmatprep.subr.bf16.mxu0 0
        %1980 = vmatpush1.bf16.xpose.msra.mxu0 0
        %1981 = vmatprep.subr.bf16.mxu0 0
        %1982 = vmatpush1.bf16.xpose.msra.mxu0 0
        %1983 = vmatprep.subr.bf16.mxu0 0
        %1984 = vmatpush1.bf16.xpose.msra.mxu0 0
        %1985 = vmatprep.subr.bf16.mxu0 0
        %1986 = vmatpush1.bf16.xpose.msra.mxu0 0
        %1987 = vmatprep.subr.bf16.mxu0 0
        %1988 = vmatpush1.bf16.xpose.msra.mxu0 0
        %1989 = vmatprep.subr.bf16.mxu0 0
        %1990 = vmatpush1.bf16.xpose.msra.mxu0 0
        %1991 = vmatprep.subr.bf16.mxu0 0
        %1992 = vmatpush1.bf16.xpose.msra.mxu0 0
        %1993 = vmatprep.subr.bf16.mxu0 0
        %1994 = vmatpush1.bf16.xpose.msra.mxu0 0
        %1995 = vmatprep.subr.bf16.mxu0 0
        %1996 = vmatpush1.bf16.xpose.msra.mxu0 0
        %1997 = vmatprep.subr.bf16.mxu0 0
        %1998 = vmatpush1.bf16.xpose.msra.mxu0 0
        %1999 = vmatprep.subr.bf16.mxu0 0
        %2000 = vmatpush1.bf16.xpose.msra.mxu0 0
        %2001 = vmatprep.subr.bf16.mxu0 0
        %2002 = vmatpush1.bf16.xpose.msra.mxu0 0
        %2003 = vmatprep.subr.bf16.mxu0 0
        %2004 = vmatpush1.bf16.xpose.msra.mxu0 0
        %2005 = vmatprep.mubr.bf16.mxu0 0
        %2006 = vmatmul.mubr.bf16.gmra.mrb[0].mxu0 %v1968
        %v2007 = vpop.f32.mrb[0].mxu0
        %v2008 = vadd.f32 0.0, %v2007
        %v2009 = vpop.f32.mrb[0].mxu0
        %v2010 = vpop.f32.mrb[0].mxu0
        %v2011 = vpop.f32.mrb[0].mxu0
        %2012 = vdwg.mxu0
        %v2013 = vmul.f32 %v2008, 0.35355338
        %v2014 = vadd.f32 %v2013, %v885
        %v2015 = vsel %vm833, %v2014, -inf
        %2016 = vmax.xlane.f32.xlu0 %v2015
        %v2017 = vpop.xlane.xlu0 %2016
        %v2018 = vsub.f32 %v2014, %v2017
        %v2019 = vmul.f32 %v2018, 1.442695
        %v2020 = vpow.pop %v2019
        %v2021 = vsel %vm833, %v2020, 0.0
        %2022 = vadd.xlane.f32.xlu0 %v2021
        %v2023 = vpop.xlane.xlu0 %2022
        %v2024 = vrcp.pop %v2023
        %v2025 = vmul.f32 %v2020, %v2024
        %v2026 = vpack.c.bf16 %v2025, %v2025
        %2027 = vrot.lane.b32.xlu0 %v1797, 56
        %v2028 = vpop.permute.xlu0 %2027
        %v2030 = vsel %vm833, %v2026, 0
        %v2033 = vsel %vm905, %v2028, 0
        %2035 = vmatprep.subr.bf16.mxu0 0
        %2036 = vmatpush1.bf16.msra.mxu0 %v2033
        %2037 = vmatprep.subr.bf16.mxu0 0
        %2038 = vmatpush1.bf16.msra.mxu0 0
        %2039 = vmatprep.subr.bf16.mxu0 0
        %2040 = vmatpush1.bf16.msra.mxu0 0
        %2041 = vmatprep.subr.bf16.mxu0 0
        %2042 = vmatpush1.bf16.msra.mxu0 0
        %2043 = vmatprep.subr.bf16.mxu0 0
        %2044 = vmatpush1.bf16.msra.mxu0 0
        %2045 = vmatprep.subr.bf16.mxu0 0
        %2046 = vmatpush1.bf16.msra.mxu0 0
        %2047 = vmatprep.subr.bf16.mxu0 0
        %2048 = vmatpush1.bf16.msra.mxu0 0
        %2049 = vmatprep.subr.bf16.mxu0 0
        %2050 = vmatpush1.bf16.msra.mxu0 0
        %2051 = vmatprep.subr.bf16.mxu0 0
        %2052 = vmatpush1.bf16.msra.mxu0 0
        %2053 = vmatprep.subr.bf16.mxu0 0
        %2054 = vmatpush1.bf16.msra.mxu0 0
        %2055 = vmatprep.subr.bf16.mxu0 0
        %2056 = vmatpush1.bf16.msra.mxu0 0
        %2057 = vmatprep.subr.bf16.mxu0 0
        %2058 = vmatpush1.bf16.msra.mxu0 0
        %2059 = vmatprep.subr.bf16.mxu0 0
        %2060 = vmatpush1.bf16.msra.mxu0 0
        %2061 = vmatprep.subr.bf16.mxu0 0
        %2062 = vmatpush1.bf16.msra.mxu0 0
        %2063 = vmatprep.subr.bf16.mxu0 0
        %2064 = vmatpush1.bf16.msra.mxu0 0
        %2065 = vmatprep.subr.bf16.mxu0 0
        %2066 = vmatpush1.bf16.msra.mxu0 0
        %2067 = vmatprep.mubr.bf16.mxu0 0
        %2068 = vmatmul.mubr.bf16.gmra.mrb[0].mxu0 %v2030
        %v2069 = vpop.f32.mrb[0].mxu0
        %v2070 = vadd.f32 0.0, %v2069
        %v2071 = vpop.f32.mrb[0].mxu0
        %v2072 = vpop.f32.mrb[0].mxu0
        %v2073 = vpop.f32.mrb[0].mxu0
        %2074 = vdwg.mxu0
        %v2075 = vpack.c.bf16 %v2070, %v2070
        %v2077 = vsel %vm833, %v2075, 0
        %v2080 = vsel %vm905, %v1792, 0
        %2082 = vmatprep.subr.bf16.mxu0 0
        %2083 = vmatpush1.bf16.msra.mxu0 %v2080
        %2084 = vmatprep.subr.bf16.mxu0 0
        %2085 = vmatpush1.bf16.msra.mxu0 0
        %2086 = vmatprep.subr.bf16.mxu0 0
        %2087 = vmatpush1.bf16.msra.mxu0 0
        %2088 = vmatprep.subr.bf16.mxu0 0
        %2089 = vmatpush1.bf16.msra.mxu0 0
        %2090 = vmatprep.subr.bf16.mxu0 0
        %2091 = vmatpush1.bf16.msra.mxu0 0
        %2092 = vmatprep.subr.bf16.mxu0 0
        %2093 = vmatpush1.bf16.msra.mxu0 0
        %2094 = vmatprep.subr.bf16.mxu0 0
        %2095 = vmatpush1.bf16.msra.mxu0 0
        %2096 = vmatprep.subr.bf16.mxu0 0
        %2097 = vmatpush1.bf16.msra.mxu0 0
        %2098 = vmatprep.subr.bf16.mxu0 0
        %2099 = vmatpush1.bf16.msra.mxu0 0
        %2100 = vmatprep.subr.bf16.mxu0 0
        %2101 = vmatpush1.bf16.msra.mxu0 0
        %2102 = vmatprep.subr.bf16.mxu0 0
        %2103 = vmatpush1.bf16.msra.mxu0 0
        %2104 = vmatprep.subr.bf16.mxu0 0
        %2105 = vmatpush1.bf16.msra.mxu0 0
        %2106 = vmatprep.subr.bf16.mxu0 0
        %2107 = vmatpush1.bf16.msra.mxu0 0
        %2108 = vmatprep.subr.bf16.mxu0 0
        %2109 = vmatpush1.bf16.msra.mxu0 0
        %2110 = vmatprep.subr.bf16.mxu0 0
        %2111 = vmatpush1.bf16.msra.mxu0 0
        %2112 = vmatprep.subr.bf16.mxu0 0
        %2113 = vmatpush1.bf16.msra.mxu0 0
        %2114 = vmatprep.mubr.bf16.mxu0 0
        %2115 = vmatmul.mubr.bf16.gmra.mrb[0].mxu0 %v2077
        %v2116 = vpop.f32.mrb[0].mxu0
        %v2117 = vadd.f32 0.0, %v2116
        %v2118 = vpop.f32.mrb[0].mxu0
        %v2119 = vpop.f32.mrb[0].mxu0
        %v2120 = vpop.f32.mrb[0].mxu0
        %2121 = vdwg.mxu0
        %v2122 = vadd.f32 %v1962, %v2117
        %2123 = vrot.lane.b32.xlu0 %v1797, 112
        %v2124 = vpop.permute.xlu0 %2123
        %2125 = vrot.lane.b32.xlu0 %v1797, 80
        %v2126 = vpop.permute.xlu0 %2125
        %v2128 = vsel %vm833, %v2124, 0
        %v2131 = vsel %vm833, %v2126, 0
        %2133 = vmatprep.subr.bf16.mxu0 0
        %2134 = vmatpush1.bf16.xpose.msra.mxu0 %v2131
        %2135 = vmatprep.subr.bf16.mxu0 0
        %2136 = vmatpush1.bf16.xpose.msra.mxu0 0
        %2137 = vmatprep.subr.bf16.mxu0 0
        %2138 = vmatpush1.bf16.xpose.msra.mxu0 0
        %2139 = vmatprep.subr.bf16.mxu0 0
        %2140 = vmatpush1.bf16.xpose.msra.mxu0 0
        %2141 = vmatprep.subr.bf16.mxu0 0
        %2142 = vmatpush1.bf16.xpose.msra.mxu0 0
        %2143 = vmatprep.subr.bf16.mxu0 0
        %2144 = vmatpush1.bf16.xpose.msra.mxu0 0
        %2145 = vmatprep.subr.bf16.mxu0 0
        %2146 = vmatpush1.bf16.xpose.msra.mxu0 0
        %2147 = vmatprep.subr.bf16.mxu0 0
        %2148 = vmatpush1.bf16.xpose.msra.mxu0 0
        %2149 = vmatprep.subr.bf16.mxu0 0
        %2150 = vmatpush1.bf16.xpose.msra.mxu0 0
        %2151 = vmatprep.subr.bf16.mxu0 0
        %2152 = vmatpush1.bf16.xpose.msra.mxu0 0
        %2153 = vmatprep.subr.bf16.mxu0 0
        %2154 = vmatpush1.bf16.xpose.msra.mxu0 0
        %2155 = vmatprep.subr.bf16.mxu0 0
        %2156 = vmatpush1.bf16.xpose.msra.mxu0 0
        %2157 = vmatprep.subr.bf16.mxu0 0
        %2158 = vmatpush1.bf16.xpose.msra.mxu0 0
        %2159 = vmatprep.subr.bf16.mxu0 0
        %2160 = vmatpush1.bf16.xpose.msra.mxu0 0
        %2161 = vmatprep.subr.bf16.mxu0 0
        %2162 = vmatpush1.bf16.xpose.msra.mxu0 0
        %2163 = vmatprep.subr.bf16.mxu0 0
        %2164 = vmatpush1.bf16.xpose.msra.mxu0 0
        %2165 = vmatprep.mubr.bf16.mxu0 0
        %2166 = vmatmul.mubr.bf16.gmra.mrb[0].mxu0 %v2128
        %v2167 = vpop.f32.mrb[0].mxu0
        %v2168 = vadd.f32 0.0, %v2167
        %v2169 = vpop.f32.mrb[0].mxu0
        %v2170 = vpop.f32.mrb[0].mxu0
        %v2171 = vpop.f32.mrb[0].mxu0
        %2172 = vdwg.mxu0
        %v2173 = vmul.f32 %v2168, 0.35355338
        %v2174 = vadd.f32 %v2173, %v885
        %v2175 = vsel %vm833, %v2174, -inf
        %2176 = vmax.xlane.f32.xlu0 %v2175
        %v2177 = vpop.xlane.xlu0 %2176
        %v2178 = vsub.f32 %v2174, %v2177
        %v2179 = vmul.f32 %v2178, 1.442695
        %v2180 = vpow.pop %v2179
        %v2181 = vsel %vm833, %v2180, 0.0
        %2182 = vadd.xlane.f32.xlu0 %v2181
        %v2183 = vpop.xlane.xlu0 %2182
        %v2184 = vrcp.pop %v2183
        %v2185 = vmul.f32 %v2180, %v2184
        %v2186 = vpack.c.bf16 %v2185, %v2185
        %2187 = vrot.lane.b32.xlu0 %v1797, 48
        %v2188 = vpop.permute.xlu0 %2187
        %v2190 = vsel %vm833, %v2186, 0
        %v2193 = vsel %vm905, %v2188, 0
        %2195 = vmatprep.subr.bf16.mxu0 0
        %2196 = vmatpush1.bf16.msra.mxu0 %v2193
        %2197 = vmatprep.subr.bf16.mxu0 0
        %2198 = vmatpush1.bf16.msra.mxu0 0
        %2199 = vmatprep.subr.bf16.mxu0 0
        %2200 = vmatpush1.bf16.msra.mxu0 0
        %2201 = vmatprep.subr.bf16.mxu0 0
        %2202 = vmatpush1.bf16.msra.mxu0 0
        %2203 = vmatprep.subr.bf16.mxu0 0
        %2204 = vmatpush1.bf16.msra.mxu0 0
        %2205 = vmatprep.subr.bf16.mxu0 0
        %2206 = vmatpush1.bf16.msra.mxu0 0
        %2207 = vmatprep.subr.bf16.mxu0 0
        %2208 = vmatpush1.bf16.msra.mxu0 0
        %2209 = vmatprep.subr.bf16.mxu0 0
        %2210 = vmatpush1.bf16.msra.mxu0 0
        %2211 = vmatprep.subr.bf16.mxu0 0
        %2212 = vmatpush1.bf16.msra.mxu0 0
        %2213 = vmatprep.subr.bf16.mxu0 0
        %2214 = vmatpush1.bf16.msra.mxu0 0
        %2215 = vmatprep.subr.bf16.mxu0 0
        %2216 = vmatpush1.bf16.msra.mxu0 0
        %2217 = vmatprep.subr.bf16.mxu0 0
        %2218 = vmatpush1.bf16.msra.mxu0 0
        %2219 = vmatprep.subr.bf16.mxu0 0
        %2220 = vmatpush1.bf16.msra.mxu0 0
        %2221 = vmatprep.subr.bf16.mxu0 0
        %2222 = vmatpush1.bf16.msra.mxu0 0
        %2223 = vmatprep.subr.bf16.mxu0 0
        %2224 = vmatpush1.bf16.msra.mxu0 0
        %2225 = vmatprep.subr.bf16.mxu0 0
        %2226 = vmatpush1.bf16.msra.mxu0 0
        %2227 = vmatprep.mubr.bf16.mxu0 0
        %2228 = vmatmul.mubr.bf16.gmra.mrb[0].mxu0 %v2190
        %v2229 = vpop.f32.mrb[0].mxu0
        %v2230 = vadd.f32 0.0, %v2229
        %v2231 = vpop.f32.mrb[0].mxu0
        %v2232 = vpop.f32.mrb[0].mxu0
        %v2233 = vpop.f32.mrb[0].mxu0
        %2234 = vdwg.mxu0
        %v2235 = vpack.c.bf16 %v2230, %v2230
        %v2237 = vsel %vm833, %v2235, 0
        %v2240 = vsel %vm905, %v1793, 0
        %2242 = vmatprep.subr.bf16.mxu0 0
        %2243 = vmatpush1.bf16.msra.mxu0 %v2240
        %2244 = vmatprep.subr.bf16.mxu0 0
        %2245 = vmatpush1.bf16.msra.mxu0 0
        %2246 = vmatprep.subr.bf16.mxu0 0
        %2247 = vmatpush1.bf16.msra.mxu0 0
        %2248 = vmatprep.subr.bf16.mxu0 0
        %2249 = vmatpush1.bf16.msra.mxu0 0
        %2250 = vmatprep.subr.bf16.mxu0 0
        %2251 = vmatpush1.bf16.msra.mxu0 0
        %2252 = vmatprep.subr.bf16.mxu0 0
        %2253 = vmatpush1.bf16.msra.mxu0 0
        %2254 = vmatprep.subr.bf16.mxu0 0
        %2255 = vmatpush1.bf16.msra.mxu0 0
        %2256 = vmatprep.subr.bf16.mxu0 0
        %2257 = vmatpush1.bf16.msra.mxu0 0
        %2258 = vmatprep.subr.bf16.mxu0 0
        %2259 = vmatpush1.bf16.msra.mxu0 0
        %2260 = vmatprep.subr.bf16.mxu0 0
        %2261 = vmatpush1.bf16.msra.mxu0 0
        %2262 = vmatprep.subr.bf16.mxu0 0
        %2263 = vmatpush1.bf16.msra.mxu0 0
        %2264 = vmatprep.subr.bf16.mxu0 0
        %2265 = vmatpush1.bf16.msra.mxu0 0
        %2266 = vmatprep.subr.bf16.mxu0 0
        %2267 = vmatpush1.bf16.msra.mxu0 0
        %2268 = vmatprep.subr.bf16.mxu0 0
        %2269 = vmatpush1.bf16.msra.mxu0 0
        %2270 = vmatprep.subr.bf16.mxu0 0
        %2271 = vmatpush1.bf16.msra.mxu0 0
        %2272 = vmatprep.subr.bf16.mxu0 0
        %2273 = vmatpush1.bf16.msra.mxu0 0
        %2274 = vmatprep.mubr.bf16.mxu0 0
        %2275 = vmatmul.mubr.bf16.gmra.mrb[0].mxu0 %v2237
        %v2276 = vpop.f32.mrb[0].mxu0
        %v2277 = vadd.f32 0.0, %v2276
        %v2278 = vpop.f32.mrb[0].mxu0
        %v2279 = vpop.f32.mrb[0].mxu0
        %v2280 = vpop.f32.mrb[0].mxu0
        %2281 = vdwg.mxu0
        %v2282 = vadd.f32 %v2122, %v2277
        %2283 = vrot.lane.b32.xlu0 %v1797, 104
        %v2284 = vpop.permute.xlu0 %2283
        %2285 = vrot.lane.b32.xlu0 %v1797, 72
        %v2286 = vpop.permute.xlu0 %2285
        %v2288 = vsel %vm833, %v2284, 0
        %v2291 = vsel %vm833, %v2286, 0
        %2293 = vmatprep.subr.bf16.mxu0 0
        %2294 = vmatpush1.bf16.xpose.msra.mxu0 %v2291
        %2295 = vmatprep.subr.bf16.mxu0 0
        %2296 = vmatpush1.bf16.xpose.msra.mxu0 0
        %2297 = vmatprep.subr.bf16.mxu0 0
        %2298 = vmatpush1.bf16.xpose.msra.mxu0 0
        %2299 = vmatprep.subr.bf16.mxu0 0
        %2300 = vmatpush1.bf16.xpose.msra.mxu0 0
        %2301 = vmatprep.subr.bf16.mxu0 0
        %2302 = vmatpush1.bf16.xpose.msra.mxu0 0
        %2303 = vmatprep.subr.bf16.mxu0 0
        %2304 = vmatpush1.bf16.xpose.msra.mxu0 0
        %2305 = vmatprep.subr.bf16.mxu0 0
        %2306 = vmatpush1.bf16.xpose.msra.mxu0 0
        %2307 = vmatprep.subr.bf16.mxu0 0
        %2308 = vmatpush1.bf16.xpose.msra.mxu0 0
        %2309 = vmatprep.subr.bf16.mxu0 0
        %2310 = vmatpush1.bf16.xpose.msra.mxu0 0
        %2311 = vmatprep.subr.bf16.mxu0 0
        %2312 = vmatpush1.bf16.xpose.msra.mxu0 0
        %2313 = vmatprep.subr.bf16.mxu0 0
        %2314 = vmatpush1.bf16.xpose.msra.mxu0 0
        %2315 = vmatprep.subr.bf16.mxu0 0
        %2316 = vmatpush1.bf16.xpose.msra.mxu0 0
        %2317 = vmatprep.subr.bf16.mxu0 0
        %2318 = vmatpush1.bf16.xpose.msra.mxu0 0
        %2319 = vmatprep.subr.bf16.mxu0 0
        %2320 = vmatpush1.bf16.xpose.msra.mxu0 0
        %2321 = vmatprep.subr.bf16.mxu0 0
        %2322 = vmatpush1.bf16.xpose.msra.mxu0 0
        %2323 = vmatprep.subr.bf16.mxu0 0
        %2324 = vmatpush1.bf16.xpose.msra.mxu0 0
        %2325 = vmatprep.mubr.bf16.mxu0 0
        %2326 = vmatmul.mubr.bf16.gmra.mrb[0].mxu0 %v2288
        %v2327 = vpop.f32.mrb[0].mxu0
        %v2328 = vadd.f32 0.0, %v2327
        %v2329 = vpop.f32.mrb[0].mxu0
        %v2330 = vpop.f32.mrb[0].mxu0
        %v2331 = vpop.f32.mrb[0].mxu0
        %2332 = vdwg.mxu0
        %v2333 = vmul.f32 %v2328, 0.35355338
        %v2334 = vadd.f32 %v2333, %v885
        %v2335 = vsel %vm833, %v2334, -inf
        %2336 = vmax.xlane.f32.xlu0 %v2335
        %v2337 = vpop.xlane.xlu0 %2336
        %v2338 = vsub.f32 %v2334, %v2337
        %v2339 = vmul.f32 %v2338, 1.442695
        %v2340 = vpow.pop %v2339
        %v2341 = vsel %vm833, %v2340, 0.0
        %2342 = vadd.xlane.f32.xlu0 %v2341
        %v2343 = vpop.xlane.xlu0 %2342
        %v2344 = vrcp.pop %v2343
        %v2345 = vmul.f32 %v2340, %v2344
        %v2346 = vpack.c.bf16 %v2345, %v2345
        %2347 = vrot.lane.b32.xlu0 %v1797, 40
        %v2348 = vpop.permute.xlu0 %2347
        %v2350 = vsel %vm833, %v2346, 0
        %v2353 = vsel %vm905, %v2348, 0
        %2355 = vmatprep.subr.bf16.mxu0 0
        %2356 = vmatpush1.bf16.msra.mxu0 %v2353
        %2357 = vmatprep.subr.bf16.mxu0 0
        %2358 = vmatpush1.bf16.msra.mxu0 0
        %2359 = vmatprep.subr.bf16.mxu0 0
        %2360 = vmatpush1.bf16.msra.mxu0 0
        %2361 = vmatprep.subr.bf16.mxu0 0
        %2362 = vmatpush1.bf16.msra.mxu0 0
        %2363 = vmatprep.subr.bf16.mxu0 0
        %2364 = vmatpush1.bf16.msra.mxu0 0
        %2365 = vmatprep.subr.bf16.mxu0 0
        %2366 = vmatpush1.bf16.msra.mxu0 0
        %2367 = vmatprep.subr.bf16.mxu0 0
        %2368 = vmatpush1.bf16.msra.mxu0 0
        %2369 = vmatprep.subr.bf16.mxu0 0
        %2370 = vmatpush1.bf16.msra.mxu0 0
        %2371 = vmatprep.subr.bf16.mxu0 0
        %2372 = vmatpush1.bf16.msra.mxu0 0
        %2373 = vmatprep.subr.bf16.mxu0 0
        %2374 = vmatpush1.bf16.msra.mxu0 0
        %2375 = vmatprep.subr.bf16.mxu0 0
        %2376 = vmatpush1.bf16.msra.mxu0 0
        %2377 = vmatprep.subr.bf16.mxu0 0
        %2378 = vmatpush1.bf16.msra.mxu0 0
        %2379 = vmatprep.subr.bf16.mxu0 0
        %2380 = vmatpush1.bf16.msra.mxu0 0
        %2381 = vmatprep.subr.bf16.mxu0 0
        %2382 = vmatpush1.bf16.msra.mxu0 0
        %2383 = vmatprep.subr.bf16.mxu0 0
        %2384 = vmatpush1.bf16.msra.mxu0 0
        %2385 = vmatprep.subr.bf16.mxu0 0
        %2386 = vmatpush1.bf16.msra.mxu0 0
        %2387 = vmatprep.mubr.bf16.mxu0 0
        %2388 = vmatmul.mubr.bf16.gmra.mrb[0].mxu0 %v2350
        %v2389 = vpop.f32.mrb[0].mxu0
        %v2390 = vadd.f32 0.0, %v2389
        %v2391 = vpop.f32.mrb[0].mxu0
        %v2392 = vpop.f32.mrb[0].mxu0
        %v2393 = vpop.f32.mrb[0].mxu0
        %2394 = vdwg.mxu0
        %v2395 = vpack.c.bf16 %v2390, %v2390
        %v2397 = vsel %vm833, %v2395, 0
        %v2400 = vsel %vm905, %v1794, 0
        %2402 = vmatprep.subr.bf16.mxu0 0
        %2403 = vmatpush1.bf16.msra.mxu0 %v2400
        %2404 = vmatprep.subr.bf16.mxu0 0
        %2405 = vmatpush1.bf16.msra.mxu0 0
        %2406 = vmatprep.subr.bf16.mxu0 0
        %2407 = vmatpush1.bf16.msra.mxu0 0
        %2408 = vmatprep.subr.bf16.mxu0 0
        %2409 = vmatpush1.bf16.msra.mxu0 0
        %2410 = vmatprep.subr.bf16.mxu0 0
        %2411 = vmatpush1.bf16.msra.mxu0 0
        %2412 = vmatprep.subr.bf16.mxu0 0
        %2413 = vmatpush1.bf16.msra.mxu0 0
        %2414 = vmatprep.subr.bf16.mxu0 0
        %2415 = vmatpush1.bf16.msra.mxu0 0
        %2416 = vmatprep.subr.bf16.mxu0 0
        %2417 = vmatpush1.bf16.msra.mxu0 0
        %2418 = vmatprep.subr.bf16.mxu0 0
        %2419 = vmatpush1.bf16.msra.mxu0 0
        %2420 = vmatprep.subr.bf16.mxu0 0
        %2421 = vmatpush1.bf16.msra.mxu0 0
        %2422 = vmatprep.subr.bf16.mxu0 0
        %2423 = vmatpush1.bf16.msra.mxu0 0
        %2424 = vmatprep.subr.bf16.mxu0 0
        %2425 = vmatpush1.bf16.msra.mxu0 0
        %2426 = vmatprep.subr.bf16.mxu0 0
        %2427 = vmatpush1.bf16.msra.mxu0 0
        %2428 = vmatprep.subr.bf16.mxu0 0
        %2429 = vmatpush1.bf16.msra.mxu0 0
        %2430 = vmatprep.subr.bf16.mxu0 0
        %2431 = vmatpush1.bf16.msra.mxu0 0
        %2432 = vmatprep.subr.bf16.mxu0 0
        %2433 = vmatpush1.bf16.msra.mxu0 0
        %2434 = vmatprep.mubr.bf16.mxu0 0
        %2435 = vmatmul.mubr.bf16.gmra.mrb[0].mxu0 %v2397
        %v2436 = vpop.f32.mrb[0].mxu0
        %v2437 = vadd.f32 0.0, %v2436
        %v2438 = vpop.f32.mrb[0].mxu0
        %v2439 = vpop.f32.mrb[0].mxu0
        %v2440 = vpop.f32.mrb[0].mxu0
        %2441 = vdwg.mxu0
        %v2442 = vadd.f32 %v2282, %v2437
        %v2443 = vadd.f32 %v1720, %v2442
        %s2444 = scalar_lea.vmem [#allocation11], 1
        %v2445 = vld [vmem:[%s2444] sm:$0x1]
        %s2446 = scalar_lea.vmem [#allocation13], 1
        %v2447 = vld [vmem:[%s2446] sm:$0x1]
        %v2448 = vsel %vm728, %v2443, 0.0
        %2449 = vadd.xlane.f32.xlu0 %v2448
        %v2450 = vpop.xlane.xlu0 %2449
        %v2451 = vmul.f32 %v2450, %v732
        %v2452 = vsub.f32 %v2443, %v2451
        %v2453 = vmul.f32 %v2452, %v2452
        %v2454 = vsel %vm728, %v2453, 0.0
        %2455 = vadd.xlane.f32.xlu0 %v2454
        %v2456 = vpop.xlane.xlu0 %2455
        %v2457 = vmul.f32 %v2456, %v732
        %v2458 = vadd.f32 %v2457, 1e-12
        %v2459 = vrsqrt.pop %v2458
        %v2460 = vmul.f32 %v2452, %v2459
        %v2462 = vlaneseq
        %v2463 = vshrl.u32 %v2462, 7
        %v2464 = vsub.s32 0, %v2463
        %v2465 = vrot.slane %v2445, %v2464
        %v2467 = vmul.f32 %v2460, %v2465
        %v2469 = vlaneseq
        %v2470 = vshrl.u32 %v2469, 7
        %v2471 = vsub.s32 0, %v2470
        %v2472 = vrot.slane %v2447, %v2471
        %v2474 = vadd.f32 %v2467, %v2472
        %s2475 = scalar_lea.vmem %s10, 16
        %v2476 = vld [vmem:[%s2475] sm:$0xf]
        %v2477 = vld [vmem:[%s2475 + $0x4] sm:$0xf]
        %v2478 = vld [vmem:[%s2475 + $0x8] sm:$0xf]
        %v2479 = vld [vmem:[%s2475 + $0xc] sm:$0xf]
        %s2480 = scalar_lea.vmem [#allocation14], 1
        %v2481 = vld [vmem:[%s2480] sm:$0x1]
        %v2482 = vpack.c.bf16 %v2474, %v2474
        %v2484 = vlaneseq
        %v2485 = vshrl.u32 %v2484, 7
        %v2486 = vsub.s32 0, %v2485
        %v2487 = vrot.slane %v2481, %v2486
        %v2493 = vunpack.c.l.b16 %v2476
        %v2494 = vunpack.c.l.b16 %v2477
        %v2495 = vunpack.c.l.b16 %v2478
        %v2496 = vunpack.c.l.b16 %v2479
        %v2497 = vpack.c.b16 %v2494, %v2493
        %v2498 = vpack.c.b16 %v2496, %v2495
        %v2502 = vsel %vm728, %v2482, 0
        %2504 = vmatprep.subr.bf16.mxu0 0
        %2505 = vmatpush1.bf16.msra.mxu0 %v2497
        %2506 = vmatprep.subr.bf16.mxu0 0
        %2507 = vmatpush1.bf16.msra.mxu0 %v2498
        %2508 = vmatprep.subr.bf16.mxu0 0
        %2509 = vmatpush1.bf16.msra.mxu0 0
        %2510 = vmatprep.subr.bf16.mxu0 0
        %2511 = vmatpush1.bf16.msra.mxu0 0
        %2512 = vmatprep.subr.bf16.mxu0 0
        %2513 = vmatpush1.bf16.msra.mxu0 0
        %2514 = vmatprep.subr.bf16.mxu0 0
        %2515 = vmatpush1.bf16.msra.mxu0 0
        %2516 = vmatprep.subr.bf16.mxu0 0
        %2517 = vmatpush1.bf16.msra.mxu0 0
        %2518 = vmatprep.subr.bf16.mxu0 0
        %2519 = vmatpush1.bf16.msra.mxu0 0
        %2520 = vmatprep.subr.bf16.mxu0 0
        %2521 = vmatpush1.bf16.msra.mxu0 0
        %2522 = vmatprep.subr.bf16.mxu0 0
        %2523 = vmatpush1.bf16.msra.mxu0 0
        %2524 = vmatprep.subr.bf16.mxu0 0
        %2525 = vmatpush1.bf16.msra.mxu0 0
        %2526 = vmatprep.subr.bf16.mxu0 0
        %2527 = vmatpush1.bf16.msra.mxu0 0
        %2528 = vmatprep.subr.bf16.mxu0 0
        %2529 = vmatpush1.bf16.msra.mxu0 0
        %2530 = vmatprep.subr.bf16.mxu0 0
        %2531 = vmatpush1.bf16.msra.mxu0 0
        %2532 = vmatprep.subr.bf16.mxu0 0
        %2533 = vmatpush1.bf16.msra.mxu0 0
        %2534 = vmatprep.subr.bf16.mxu0 0
        %2535 = vmatpush1.bf16.msra.mxu0 0
        %2536 = vmatprep.mubr.bf16.mxu0 0
        %2537 = vmatmul.mubr.bf16.gmra.mrb[0].mxu0 %v2502
        %v2538 = vpop.f32.mrb[0].mxu0
        %v2539 = vadd.f32 %v2487, %v2538
        %v2540 = vpop.f32.mrb[0].mxu0
        %v2541 = vpop.f32.mrb[0].mxu0
        %v2542 = vpop.f32.mrb[0].mxu0
        %2543 = vdwg.mxu0
        %v2544 = vmul.f32 %v2539, 0.5
        %v2545 = vmul.f32 %v2539, 0.70710677
        %vm2546 = vcmp.lt.f32.partialorder %v2545, 0.0
        %v2547 = vsel %vm2546, -1.0, 1.0
        %v2548 = vand.u32 2147483647, %v2545
        %v2549 = vmul.f32 %v2548, 0.3275911
        %v2550 = vadd.f32 %v2549, 1.0
        %v2551 = vrcp.pop %v2550
        %v2552 = vmul.f32 1.0, %v2551
        %v2553 = vmul.f32 %v2552, 1.0614054
        %v2554 = vadd.f32 %v2553, -1.4531521
        %v2555 = vmul.f32 %v2554, %v2552
        %v2556 = vadd.f32 %v2555, 1.4214138
        %v2557 = vmul.f32 %v2556, %v2552
        %v2558 = vadd.f32 %v2557, -0.28449672
        %v2559 = vmul.f32 %v2558, %v2552
        %v2560 = vadd.f32 %v2559, 0.2548296
        %v2561 = vmul.f32 %v2560, %v2552
        %v2562 = vsub.f32 0.0, %v2548
        %v2563 = vmul.f32 %v2562, %v2548
        %v2564 = vmul.f32 %v2563, 1.442695
        %v2565 = vpow.pop %v2564
        %v2566 = vmul.f32 %v2561, %v2565
        %v2567 = vsub.f32 1.0, %v2566
        %v2568 = vmul.f32 %v2547, %v2567
        %v2569 = vadd.f32 %v2568, 1.0
        %v2570 = vmul.f32 %v2544, %v2569
        %s2571 = scalar_lea.vmem %s12, 32
        %v2572 = vld [vmem:[%s2571] sm:$0xf]
        %v2573 = vld [vmem:[%s2571 + $0x4] sm:$0xf]
        %v2574 = vld [vmem:[%s2571 + $0x8] sm:$0xf]
        %v2575 = vld [vmem:[%s2571 + $0xc] sm:$0xf]
        %v2576 = vld [vmem:[%s2571 + $0x10] sm:$0xf]
        %v2577 = vld [vmem:[%s2571 + $0x14] sm:$0xf]
        %v2578 = vld [vmem:[%s2571 + $0x18] sm:$0xf]
        %v2579 = vld [vmem:[%s2571 + $0x1c] sm:$0xf]
        %s2580 = scalar_lea.vmem [#allocation16], 1
        %v2581 = vld [vmem:[%s2580] sm:$0x1]
        %v2582 = vpack.c.bf16 %v2570, %v2570
        %v2584 = vlaneseq
        %v2585 = vshrl.u32 %v2584, 7
        %v2586 = vsub.s32 0, %v2585
        %v2587 = vrot.slane %v2581, %v2586
        %v2597 = vunpack.c.l.b16 %v2572
        %v2598 = vunpack.c.l.b16 %v2573
        %v2599 = vunpack.c.l.b16 %v2574
        %v2600 = vunpack.c.l.b16 %v2575
        %v2601 = vunpack.c.l.b16 %v2576
        %v2602 = vunpack.c.l.b16 %v2577
        %v2603 = vunpack.c.l.b16 %v2578
        %v2604 = vunpack.c.l.b16 %v2579
        %v2605 = vpack.c.b16 %v2598, %v2597
        %v2606 = vpack.c.b16 %v2600, %v2599
        %v2607 = vpack.c.b16 %v2602, %v2601
        %v2608 = vpack.c.b16 %v2604, %v2603
        %v2614 = vsel %vm1647, %v2582, 0
        %2616 = vmatprep.subr.bf16.mxu0 0
        %2617 = vmatpush1.bf16.msra.mxu0 %v2605
        %2618 = vmatprep.subr.bf16.mxu0 0
        %2619 = vmatpush1.bf16.msra.mxu0 %v2606
        %2620 = vmatprep.subr.bf16.mxu0 0
        %2621 = vmatpush1.bf16.msra.mxu0 %v2607
        %2622 = vmatprep.subr.bf16.mxu0 0
        %2623 = vmatpush1.bf16.msra.mxu0 %v2608
        %2624 = vmatprep.subr.bf16.mxu0 0
        %2625 = vmatpush1.bf16.msra.mxu0 0
        %2626 = vmatprep.subr.bf16.mxu0 0
        %2627 = vmatpush1.bf16.msra.mxu0 0
        %2628 = vmatprep.subr.bf16.mxu0 0
        %2629 = vmatpush1.bf16.msra.mxu0 0
        %2630 = vmatprep.subr.bf16.mxu0 0
        %2631 = vmatpush1.bf16.msra.mxu0 0
        %2632 = vmatprep.subr.bf16.mxu0 0
        %2633 = vmatpush1.bf16.msra.mxu0 0
        %2634 = vmatprep.subr.bf16.mxu0 0
        %2635 = vmatpush1.bf16.msra.mxu0 0
        %2636 = vmatprep.subr.bf16.mxu0 0
        %2637 = vmatpush1.bf16.msra.mxu0 0
        %2638 = vmatprep.subr.bf16.mxu0 0
        %2639 = vmatpush1.bf16.msra.mxu0 0
        %2640 = vmatprep.subr.bf16.mxu0 0
        %2641 = vmatpush1.bf16.msra.mxu0 0
        %2642 = vmatprep.subr.bf16.mxu0 0
        %2643 = vmatpush1.bf16.msra.mxu0 0
        %2644 = vmatprep.subr.bf16.mxu0 0
        %2645 = vmatpush1.bf16.msra.mxu0 0
        %2646 = vmatprep.subr.bf16.mxu0 0
        %2647 = vmatpush1.bf16.msra.mxu0 0
        %2648 = vmatprep.mubr.bf16.mxu0 0
        %2649 = vmatmul.mubr.bf16.gmra.mrb[0].mxu0 %v2614
        %v2650 = vpop.f32.mrb[0].mxu0
        %v2651 = vadd.f32 %v2587, %v2650
        %v2652 = vpop.f32.mrb[0].mxu0
        %v2653 = vpop.f32.mrb[0].mxu0
        %v2654 = vpop.f32.mrb[0].mxu0
        %2655 = vdwg.mxu0
        %v2656 = vadd.f32 %v2474, %v2651
        %s2657 = scalar_lea.vmem %s14, 1
        %v2658 = vld [vmem:[%s2657] sm:$0x1]
        %s2659 = scalar_lea.vmem %s15, 1
        %v2660 = vld [vmem:[%s2659] sm:$0x1]
        %v2661 = vsel %vm728, %v2656, 0.0
        %2662 = vadd.xlane.f32.xlu0 %v2661
        %v2663 = vpop.xlane.xlu0 %2662
        %v2664 = vmul.f32 %v2663, %v732
        %v2665 = vsub.f32 %v2656, %v2664
        %v2666 = vmul.f32 %v2665, %v2665
        %v2667 = vsel %vm728, %v2666, 0.0
        %2668 = vadd.xlane.f32.xlu0 %v2667
        %v2669 = vpop.xlane.xlu0 %2668
        %v2670 = vmul.f32 %v2669, %v732
        %v2671 = vadd.f32 %v2670, 1e-12
        %v2672 = vrsqrt.pop %v2671
        %v2673 = vmul.f32 %v2665, %v2672
        %v2675 = vlaneseq
        %v2676 = vshrl.u32 %v2675, 7
        %v2677 = vsub.s32 0, %v2676
        %v2678 = vrot.slane %v2658, %v2677
        %v2680 = vmul.f32 %v2673, %v2678
        %v2682 = vlaneseq
        %v2683 = vshrl.u32 %v2682, 7
        %v2684 = vsub.s32 0, %v2683
        %v2685 = vrot.slane %v2660, %v2684
        %v2687 = vadd.f32 %v2680, %v2685
        %v2688 = vld [vmem:[%s16] sm:$0xf]
        %v2689 = vld [vmem:[%s16 + $0x4] sm:$0xf]
        %v2690 = vld [vmem:[%s16 + $0x8] sm:$0xf]
        %v2691 = vld [vmem:[%s16 + $0xc] sm:$0xf]
        %v2692 = vld [vmem:[%s17] sm:$0x1]
        %v2693 = vpack.c.bf16 %v2687, %v2687
        %v2698 = vunpack.c.l.b16 %v2688
        %v2699 = vunpack.c.l.b16 %v2689
        %v2700 = vunpack.c.l.b16 %v2690
        %v2701 = vunpack.c.l.b16 %v2691
        %v2702 = vpack.c.b16 %v2699, %v2698
        %v2703 = vpack.c.b16 %v2701, %v2700
        %v2707 = vsel %vm728, %v2693, 0
        %2709 = vmatprep.subr.bf16.mxu0 0
        %2710 = vmatpush1.bf16.msra.mxu0 %v2702
        %2711 = vmatprep.subr.bf16.mxu0 0
        %2712 = vmatpush1.bf16.msra.mxu0 %v2703
        %2713 = vmatprep.subr.bf16.mxu0 0
        %2714 = vmatpush1.bf16.msra.mxu0 0
        %2715 = vmatprep.subr.bf16.mxu0 0
        %2716 = vmatpush1.bf16.msra.mxu0 0
        %2717 = vmatprep.subr.bf16.mxu0 0
        %2718 = vmatpush1.bf16.msra.mxu0 0
        %2719 = vmatprep.subr.bf16.mxu0 0
        %2720 = vmatpush1.bf16.msra.mxu0 0
        %2721 = vmatprep.subr.bf16.mxu0 0
        %2722 = vmatpush1.bf16.msra.mxu0 0
        %2723 = vmatprep.subr.bf16.mxu0 0
        %2724 = vmatpush1.bf16.msra.mxu0 0
        %2725 = vmatprep.subr.bf16.mxu0 0
        %2726 = vmatpush1.bf16.msra.mxu0 0
        %2727 = vmatprep.subr.bf16.mxu0 0
        %2728 = vmatpush1.bf16.msra.mxu0 0
        %2729 = vmatprep.subr.bf16.mxu0 0
        %2730 = vmatpush1.bf16.msra.mxu0 0
        %2731 = vmatprep.subr.bf16.mxu0 0
        %2732 = vmatpush1.bf16.msra.mxu0 0
        %2733 = vmatprep.subr.bf16.mxu0 0
        %2734 = vmatpush1.bf16.msra.mxu0 0
        %2735 = vmatprep.subr.bf16.mxu0 0
        %2736 = vmatpush1.bf16.msra.mxu0 0
        %2737 = vmatprep.subr.bf16.mxu0 0
        %2738 = vmatpush1.bf16.msra.mxu0 0
        %2739 = vmatprep.subr.bf16.mxu0 0
        %2740 = vmatpush1.bf16.msra.mxu0 0
        %2741 = vmatprep.mubr.bf16.mxu0 0
        %2742 = vmatmul.mubr.bf16.gmra.mrb[0].mxu0 %v2707
        %v2743 = vpop.f32.mrb[0].mxu0
        %v2744 = vadd.f32 %v2692, %v2743
        %v2745 = vpop.f32.mrb[0].mxu0
        %v2746 = vpop.f32.mrb[0].mxu0
        %v2747 = vpop.f32.mrb[0].mxu0
        %2748 = vdwg.mxu0
        %vm2749 = vcmask 516096
        %2750 = vst.msk [vmem:[%s722] sm:$0x1] %vm2749, %v2744
        %s2751 = sand.u32 %s437, 1
        %s2752 = scalar_lea.sflag [#allocation4], %s2751
        %s2753 = sand.u32 %s437, 1
        %s2754 = scalar_lea.vmem [#allocation17], %s2753
        // Predicated region
        $region129: #{tpu_custom_call.1} parent=91 // pred_check
          %p2755 = pneg %p447
        $region130: #{tpu_custom_call.1} parent=91 // pred_check_branch
          %2757 = sbr.rel (%p2755) target = $region132
        $region131: #{tpu_custom_call.1} parent=91 // pred_region
          %s2759 = ssub.s32 16, 16
          %2760 = vsyncadd %s2752, %s2759
          %s2761 = smul.addr %s41, 16
          %s2762 = scalar_lea.hbm %s18, %s2761
          %s2764 = sshll.u32 %s2754, 4
          %s2765 = int_to_ptr.vmem [resolvable:$true] %s2764
          %2767 = dma.vmem_to_hbm [thread:$0]  %s2765, 16, %s2762, %s2752
        $region132: #{tpu_custom_call.1} parent=91 // pred_fallthru
          _
      $region92: #{tpu_custom_call.1} parent=5 // pred_fallthru
        _
      %p2768 = scmp.le.s32.totalorder 2, %s36
      // Predicated region
      $region133: #{tpu_custom_call.1} parent=5 // pred_check
        %p2769 = pneg %p2768
      $region134: #{tpu_custom_call.1} parent=5 // pred_check_branch
        %2771 = sbr.rel (%p2769) target = $region136
      $region135: #{tpu_custom_call.1} parent=5 // pred_region
        %s2772 = ssub.s32 %s36, 2
        // Predicated region
        $region137: #{tpu_custom_call.1} parent=135 // pred_check
          %p2773 = pneg %p453
        $region138: #{tpu_custom_call.1} parent=135 // pred_check_branch
          %2775 = sbr.rel (%p2773) target = $region140
        $region139: #{tpu_custom_call.1} parent=135 // pred_region
          %s2776 = sand.u32 %s438, 1
          %s2777 = scalar_lea.sflag [#allocation4], %s2776
          %s2778 = sand.u32 %s438, 1
          %s2779 = scalar_lea.vmem [#allocation17], %s2778
          %2780 = dma.done %s2777, 16
        $region140: #{tpu_custom_call.1} parent=135 // pred_fallthru
          _
      $region136: #{tpu_custom_call.1} parent=5 // pred_fallthru
        _
    $region6: #{tpu_custom_call.1} parent=1 // loop_footer
      %s40 = sadd.s32 1, %s36
    $region7: #{tpu_custom_call.1} parent=1 // loop_footer_branch
      %35 = sbr.rel target = $region3
    $region8: #{tpu_custom_call.1} parent=1 // loop_exit
      _
    %2781 = vsyncpa [#allocation3], 1
    %s2782 = scalar_lea.sflag [#allocation3], 1
    %2783 = vsyncpa %s2782, 1
    %2784 = vsyncpa [#allocation6], 1
    %s2785 = scalar_lea.sflag [#allocation6], 1
    %2786 = vsyncpa %s2785, 1
    %2787 = vsyncpa [#allocation9], 1
    %2788 = vsyncpa [#allocation12], 1
    %2789 = vsyncpa [#allocation15], 1
    %2790 = vsyncpa [#allocation4], 1
    %s2791 = scalar_lea.sflag [#allocation4], 1
    %2792 = vsyncpa %s2791, 1

</llo_original>
